<compile_context>
chip_gen: v6e
topology: v6e:2x2x1
jax: 0.10.0
libtpu: 0.0.40
codegen_flags: <defaults>
</compile_context>

<pallas_src>
import functools

import jax
import jax.numpy as jnp
from jax.experimental import pallas as pl
from jax.experimental.pallas import tpu as pltpu

HIDDEN = 16            # GCNConv(num_node_features, 16)
LANE = 128             # lane width; hidden/class dims padded to this
NEG_BIG = -1e30
VMEM_LIMIT = 32 * 1024 * 1024          # raise v5e's 16 MiB default; safe on v7x
SMALL_NP_MAX = 1024                    # single fused-call path when padded N <= this
RHS_RESIDENT_MAX_BYTES = 4 * 1024 * 1024   # keep resident RHS well under VMEM budget


def _round_up(x, m):
    return (x + m - 1) // m * m


def _pick_tile(n):
    """Largest tile in {512,256,128} that still leaves >=2 row tiles (megacore)."""
    for t in (512, 256, 128):
        if _round_up(n, t) >= 2 * t:
            return t
    return _round_up(max(n, 1), LANE)


# --------------------------------------------------------------------------
# Kernel 1 (tiled path): one sweep of A for layer 1, fused with bias, ReLU and
# the h @ W2 feature transform.  Emits the pre-scaled bf16 RHS for layer 2.
#   o = d_row * ( relu(d_row * [(A+I) @ rhs] + b1) @ W2 )
# grid = (row_tiles, k_tiles); reduction axis last.
# --------------------------------------------------------------------------
def _layer1_kernel(a_ref, rhs_ref, d_ref, b1_ref, w2_ref, o_ref, acc_ref, *,
                   rhs_resident, tk):
    k = pl.program_id(1)
    if rhs_resident:
        off = pl.multiple_of(k * tk, tk)
        rhs = rhs_ref[pl.ds(off, tk), :]
    else:
        rhs = rhs_ref[...]
    a = a_ref[...].astype(jnp.float32).astype(jnp.bfloat16)  # int8 counts -> exact bf16
    contrib = jnp.dot(a, rhs, preferred_element_type=jnp.float32)

    @pl.when(k == 0)
    def _():
        acc_ref[...] = contrib

    @pl.when(k > 0)
    def _():
        acc_ref[...] += contrib

    @pl.when(k == pl.num_programs(1) - 1)
    def _():
        d = d_ref[...]                                        # (tm, 1) f32
        h = jnp.maximum(d * acc_ref[...] + b1_ref[...], 0.0)  # (tm, HP) f32
        hw2 = jnp.dot(h, w2_ref[...], preferred_element_type=jnp.float32)
        o_ref[...] = (d * hw2).astype(o_ref.dtype)            # bf16 RHS for layer 2


# --------------------------------------------------------------------------
# Kernel 2 (tiled path): second sweep of A fused with bias + log_softmax.
# Accumulates directly into the resident f32 output block (no scratch).
# --------------------------------------------------------------------------
def _layer2_kernel(a_ref, rhs_ref, d_ref, b2_ref, o_ref, *,
                   rhs_resident, tk, num_classes):
    k = pl.program_id(1)
    if rhs_resident:
        off = pl.multiple_of(k * tk, tk)
        rhs = rhs_ref[pl.ds(off, tk), :]
    else:
        rhs = rhs_ref[...]
    a = a_ref[...].astype(jnp.float32).astype(jnp.bfloat16)
    contrib = jnp.dot(a, rhs, preferred_element_type=jnp.float32)

    @pl.when(k == 0)
    def _():
        o_ref[...] = contrib

    @pl.when(k > 0)
    def _():
        o_ref[...] += contrib

    @pl.when(k == pl.num_programs(1) - 1)
    def _():
        z = d_ref[...] * o_ref[...] + b2_ref[...]
        col = jax.lax.broadcasted_iota(jnp.int32, z.shape, 1)
        valid = col < num_classes
        z = jnp.where(valid, z, NEG_BIG)
        m = jnp.max(z, axis=1, keepdims=True)
        s = z - m
        p = jnp.where(valid, jnp.exp(s), 0.0)
        lse = jnp.log(jnp.sum(p, axis=1, keepdims=True))
        o_ref[...] = jnp.where(valid, s - lse, 0.0)


# --------------------------------------------------------------------------
# Small-N fast path: both layers in a single pallas_call, A resident in VMEM.
# --------------------------------------------------------------------------
def _fused_small_kernel(a_ref, rhs_ref, d_ref, b1_ref, w2_ref, b2_ref, o_ref, *,
                        num_classes):
    a = a_ref[...].astype(jnp.float32).astype(jnp.bfloat16)
    d = d_ref[...]                                            # (N, 1) f32
    acc1 = jnp.dot(a, rhs_ref[...], preferred_element_type=jnp.float32)
    h = jnp.maximum(d * acc1 + b1_ref[...], 0.0)
    hw2 = jnp.dot(h, w2_ref[...], preferred_element_type=jnp.float32)
    rhs2 = (d * hw2).astype(jnp.bfloat16)
    z = d * jnp.dot(a, rhs2, preferred_element_type=jnp.float32) + b2_ref[...]
    col = jax.lax.broadcasted_iota(jnp.int32, z.shape, 1)
    valid = col < num_classes
    z = jnp.where(valid, z, NEG_BIG)
    m = jnp.max(z, axis=1, keepdims=True)
    s = z - m
    p = jnp.where(valid, jnp.exp(s), 0.0)
    lse = jnp.log(jnp.sum(p, axis=1, keepdims=True))
    o_ref[...] = jnp.where(valid, s - lse, 0.0)


# --------------------------------------------------------------------------
# pallas_call builders
# --------------------------------------------------------------------------
def _layer1_call(a_p, rhs_p, d_p, b1_p, w2_p, tm, tk, rhs_resident):
    np_ = a_p.shape[0]
    hp, cp = w2_p.shape
    ni, nk = np_ // tm, np_ // tk
    if rhs_resident:
        rhs_spec = pl.BlockSpec((np_, hp), lambda i, k: (0, 0))
        rhs_bytes = np_ * hp * 2
    else:
        rhs_spec = pl.BlockSpec((tk, hp), lambda i, k: (k, 0))
        rhs_bytes = ni * np_ * hp * 2
    kernel = functools.partial(_layer1_kernel, rhs_resident=rhs_resident, tk=tk)
    return pl.pallas_call(
        kernel,
        out_shape=jax.ShapeDtypeStruct((np_, cp), jnp.bfloat16),
        grid_spec=pltpu.PrefetchScalarGridSpec(
            num_scalar_prefetch=0,
            grid=(ni, nk),
            in_specs=[
                pl.BlockSpec((tm, tk), lambda i, k: (i, k)),   # A (int8, 0/1 counts)
                rhs_spec,                                      # scaled XW1 (bf16)
                pl.BlockSpec((tm, 1), lambda i, k: (i, 0)),    # d_inv_sqrt rows
                pl.BlockSpec((1, hp), lambda i, k: (0, 0)),    # b1
                pl.BlockSpec((hp, cp), lambda i, k: (0, 0)),   # W2 (resident)
            ],
            out_specs=pl.BlockSpec((tm, cp), lambda i, k: (i, 0)),
            scratch_shapes=[pltpu.VMEM((tm, hp), jnp.float32)],
        ),
        compiler_params=pltpu.CompilerParams(
            dimension_semantics=("parallel", "arbitrary"),
            vmem_limit_bytes=VMEM_LIMIT),
        cost_estimate=pl.CostEstimate(
            flops=2 * np_ * np_ * hp + 2 * np_ * hp * cp,
            transcendentals=0,
            bytes_accessed=np_ * np_ + rhs_bytes + np_ * cp * 2 + np_ * 4),
    )(a_p, rhs_p, d_p, b1_p, w2_p)


def _layer2_call(a_p, rhs_p, d_p, b2_p, tm, tk, rhs_resident, num_classes):
    np_ = a_p.shape[0]
    cp = rhs_p.shape[1]
    ni, nk = np_ // tm, np_ // tk
    if rhs_resident:
        rhs_spec = pl.BlockSpec((np_, cp), lambda i, k: (0, 0))
        rhs_bytes = np_ * cp * 2
    else:
        rhs_spec = pl.BlockSpec((tk, cp), lambda i, k: (k, 0))
        rhs_bytes = ni * np_ * cp * 2
    kernel = functools.partial(_layer2_kernel, rhs_resident=rhs_resident, tk=tk,
                               num_classes=num_classes)
    return pl.pallas_call(
        kernel,
        out_shape=jax.ShapeDtypeStruct((np_, cp), jnp.float32),
        grid_spec=pltpu.PrefetchScalarGridSpec(
            num_scalar_prefetch=0,
            grid=(ni, nk),
            in_specs=[
                pl.BlockSpec((tm, tk), lambda i, k: (i, k)),
                rhs_spec,
                pl.BlockSpec((tm, 1), lambda i, k: (i, 0)),
                pl.BlockSpec((1, cp), lambda i, k: (0, 0)),
            ],
            out_specs=pl.BlockSpec((tm, cp), lambda i, k: (i, 0)),
            scratch_shapes=[],
        ),
        compiler_params=pltpu.CompilerParams(
            dimension_semantics=("parallel", "arbitrary"),
            vmem_limit_bytes=VMEM_LIMIT),
        cost_estimate=pl.CostEstimate(
            flops=2 * np_ * np_ * cp,
            transcendentals=np_ * cp,
            bytes_accessed=np_ * np_ + rhs_bytes + np_ * cp * 4 + np_ * 4),
    )(a_p, rhs_p, d_p, b2_p)


def _fused_small_call(a_p, rhs_p, d_p, b1_p, w2_p, b2_p, num_classes):
    np_ = a_p.shape[0]
    hp, cp = w2_p.shape
    kernel = functools.partial(_fused_small_kernel, num_classes=num_classes)
    return pl.pallas_call(
        kernel,
        out_shape=jax.ShapeDtypeStruct((np_, cp), jnp.float32),
        grid_spec=pltpu.PrefetchScalarGridSpec(
            num_scalar_prefetch=0,
            grid=(1,),
            in_specs=[
                pl.BlockSpec((np_, np_), lambda i: (0, 0)),
                pl.BlockSpec((np_, hp), lambda i: (0, 0)),
                pl.BlockSpec((np_, 1), lambda i: (0, 0)),
                pl.BlockSpec((1, hp), lambda i: (0, 0)),
                pl.BlockSpec((hp, cp), lambda i: (0, 0)),
                pl.BlockSpec((1, cp), lambda i: (0, 0)),
            ],
            out_specs=pl.BlockSpec((np_, cp), lambda i: (0, 0)),
            scratch_shapes=[],
        ),
        compiler_params=pltpu.CompilerParams(
            dimension_semantics=("arbitrary",),
            vmem_limit_bytes=VMEM_LIMIT),
        cost_estimate=pl.CostEstimate(
            flops=2 * np_ * np_ * (hp + cp) + 2 * np_ * hp * cp,
            transcendentals=np_ * cp,
            bytes_accessed=np_ * np_ + np_ * (hp * 2 + cp * 4 + 4)),
    )(a_p, rhs_p, d_p, b1_p, w2_p, b2_p)


# --------------------------------------------------------------------------
# Forward wrapper
# --------------------------------------------------------------------------
@functools.partial(jax.jit, static_argnames=("force_tiled",))
def gcn_forward(x, edge_index, w1, b1, w2, b2, *, force_tiled=False):
    """x: (N, F) float32; edge_index: (2, E) int32 (row0=source, row1=target)."""
    n = x.shape[0]
    num_classes = w2.shape[1]
    src, dst = edge_index[0], edge_index[1]

    # Normalization degrees (O(E), no N^2 pass): scatter-added edge weights,
    # exactly one unit self loop per node (PyG gcn_norm with unit weights).
    not_self = (src != dst).astype(jnp.float32)
    deg = jnp.zeros((n,), jnp.float32).at[dst].add(not_self) + 1.0
    d_inv_sqrt = jax.lax.rsqrt(deg)          # deg >= 1

    use_small = (not force_tiled) and (_round_up(n, LANE) <= SMALL_NP_MAX)
    if use_small:
        np_ = _round_up(n, LANE)
        tm = tk = np_
    else:
        tm = tk = _pick_tile(n)
        np_ = _round_up(n, tm)

    hp = _round_up(HIDDEN, LANE)
    cp = _round_up(num_classes, LANE)

    # Raw (A + I) with 0/1/count entries, built padded in one scatter, stored
    # as int8 (1 byte/element HBM stream; exact when upconverted in-kernel).
    # TODO(synk): long term, replace the O(N^2) densification with
    # scalar-prefetch-driven sparse gathering of nonzero blocks.
    idx = jnp.arange(n)
    a_p = (jnp.zeros((np_, np_), jnp.int32)
           .at[dst, src].add(1)
           .at[idx, idx].set(1)).astype(jnp.int8)

    d_p = jnp.zeros((np_, 1), jnp.float32).at[:n, 0].set(d_inv_sqrt)

    # Tiny dense feature transform + column pre-scaling in f32 glue.
    xw1 = jnp.dot(x, w1)                                     # (N, 16)
    rhs1_p = jnp.zeros((np_, hp), jnp.bfloat16).at[:n, :HIDDEN].set(
        (d_inv_sqrt[:, None] * xw1).astype(jnp.bfloat16))
    b1_p = jnp.zeros((1, hp), jnp.float32).at[0, :HIDDEN].set(b1)
    w2_p = jnp.zeros((hp, cp), jnp.float32).at[:HIDDEN, :num_classes].set(w2)
    b2_p = jnp.zeros((1, cp), jnp.float32).at[0, :num_classes].set(b2)

    # TODO(synk): F.dropout(training=True) path (PRNG mask) not implemented;
    # eval-mode dropout is the identity, which is what we compute.

    if use_small:
        out_p = _fused_small_call(a_p, rhs1_p, d_p, b1_p, w2_p, b2_p, num_classes)
    else:
        rhs_resident = np_ * LANE * 2 <= RHS_RESIDENT_MAX_BYTES
        rhs2_p = _layer1_call(a_p, rhs1_p, d_p, b1_p, w2_p, tm, tk, rhs_resident)
        out_p = _layer2_call(a_p, rhs2_p, d_p, b2_p, tm, tk, rhs_resident,
                             num_classes)

    return out_p[:n, :num_classes]


def gcn_reference(x, edge_index, w1, b1, w2, b2):
    """Pure-JAX f32 reference (same adjacency construction)."""
    n = x.shape[0]
    src, dst = edge_index[0], edge_index[1]
    idx = jnp.arange(n)
    adj = (jnp.zeros((n, n), jnp.float32).at[dst, src].add(1.0)
           .at[idx, idx].set(1.0))
    deg = jnp.sum(adj, axis=1)
    dis = jax.lax.rsqrt(deg)
    a = adj * dis[:, None] * dis[None, :]
    h = jnp.maximum(a @ (x @ w1) + b1, 0.0)
    z = a @ (h @ w2) + b2
    return jax.nn.log_softmax(z, axis=1)


if __name__ == "__main__":
    # 512 nodes, 8 features, 4 classes — exercises the small fused path and,
    # with force_tiled=True, the 2x2-grid tiled path (tile=256, resident RHS).
    N, F_IN, C, E = 512, 8, 4, 1024
    key = jax.random.PRNGKey(0)
    k_x, k_e, k_w1, k_b1, k_w2, k_b2 = jax.random.split(key, 6)

    x = jax.random.normal(k_x, (N, F_IN), dtype=jnp.float32)

    src = jax.random.randint(k_e, (E,), 0, N, dtype=jnp.int32)
    dst = jnp.roll(src, 7)
    edge_index = jnp.stack(
        [jnp.concatenate([src, dst]), jnp.concatenate([dst, src])], axis=0)

    w1 = jax.random.normal(k_w1, (F_IN, HIDDEN), jnp.float32) * (1.0 / jnp.sqrt(F_IN))
    b1 = jax.random.normal(k_b1, (HIDDEN,), jnp.float32) * 0.01
    w2 = jax.random.normal(k_w2, (HIDDEN, C), jnp.float32) * (1.0 / jnp.sqrt(HIDDEN))
    b2 = jax.random.normal(k_b2, (C,), jnp.float32) * 0.01

    ref = gcn_reference(x, edge_index, w1, b1, w2, b2)

    for force_tiled in (False, True):
        out = gcn_forward(x, edge_index, w1, b1, w2, b2, force_tiled=force_tiled)
        jax.block_until_ready(out)
        assert out.shape == (N, C)
        row_sums = jnp.sum(jnp.exp(out), axis=1)
        assert bool(jnp.all(jnp.abs(row_sums - 1.0) < 1e-4)), "rows not normalized"
        max_diff = float(jnp.max(jnp.abs(out - ref)))
        assert max_diff < 1e-1, f"force_tiled={force_tiled}: max |out - ref| = {max_diff}"

    print("KERNEL_OK")
</pallas_src>

<mosaic_0001>
module attributes {stable_mosaic.version = 11 : i64} {
  func.func private @main(%arg0: i32) attributes {dimension_semantics = [#tpu.dimension_semantics<core_parallel>], iteration_bounds = array<i64: 2>, tpu.core_type = #tpu.core_type<sc_scalar_subcore>, window_params = []} {
    return
  }
}

module attributes {stable_mosaic.version = 11 : i64} {
  func.func private @main(%arg0: i32) attributes {dimension_semantics = [#tpu.dimension_semantics<core_parallel>], iteration_bounds = array<i64: 2>, tpu.core_type = #tpu.core_type<sc_scalar_subcore>, window_params = []} {
    return
  }
}

module attributes {stable_mosaic.version = 11 : i64} {
  func.func @_fused_small_kernel(%arg0: i32, %arg1: memref<512x512xi8, #tpu.memory_space<vmem>>, %arg2: memref<512x128xbf16, #tpu.memory_space<vmem>>, %arg3: memref<512x1xf32, #tpu.memory_space<vmem>>, %arg4: memref<1x128xf32, #tpu.memory_space<vmem>>, %arg5: memref<128x128xf32, #tpu.memory_space<vmem>>, %arg6: memref<1x128xf32, #tpu.memory_space<vmem>>, %arg7: memref<512x128xf32, #tpu.memory_space<vmem>>) attributes {dimension_semantics = [#tpu.dimension_semantics<arbitrary>], iteration_bounds = array<i64: 1>, scalar_prefetch = 0 : i64, scratch_operands = 0 : i64, tpu.core_type = #tpu.core_type<tc>, window_params = [{pipeline_mode = #tpu.pipeline_mode<synchronous>, transform_indices = @transform_0, window_bounds = array<i64: 512, 512>}, {pipeline_mode = #tpu.pipeline_mode<synchronous>, transform_indices = @transform_1, window_bounds = array<i64: 512, 128>}, {pipeline_mode = #tpu.pipeline_mode<synchronous>, transform_indices = @transform_2, window_bounds = array<i64: 512, 1>}, {pipeline_mode = #tpu.pipeline_mode<synchronous>, transform_indices = @transform_3, window_bounds = array<i64: 1, 128>}, {pipeline_mode = #tpu.pipeline_mode<synchronous>, transform_indices = @transform_4, window_bounds = array<i64: 128, 128>}, {pipeline_mode = #tpu.pipeline_mode<synchronous>, transform_indices = @transform_5, window_bounds = array<i64: 1, 128>}, {pipeline_mode = #tpu.pipeline_mode<synchronous>, transform_indices = @transform_6, window_bounds = array<i64: 512, 128>}]} {
    %c0 = arith.constant 0 : index
    %c0_0 = arith.constant 0 : index
    %0 = vector.load %arg1[%c0, %c0_0] : memref<512x512xi8, #tpu.memory_space<vmem>>, vector<512x512xi8>
    %1 = arith.sitofp %0 : vector<512x512xi8> to vector<512x512xf32>
    %2 = arith.truncf %1 : vector<512x512xf32> to vector<512x512xbf16>
    %c0_1 = arith.constant 0 : index
    %c0_2 = arith.constant 0 : index
    %3 = vector.load %arg3[%c0_1, %c0_2] : memref<512x1xf32, #tpu.memory_space<vmem>>, vector<512x1xf32>
    %c0_3 = arith.constant 0 : index
    %c0_4 = arith.constant 0 : index
    %4 = vector.load %arg2[%c0_3, %c0_4] : memref<512x128xbf16, #tpu.memory_space<vmem>>, vector<512x128xbf16>
    %cst = arith.constant dense<0.000000e+00> : vector<512x128xf32>
    %5 = tpu.matmul %2, %4, %cst {dimension_numbers = #tpu.dot_dimension_numbers<[1], [0], [0], [1], [0, 0, 1, 1], [], []>} : vector<512x512xbf16>, vector<512x128xbf16>, vector<512x128xf32> -> vector<512x128xf32>
    %6 = vector.broadcast %3 : vector<512x1xf32> to vector<512x128xf32>
    %7 = arith.mulf %6, %5 : vector<512x128xf32>
    %c0_5 = arith.constant 0 : index
    %c0_6 = arith.constant 0 : index
    %8 = vector.load %arg4[%c0_5, %c0_6] : memref<1x128xf32, #tpu.memory_space<vmem>>, vector<1x128xf32>
    %9 = vector.broadcast %8 : vector<1x128xf32> to vector<512x128xf32>
    %10 = arith.addf %7, %9 : vector<512x128xf32>
    %cst_7 = arith.constant 0.000000e+00 : f32
    %11 = vector.broadcast %cst_7 : f32 to vector<512x128xf32>
    %12 = arith.maximumf %10, %11 : vector<512x128xf32>
    %c0_8 = arith.constant 0 : index
    %c0_9 = arith.constant 0 : index
    %13 = vector.load %arg5[%c0_8, %c0_9] : memref<128x128xf32, #tpu.memory_space<vmem>>, vector<128x128xf32>
    %cst_10 = arith.constant dense<0.000000e+00> : vector<512x128xf32>
    %14 = tpu.matmul %12, %13, %cst_10 {dimension_numbers = #tpu.dot_dimension_numbers<[1], [0], [0], [1], [0, 0, 1, 1], [], []>} : vector<512x128xf32>, vector<128x128xf32>, vector<512x128xf32> -> vector<512x128xf32>
    %15 = vector.broadcast %3 : vector<512x1xf32> to vector<512x128xf32>
    %16 = arith.mulf %15, %14 : vector<512x128xf32>
    %17 = arith.truncf %16 : vector<512x128xf32> to vector<512x128xbf16>
    %cst_11 = arith.constant dense<0.000000e+00> : vector<512x128xf32>
    %18 = tpu.matmul %2, %17, %cst_11 {dimension_numbers = #tpu.dot_dimension_numbers<[1], [0], [0], [1], [0, 0, 1, 1], [], []>} : vector<512x512xbf16>, vector<512x128xbf16>, vector<512x128xf32> -> vector<512x128xf32>
    %19 = vector.broadcast %3 : vector<512x1xf32> to vector<512x128xf32>
    %20 = arith.mulf %19, %18 : vector<512x128xf32>
    %c0_12 = arith.constant 0 : index
    %c0_13 = arith.constant 0 : index
    %21 = vector.load %arg6[%c0_12, %c0_13] : memref<1x128xf32, #tpu.memory_space<vmem>>, vector<1x128xf32>
    %22 = vector.broadcast %21 : vector<1x128xf32> to vector<512x128xf32>
    %23 = arith.addf %20, %22 : vector<512x128xf32>
    %24 = tpu.iota {dimensions = array<i32: 1>} : vector<512x128xi32>
    %c4_i32 = arith.constant 4 : i32
    %25 = vector.broadcast %c4_i32 : i32 to vector<512x128xi32>
    %26 = arith.cmpi slt, %24, %25 : vector<512x128xi32>
    %cst_14 = arith.constant -1.000000e+30 : f32
    %27 = vector.broadcast %cst_14 : f32 to vector<512x128xf32>
    %28 = arith.select %26, %23, %27 : vector<512x128xi1>, vector<512x128xf32>
    %cst_15 = arith.constant dense<0xFF800000> : vector<512xf32>
    %29 = vector.multi_reduction <maximumf>, %28, %cst_15 [1] : vector<512x128xf32> to vector<512xf32>
    %30 = vector.shape_cast %29 : vector<512xf32> to vector<512x1xf32>
    %31 = vector.broadcast %30 : vector<512x1xf32> to vector<512x128xf32>
    %32 = arith.subf %28, %31 : vector<512x128xf32>
    %33 = math.exp %32 : vector<512x128xf32>
    %cst_16 = arith.constant 0.000000e+00 : f32
    %34 = vector.broadcast %cst_16 : f32 to vector<512x128xf32>
    %35 = arith.select %26, %33, %34 : vector<512x128xi1>, vector<512x128xf32>
    %cst_17 = arith.constant dense<0.000000e+00> : vector<512xf32>
    %36 = vector.multi_reduction <add>, %35, %cst_17 [1] : vector<512x128xf32> to vector<512xf32>
    %37 = vector.shape_cast %36 : vector<512xf32> to vector<512x1xf32>
    %38 = math.log %37 : vector<512x1xf32>
    %39 = vector.broadcast %38 : vector<512x1xf32> to vector<512x128xf32>
    %40 = arith.subf %32, %39 : vector<512x128xf32>
    %cst_18 = arith.constant 0.000000e+00 : f32
    %41 = vector.broadcast %cst_18 : f32 to vector<512x128xf32>
    %42 = arith.select %26, %40, %41 : vector<512x128xi1>, vector<512x128xf32>
    %c0_19 = arith.constant 0 : index
    %c0_20 = arith.constant 0 : index
    %43 = vector.load %arg7[%c0_19, %c0_20] : memref<512x128xf32, #tpu.memory_space<vmem>>, vector<512x128xf32>
    tpu.vector_store %arg7[%c0_19, %c0_20], %42 {strides = array<i32>} : memref<512x128xf32, #tpu.memory_space<vmem>>, vector<512x128xf32>,
    return
  }
  func.func @transform_0(%arg0: i32) -> (i32, i32) {
    %c0_i32 = arith.constant 0 : i32
    %c0_i32_0 = arith.constant 0 : i32
    %c0_i32_1 = arith.constant 0 : i32
    return %c0_i32, %c0_i32_0 : i32, i32
  }
  func.func @transform_1(%arg0: i32) -> (i32, i32) {
    %c0_i32 = arith.constant 0 : i32
    %c0_i32_0 = arith.constant 0 : i32
    %c0_i32_1 = arith.constant 0 : i32
    return %c0_i32, %c0_i32_0 : i32, i32
  }
  func.func @transform_2(%arg0: i32) -> (i32, i32) {
    %c0_i32 = arith.constant 0 : i32
    %c0_i32_0 = arith.constant 0 : i32
    %c0_i32_1 = arith.constant 0 : i32
    return %c0_i32, %c0_i32_0 : i32, i32
  }
  func.func @transform_3(%arg0: i32) -> (i32, i32) {
    %c0_i32 = arith.constant 0 : i32
    %c0_i32_0 = arith.constant 0 : i32
    %c0_i32_1 = arith.constant 0 : i32
    return %c0_i32, %c0_i32_0 : i32, i32
  }
  func.func @transform_4(%arg0: i32) -> (i32, i32) {
    %c0_i32 = arith.constant 0 : i32
    %c0_i32_0 = arith.constant 0 : i32
    %c0_i32_1 = arith.constant 0 : i32
    return %c0_i32, %c0_i32_0 : i32, i32
  }
  func.func @transform_5(%arg0: i32) -> (i32, i32) {
    %c0_i32 = arith.constant 0 : i32
    %c0_i32_0 = arith.constant 0 : i32
    %c0_i32_1 = arith.constant 0 : i32
    return %c0_i32, %c0_i32_0 : i32, i32
  }
  func.func @transform_6(%arg0: i32) -> (i32, i32) {
    %c0_i32 = arith.constant 0 : i32
    %c0_i32_0 = arith.constant 0 : i32
    %c0_i32_1 = arith.constant 0 : i32
    return %c0_i32, %c0_i32_0 : i32, i32
  }
}

</mosaic_0001>

<llo_original>
// kernel: gcn_forward.1
$region0: #{gcn_forward.1}
  #allocation0 [shape = 'u32[]', space=smem, size = 0x4, offset = 0x4, fixed_abs, tag = 'smem constant byte address 0x4 - core index']
  #allocation1 [shape = 'u32[144,128]{1,0:T(1,128)}', space=vmem, size = 0x12000, scoped, tag = 'internal scratch']
  %s0 = inlined_call_operand.vmem [shape: s8[512,512], index: 0, kind: input, shape index: {}]
  %s1 = inlined_call_operand.vmem [shape: bf16[512,128], index: 1, kind: input, shape index: {}]
  %s2 = inlined_call_operand.vmem [shape: f32[512,1], index: 2, kind: input, shape index: {}]
  %s3 = inlined_call_operand.vmem [shape: f32[1,128], index: 3, kind: input, shape index: {}]
  %s4 = inlined_call_operand.vmem [shape: f32[128,128], index: 4, kind: input, shape index: {}]
  %s5 = inlined_call_operand.vmem [shape: f32[1,128], index: 5, kind: input, shape index: {}]
  %s6 = inlined_call_operand.vmem [shape: f32[512,128], index: 6, kind: output, shape index: {}]
  %s7 = sld [smem:[#allocation0]]
  $region34: #{gcn_forward.1} parent=0
    _
  %s9 = ssub.s32 1, %s7
  %s10 = scalar_select 0, %s9, %s7
  // Predicated region
  $region2: #{gcn_forward.1} parent=0 // pred_check
    _
  $region3: #{gcn_forward.1} parent=0 // pred_check_branch
    %12 = sbr.rel (0) target = $region5
  $region4: #{gcn_forward.1} parent=0 // pred_region
    _
  $region5: #{gcn_forward.1} parent=0 // pred_fallthru
    _
  // Predicated region
  $region6: #{gcn_forward.1} parent=0 // pred_check
    _
  $region7: #{gcn_forward.1} parent=0 // pred_check_branch
    %14 = sbr.rel (0) target = $region9
  $region8: #{gcn_forward.1} parent=0 // pred_region
    _
  $region9: #{gcn_forward.1} parent=0 // pred_fallthru
    _
  // Predicated region
  $region10: #{gcn_forward.1} parent=0 // pred_check
    _
  $region11: #{gcn_forward.1} parent=0 // pred_check_branch
    %16 = sbr.rel (0) target = $region13
  $region12: #{gcn_forward.1} parent=0 // pred_region
    _
  $region13: #{gcn_forward.1} parent=0 // pred_fallthru
    _
  // Predicated region
  $region14: #{gcn_forward.1} parent=0 // pred_check
    _
  $region15: #{gcn_forward.1} parent=0 // pred_check_branch
    %18 = sbr.rel (0) target = $region17
  $region16: #{gcn_forward.1} parent=0 // pred_region
    _
  $region17: #{gcn_forward.1} parent=0 // pred_fallthru
    _
  // Predicated region
  $region18: #{gcn_forward.1} parent=0 // pred_check
    _
  $region19: #{gcn_forward.1} parent=0 // pred_check_branch
    %20 = sbr.rel (0) target = $region21
  $region20: #{gcn_forward.1} parent=0 // pred_region
    _
  $region21: #{gcn_forward.1} parent=0 // pred_fallthru
    _
  // Predicated region
  $region22: #{gcn_forward.1} parent=0 // pred_check
    _
  $region23: #{gcn_forward.1} parent=0 // pred_check_branch
    %22 = sbr.rel (0) target = $region25
  $region24: #{gcn_forward.1} parent=0 // pred_region
    _
  $region25: #{gcn_forward.1} parent=0 // pred_fallthru
    _
  %v24 = vld [vmem:[%s0] sm:$0xff]
  %v25 = vld [vmem:[%s0 + $0x8] sm:$0xff]
  %v26 = vld [vmem:[%s0 + $0x10] sm:$0xff]
  %v27 = vld [vmem:[%s0 + $0x18] sm:$0xff]
  %v28 = vld [vmem:[%s0 + $0x20] sm:$0xff]
  %v29 = vld [vmem:[%s0 + $0x28] sm:$0xff]
  %v30 = vld [vmem:[%s0 + $0x30] sm:$0xff]
  %v31 = vld [vmem:[%s0 + $0x38] sm:$0xff]
  %v32 = vld [vmem:[%s0 + $0x40] sm:$0xff]
  %v33 = vld [vmem:[%s0 + $0x48] sm:$0xff]
  %v34 = vld [vmem:[%s0 + $0x50] sm:$0xff]
  %v35 = vld [vmem:[%s0 + $0x58] sm:$0xff]
  %v36 = vld [vmem:[%s0 + $0x60] sm:$0xff]
  %v37 = vld [vmem:[%s0 + $0x68] sm:$0xff]
  %v38 = vld [vmem:[%s0 + $0x70] sm:$0xff]
  %v39 = vld [vmem:[%s0 + $0x78] sm:$0xff]
  %v40 = vld [vmem:[%s0 + $0x80] sm:$0xff]
  %v41 = vld [vmem:[%s0 + $0x88] sm:$0xff]
  %v42 = vld [vmem:[%s0 + $0x90] sm:$0xff]
  %v43 = vld [vmem:[%s0 + $0x98] sm:$0xff]
  %v44 = vld [vmem:[%s0 + $0xa0] sm:$0xff]
  %v45 = vld [vmem:[%s0 + $0xa8] sm:$0xff]
  %v46 = vld [vmem:[%s0 + $0xb0] sm:$0xff]
  %v47 = vld [vmem:[%s0 + $0xb8] sm:$0xff]
  %v48 = vld [vmem:[%s0 + $0xc0] sm:$0xff]
  %v49 = vld [vmem:[%s0 + $0xc8] sm:$0xff]
  %v50 = vld [vmem:[%s0 + $0xd0] sm:$0xff]
  %v51 = vld [vmem:[%s0 + $0xd8] sm:$0xff]
  %v52 = vld [vmem:[%s0 + $0xe0] sm:$0xff]
  %v53 = vld [vmem:[%s0 + $0xe8] sm:$0xff]
  %v54 = vld [vmem:[%s0 + $0xf0] sm:$0xff]
  %v55 = vld [vmem:[%s0 + $0xf8] sm:$0xff]
  %v56 = vld [vmem:[%s0 + $0x100] sm:$0xff]
  %v57 = vld [vmem:[%s0 + $0x108] sm:$0xff]
  %v58 = vld [vmem:[%s0 + $0x110] sm:$0xff]
  %v59 = vld [vmem:[%s0 + $0x118] sm:$0xff]
  %v60 = vld [vmem:[%s0 + $0x120] sm:$0xff]
  %v61 = vld [vmem:[%s0 + $0x128] sm:$0xff]
  %v62 = vld [vmem:[%s0 + $0x130] sm:$0xff]
  %v63 = vld [vmem:[%s0 + $0x138] sm:$0xff]
  %v64 = vld [vmem:[%s0 + $0x140] sm:$0xff]
  %v65 = vld [vmem:[%s0 + $0x148] sm:$0xff]
  %v66 = vld [vmem:[%s0 + $0x150] sm:$0xff]
  %v67 = vld [vmem:[%s0 + $0x158] sm:$0xff]
  %v68 = vld [vmem:[%s0 + $0x160] sm:$0xff]
  %v69 = vld [vmem:[%s0 + $0x168] sm:$0xff]
  %v70 = vld [vmem:[%s0 + $0x170] sm:$0xff]
  %v71 = vld [vmem:[%s0 + $0x178] sm:$0xff]
  %v72 = vld [vmem:[%s0 + $0x180] sm:$0xff]
  %v73 = vld [vmem:[%s0 + $0x188] sm:$0xff]
  %v74 = vld [vmem:[%s0 + $0x190] sm:$0xff]
  %v75 = vld [vmem:[%s0 + $0x198] sm:$0xff]
  %v76 = vld [vmem:[%s0 + $0x1a0] sm:$0xff]
  %v77 = vld [vmem:[%s0 + $0x1a8] sm:$0xff]
  %v78 = vld [vmem:[%s0 + $0x1b0] sm:$0xff]
  %v79 = vld [vmem:[%s0 + $0x1b8] sm:$0xff]
  %v80 = vld [vmem:[%s0 + $0x1c0] sm:$0xff]
  %v81 = vld [vmem:[%s0 + $0x1c8] sm:$0xff]
  %v82 = vld [vmem:[%s0 + $0x1d0] sm:$0xff]
  %v83 = vld [vmem:[%s0 + $0x1d8] sm:$0xff]
  %v84 = vld [vmem:[%s0 + $0x1e0] sm:$0xff]
  %v85 = vld [vmem:[%s0 + $0x1e8] sm:$0xff]
  %v86 = vld [vmem:[%s0 + $0x1f0] sm:$0xff]
  %v87 = vld [vmem:[%s0 + $0x1f8] sm:$0xff]
  %v88 = vunpack.c.l.s8.bf16 %v24
  %v89 = vunpack.c.l.s8.bf16 %v25
  %v90 = vunpack.c.l.s8.bf16 %v26
  %v91 = vunpack.c.l.s8.bf16 %v27
  %v92 = vunpack.c.h.s8.bf16 %v24
  %v93 = vunpack.c.h.s8.bf16 %v25
  %v94 = vunpack.c.h.s8.bf16 %v26
  %v95 = vunpack.c.h.s8.bf16 %v27
  %v96 = vunpack.c.l.s8.bf16 %v28
  %v97 = vunpack.c.l.s8.bf16 %v29
  %v98 = vunpack.c.l.s8.bf16 %v30
  %v99 = vunpack.c.l.s8.bf16 %v31
  %v100 = vunpack.c.h.s8.bf16 %v28
  %v101 = vunpack.c.h.s8.bf16 %v29
  %v102 = vunpack.c.h.s8.bf16 %v30
  %v103 = vunpack.c.h.s8.bf16 %v31
  %v104 = vunpack.c.l.s8.bf16 %v32
  %v105 = vunpack.c.l.s8.bf16 %v33
  %v106 = vunpack.c.l.s8.bf16 %v34
  %v107 = vunpack.c.l.s8.bf16 %v35
  %v108 = vunpack.c.h.s8.bf16 %v32
  %v109 = vunpack.c.h.s8.bf16 %v33
  %v110 = vunpack.c.h.s8.bf16 %v34
  %v111 = vunpack.c.h.s8.bf16 %v35
  %v112 = vunpack.c.l.s8.bf16 %v36
  %v113 = vunpack.c.l.s8.bf16 %v37
  %v114 = vunpack.c.l.s8.bf16 %v38
  %v115 = vunpack.c.l.s8.bf16 %v39
  %v116 = vunpack.c.h.s8.bf16 %v36
  %v117 = vunpack.c.h.s8.bf16 %v37
  %v118 = vunpack.c.h.s8.bf16 %v38
  %v119 = vunpack.c.h.s8.bf16 %v39
  %v120 = vunpack.c.l.s8.bf16 %v40
  %v121 = vunpack.c.l.s8.bf16 %v41
  %v122 = vunpack.c.l.s8.bf16 %v42
  %v123 = vunpack.c.l.s8.bf16 %v43
  %v124 = vunpack.c.h.s8.bf16 %v40
  %v125 = vunpack.c.h.s8.bf16 %v41
  %v126 = vunpack.c.h.s8.bf16 %v42
  %v127 = vunpack.c.h.s8.bf16 %v43
  %v128 = vunpack.c.l.s8.bf16 %v44
  %v129 = vunpack.c.l.s8.bf16 %v45
  %v130 = vunpack.c.l.s8.bf16 %v46
  %v131 = vunpack.c.l.s8.bf16 %v47
  %v132 = vunpack.c.h.s8.bf16 %v44
  %v133 = vunpack.c.h.s8.bf16 %v45
  %v134 = vunpack.c.h.s8.bf16 %v46
  %v135 = vunpack.c.h.s8.bf16 %v47
  %v136 = vunpack.c.l.s8.bf16 %v48
  %v137 = vunpack.c.l.s8.bf16 %v49
  %v138 = vunpack.c.l.s8.bf16 %v50
  %v139 = vunpack.c.l.s8.bf16 %v51
  %v140 = vunpack.c.h.s8.bf16 %v48
  %v141 = vunpack.c.h.s8.bf16 %v49
  %v142 = vunpack.c.h.s8.bf16 %v50
  %v143 = vunpack.c.h.s8.bf16 %v51
  %v144 = vunpack.c.l.s8.bf16 %v52
  %v145 = vunpack.c.l.s8.bf16 %v53
  %v146 = vunpack.c.l.s8.bf16 %v54
  %v147 = vunpack.c.l.s8.bf16 %v55
  %v148 = vunpack.c.h.s8.bf16 %v52
  %v149 = vunpack.c.h.s8.bf16 %v53
  %v150 = vunpack.c.h.s8.bf16 %v54
  %v151 = vunpack.c.h.s8.bf16 %v55
  %v152 = vunpack.c.l.s8.bf16 %v56
  %v153 = vunpack.c.l.s8.bf16 %v57
  %v154 = vunpack.c.l.s8.bf16 %v58
  %v155 = vunpack.c.l.s8.bf16 %v59
  %v156 = vunpack.c.h.s8.bf16 %v56
  %v157 = vunpack.c.h.s8.bf16 %v57
  %v158 = vunpack.c.h.s8.bf16 %v58
  %v159 = vunpack.c.h.s8.bf16 %v59
  %v160 = vunpack.c.l.s8.bf16 %v60
  %v161 = vunpack.c.l.s8.bf16 %v61
  %v162 = vunpack.c.l.s8.bf16 %v62
  %v163 = vunpack.c.l.s8.bf16 %v63
  %v164 = vunpack.c.h.s8.bf16 %v60
  %v165 = vunpack.c.h.s8.bf16 %v61
  %v166 = vunpack.c.h.s8.bf16 %v62
  %v167 = vunpack.c.h.s8.bf16 %v63
  %v168 = vunpack.c.l.s8.bf16 %v64
  %v169 = vunpack.c.l.s8.bf16 %v65
  %v170 = vunpack.c.l.s8.bf16 %v66
  %v171 = vunpack.c.l.s8.bf16 %v67
  %v172 = vunpack.c.h.s8.bf16 %v64
  %v173 = vunpack.c.h.s8.bf16 %v65
  %v174 = vunpack.c.h.s8.bf16 %v66
  %v175 = vunpack.c.h.s8.bf16 %v67
  %v176 = vunpack.c.l.s8.bf16 %v68
  %v177 = vunpack.c.l.s8.bf16 %v69
  %v178 = vunpack.c.l.s8.bf16 %v70
  %v179 = vunpack.c.l.s8.bf16 %v71
  %v180 = vunpack.c.h.s8.bf16 %v68
  %v181 = vunpack.c.h.s8.bf16 %v69
  %v182 = vunpack.c.h.s8.bf16 %v70
  %v183 = vunpack.c.h.s8.bf16 %v71
  %v184 = vunpack.c.l.s8.bf16 %v72
  %v185 = vunpack.c.l.s8.bf16 %v73
  %v186 = vunpack.c.l.s8.bf16 %v74
  %v187 = vunpack.c.l.s8.bf16 %v75
  %v188 = vunpack.c.h.s8.bf16 %v72
  %v189 = vunpack.c.h.s8.bf16 %v73
  %v190 = vunpack.c.h.s8.bf16 %v74
  %v191 = vunpack.c.h.s8.bf16 %v75
  %v192 = vunpack.c.l.s8.bf16 %v76
  %v193 = vunpack.c.l.s8.bf16 %v77
  %v194 = vunpack.c.l.s8.bf16 %v78
  %v195 = vunpack.c.l.s8.bf16 %v79
  %v196 = vunpack.c.h.s8.bf16 %v76
  %v197 = vunpack.c.h.s8.bf16 %v77
  %v198 = vunpack.c.h.s8.bf16 %v78
  %v199 = vunpack.c.h.s8.bf16 %v79
  %v200 = vunpack.c.l.s8.bf16 %v80
  %v201 = vunpack.c.l.s8.bf16 %v81
  %v202 = vunpack.c.l.s8.bf16 %v82
  %v203 = vunpack.c.l.s8.bf16 %v83
  %v204 = vunpack.c.h.s8.bf16 %v80
  %v205 = vunpack.c.h.s8.bf16 %v81
  %v206 = vunpack.c.h.s8.bf16 %v82
  %v207 = vunpack.c.h.s8.bf16 %v83
  %v208 = vunpack.c.l.s8.bf16 %v84
  %v209 = vunpack.c.l.s8.bf16 %v85
  %v210 = vunpack.c.l.s8.bf16 %v86
  %v211 = vunpack.c.l.s8.bf16 %v87
  %v212 = vunpack.c.h.s8.bf16 %v84
  %v213 = vunpack.c.h.s8.bf16 %v85
  %v214 = vunpack.c.h.s8.bf16 %v86
  %v215 = vunpack.c.h.s8.bf16 %v87
  %v216 = vld [vmem:[%s2] sm:$0xff]
  %v217 = vld [vmem:[%s2 + $0x8] sm:$0xff]
  %v218 = vld [vmem:[%s2 + $0x10] sm:$0xff]
  %v219 = vld [vmem:[%s2 + $0x18] sm:$0xff]
  %v220 = vld [vmem:[%s2 + $0x20] sm:$0xff]
  %v221 = vld [vmem:[%s2 + $0x28] sm:$0xff]
  %v222 = vld [vmem:[%s2 + $0x30] sm:$0xff]
  %v223 = vld [vmem:[%s2 + $0x38] sm:$0xff]
  %v224 = vld [vmem:[%s2 + $0x40] sm:$0xff]
  %v225 = vld [vmem:[%s2 + $0x48] sm:$0xff]
  %v226 = vld [vmem:[%s2 + $0x50] sm:$0xff]
  %v227 = vld [vmem:[%s2 + $0x58] sm:$0xff]
  %v228 = vld [vmem:[%s2 + $0x60] sm:$0xff]
  %v229 = vld [vmem:[%s2 + $0x68] sm:$0xff]
  %v230 = vld [vmem:[%s2 + $0x70] sm:$0xff]
  %v231 = vld [vmem:[%s2 + $0x78] sm:$0xff]
  %v232 = vld [vmem:[%s2 + $0x80] sm:$0xff]
  %v233 = vld [vmem:[%s2 + $0x88] sm:$0xff]
  %v234 = vld [vmem:[%s2 + $0x90] sm:$0xff]
  %v235 = vld [vmem:[%s2 + $0x98] sm:$0xff]
  %v236 = vld [vmem:[%s2 + $0xa0] sm:$0xff]
  %v237 = vld [vmem:[%s2 + $0xa8] sm:$0xff]
  %v238 = vld [vmem:[%s2 + $0xb0] sm:$0xff]
  %v239 = vld [vmem:[%s2 + $0xb8] sm:$0xff]
  %v240 = vld [vmem:[%s2 + $0xc0] sm:$0xff]
  %v241 = vld [vmem:[%s2 + $0xc8] sm:$0xff]
  %v242 = vld [vmem:[%s2 + $0xd0] sm:$0xff]
  %v243 = vld [vmem:[%s2 + $0xd8] sm:$0xff]
  %v244 = vld [vmem:[%s2 + $0xe0] sm:$0xff]
  %v245 = vld [vmem:[%s2 + $0xe8] sm:$0xff]
  %v246 = vld [vmem:[%s2 + $0xf0] sm:$0xff]
  %v247 = vld [vmem:[%s2 + $0xf8] sm:$0xff]
  %v248 = vld [vmem:[%s2 + $0x100] sm:$0xff]
  %v249 = vld [vmem:[%s2 + $0x108] sm:$0xff]
  %v250 = vld [vmem:[%s2 + $0x110] sm:$0xff]
  %v251 = vld [vmem:[%s2 + $0x118] sm:$0xff]
  %v252 = vld [vmem:[%s2 + $0x120] sm:$0xff]
  %v253 = vld [vmem:[%s2 + $0x128] sm:$0xff]
  %v254 = vld [vmem:[%s2 + $0x130] sm:$0xff]
  %v255 = vld [vmem:[%s2 + $0x138] sm:$0xff]
  %v256 = vld [vmem:[%s2 + $0x140] sm:$0xff]
  %v257 = vld [vmem:[%s2 + $0x148] sm:$0xff]
  %v258 = vld [vmem:[%s2 + $0x150] sm:$0xff]
  %v259 = vld [vmem:[%s2 + $0x158] sm:$0xff]
  %v260 = vld [vmem:[%s2 + $0x160] sm:$0xff]
  %v261 = vld [vmem:[%s2 + $0x168] sm:$0xff]
  %v262 = vld [vmem:[%s2 + $0x170] sm:$0xff]
  %v263 = vld [vmem:[%s2 + $0x178] sm:$0xff]
  %v264 = vld [vmem:[%s2 + $0x180] sm:$0xff]
  %v265 = vld [vmem:[%s2 + $0x188] sm:$0xff]
  %v266 = vld [vmem:[%s2 + $0x190] sm:$0xff]
  %v267 = vld [vmem:[%s2 + $0x198] sm:$0xff]
  %v268 = vld [vmem:[%s2 + $0x1a0] sm:$0xff]
  %v269 = vld [vmem:[%s2 + $0x1a8] sm:$0xff]
  %v270 = vld [vmem:[%s2 + $0x1b0] sm:$0xff]
  %v271 = vld [vmem:[%s2 + $0x1b8] sm:$0xff]
  %v272 = vld [vmem:[%s2 + $0x1c0] sm:$0xff]
  %v273 = vld [vmem:[%s2 + $0x1c8] sm:$0xff]
  %v274 = vld [vmem:[%s2 + $0x1d0] sm:$0xff]
  %v275 = vld [vmem:[%s2 + $0x1d8] sm:$0xff]
  %v276 = vld [vmem:[%s2 + $0x1e0] sm:$0xff]
  %v277 = vld [vmem:[%s2 + $0x1e8] sm:$0xff]
  %v278 = vld [vmem:[%s2 + $0x1f0] sm:$0xff]
  %v279 = vld [vmem:[%s2 + $0x1f8] sm:$0xff]
  %v280 = vld [vmem:[%s1] sm:$0xf]
  %v281 = vld [vmem:[%s1 + $0x4] sm:$0xf]
  %v282 = vld [vmem:[%s1 + $0x8] sm:$0xf]
  %v283 = vld [vmem:[%s1 + $0xc] sm:$0xf]
  %v284 = vld [vmem:[%s1 + $0x10] sm:$0xf]
  %v285 = vld [vmem:[%s1 + $0x14] sm:$0xf]
  %v286 = vld [vmem:[%s1 + $0x18] sm:$0xf]
  %v287 = vld [vmem:[%s1 + $0x1c] sm:$0xf]
  %v288 = vld [vmem:[%s1 + $0x20] sm:$0xf]
  %v289 = vld [vmem:[%s1 + $0x24] sm:$0xf]
  %v290 = vld [vmem:[%s1 + $0x28] sm:$0xf]
  %v291 = vld [vmem:[%s1 + $0x2c] sm:$0xf]
  %v292 = vld [vmem:[%s1 + $0x30] sm:$0xf]
  %v293 = vld [vmem:[%s1 + $0x34] sm:$0xf]
  %v294 = vld [vmem:[%s1 + $0x38] sm:$0xf]
  %v295 = vld [vmem:[%s1 + $0x3c] sm:$0xf]
  %v296 = vld [vmem:[%s1 + $0x40] sm:$0xf]
  %v297 = vld [vmem:[%s1 + $0x44] sm:$0xf]
  %v298 = vld [vmem:[%s1 + $0x48] sm:$0xf]
  %v299 = vld [vmem:[%s1 + $0x4c] sm:$0xf]
  %v300 = vld [vmem:[%s1 + $0x50] sm:$0xf]
  %v301 = vld [vmem:[%s1 + $0x54] sm:$0xf]
  %v302 = vld [vmem:[%s1 + $0x58] sm:$0xf]
  %v303 = vld [vmem:[%s1 + $0x5c] sm:$0xf]
  %v304 = vld [vmem:[%s1 + $0x60] sm:$0xf]
  %v305 = vld [vmem:[%s1 + $0x64] sm:$0xf]
  %v306 = vld [vmem:[%s1 + $0x68] sm:$0xf]
  %v307 = vld [vmem:[%s1 + $0x6c] sm:$0xf]
  %v308 = vld [vmem:[%s1 + $0x70] sm:$0xf]
  %v309 = vld [vmem:[%s1 + $0x74] sm:$0xf]
  %v310 = vld [vmem:[%s1 + $0x78] sm:$0xf]
  %v311 = vld [vmem:[%s1 + $0x7c] sm:$0xf]
  %v312 = vld [vmem:[%s1 + $0x80] sm:$0xf]
  %v313 = vld [vmem:[%s1 + $0x84] sm:$0xf]
  %v314 = vld [vmem:[%s1 + $0x88] sm:$0xf]
  %v315 = vld [vmem:[%s1 + $0x8c] sm:$0xf]
  %v316 = vld [vmem:[%s1 + $0x90] sm:$0xf]
  %v317 = vld [vmem:[%s1 + $0x94] sm:$0xf]
  %v318 = vld [vmem:[%s1 + $0x98] sm:$0xf]
  %v319 = vld [vmem:[%s1 + $0x9c] sm:$0xf]
  %v320 = vld [vmem:[%s1 + $0xa0] sm:$0xf]
  %v321 = vld [vmem:[%s1 + $0xa4] sm:$0xf]
  %v322 = vld [vmem:[%s1 + $0xa8] sm:$0xf]
  %v323 = vld [vmem:[%s1 + $0xac] sm:$0xf]
  %v324 = vld [vmem:[%s1 + $0xb0] sm:$0xf]
  %v325 = vld [vmem:[%s1 + $0xb4] sm:$0xf]
  %v326 = vld [vmem:[%s1 + $0xb8] sm:$0xf]
  %v327 = vld [vmem:[%s1 + $0xbc] sm:$0xf]
  %v328 = vld [vmem:[%s1 + $0xc0] sm:$0xf]
  %v329 = vld [vmem:[%s1 + $0xc4] sm:$0xf]
  %v330 = vld [vmem:[%s1 + $0xc8] sm:$0xf]
  %v331 = vld [vmem:[%s1 + $0xcc] sm:$0xf]
  %v332 = vld [vmem:[%s1 + $0xd0] sm:$0xf]
  %v333 = vld [vmem:[%s1 + $0xd4] sm:$0xf]
  %v334 = vld [vmem:[%s1 + $0xd8] sm:$0xf]
  %v335 = vld [vmem:[%s1 + $0xdc] sm:$0xf]
  %v336 = vld [vmem:[%s1 + $0xe0] sm:$0xf]
  %v337 = vld [vmem:[%s1 + $0xe4] sm:$0xf]
  %v338 = vld [vmem:[%s1 + $0xe8] sm:$0xf]
  %v339 = vld [vmem:[%s1 + $0xec] sm:$0xf]
  %v340 = vld [vmem:[%s1 + $0xf0] sm:$0xf]
  %v341 = vld [vmem:[%s1 + $0xf4] sm:$0xf]
  %v342 = vld [vmem:[%s1 + $0xf8] sm:$0xf]
  %v343 = vld [vmem:[%s1 + $0xfc] sm:$0xf]
  %v408 = vunpack.c.l.b16 %v280
  %v409 = vunpack.c.l.b16 %v281
  %v410 = vunpack.c.l.b16 %v282
  %v411 = vunpack.c.l.b16 %v283
  %v412 = vunpack.c.l.b16 %v284
  %v413 = vunpack.c.l.b16 %v285
  %v414 = vunpack.c.l.b16 %v286
  %v415 = vunpack.c.l.b16 %v287
  %v416 = vunpack.c.l.b16 %v288
  %v417 = vunpack.c.l.b16 %v289
  %v418 = vunpack.c.l.b16 %v290
  %v419 = vunpack.c.l.b16 %v291
  %v420 = vunpack.c.l.b16 %v292
  %v421 = vunpack.c.l.b16 %v293
  %v422 = vunpack.c.l.b16 %v294
  %v423 = vunpack.c.l.b16 %v295
  %v424 = vunpack.c.l.b16 %v296
  %v425 = vunpack.c.l.b16 %v297
  %v426 = vunpack.c.l.b16 %v298
  %v427 = vunpack.c.l.b16 %v299
  %v428 = vunpack.c.l.b16 %v300
  %v429 = vunpack.c.l.b16 %v301
  %v430 = vunpack.c.l.b16 %v302
  %v431 = vunpack.c.l.b16 %v303
  %v432 = vunpack.c.l.b16 %v304
  %v433 = vunpack.c.l.b16 %v305
  %v434 = vunpack.c.l.b16 %v306
  %v435 = vunpack.c.l.b16 %v307
  %v436 = vunpack.c.l.b16 %v308
  %v437 = vunpack.c.l.b16 %v309
  %v438 = vunpack.c.l.b16 %v310
  %v439 = vunpack.c.l.b16 %v311
  %v440 = vunpack.c.l.b16 %v312
  %v441 = vunpack.c.l.b16 %v313
  %v442 = vunpack.c.l.b16 %v314
  %v443 = vunpack.c.l.b16 %v315
  %v444 = vunpack.c.l.b16 %v316
  %v445 = vunpack.c.l.b16 %v317
  %v446 = vunpack.c.l.b16 %v318
  %v447 = vunpack.c.l.b16 %v319
  %v448 = vunpack.c.l.b16 %v320
  %v449 = vunpack.c.l.b16 %v321
  %v450 = vunpack.c.l.b16 %v322
  %v451 = vunpack.c.l.b16 %v323
  %v452 = vunpack.c.l.b16 %v324
  %v453 = vunpack.c.l.b16 %v325
  %v454 = vunpack.c.l.b16 %v326
  %v455 = vunpack.c.l.b16 %v327
  %v456 = vunpack.c.l.b16 %v328
  %v457 = vunpack.c.l.b16 %v329
  %v458 = vunpack.c.l.b16 %v330
  %v459 = vunpack.c.l.b16 %v331
  %v460 = vunpack.c.l.b16 %v332
  %v461 = vunpack.c.l.b16 %v333
  %v462 = vunpack.c.l.b16 %v334
  %v463 = vunpack.c.l.b16 %v335
  %v464 = vunpack.c.l.b16 %v336
  %v465 = vunpack.c.l.b16 %v337
  %v466 = vunpack.c.l.b16 %v338
  %v467 = vunpack.c.l.b16 %v339
  %v468 = vunpack.c.l.b16 %v340
  %v469 = vunpack.c.l.b16 %v341
  %v470 = vunpack.c.l.b16 %v342
  %v471 = vunpack.c.l.b16 %v343
  %v472 = vpack.c.b16 %v409, %v408
  %v473 = vpack.c.b16 %v411, %v410
  %v474 = vpack.c.b16 %v413, %v412
  %v475 = vpack.c.b16 %v415, %v414
  %v476 = vpack.c.b16 %v417, %v416
  %v477 = vpack.c.b16 %v419, %v418
  %v478 = vpack.c.b16 %v421, %v420
  %v479 = vpack.c.b16 %v423, %v422
  %v480 = vpack.c.b16 %v425, %v424
  %v481 = vpack.c.b16 %v427, %v426
  %v482 = vpack.c.b16 %v429, %v428
  %v483 = vpack.c.b16 %v431, %v430
  %v484 = vpack.c.b16 %v433, %v432
  %v485 = vpack.c.b16 %v435, %v434
  %v486 = vpack.c.b16 %v437, %v436
  %v487 = vpack.c.b16 %v439, %v438
  %v488 = vpack.c.b16 %v441, %v440
  %v489 = vpack.c.b16 %v443, %v442
  %v490 = vpack.c.b16 %v445, %v444
  %v491 = vpack.c.b16 %v447, %v446
  %v492 = vpack.c.b16 %v449, %v448
  %v493 = vpack.c.b16 %v451, %v450
  %v494 = vpack.c.b16 %v453, %v452
  %v495 = vpack.c.b16 %v455, %v454
  %v496 = vpack.c.b16 %v457, %v456
  %v497 = vpack.c.b16 %v459, %v458
  %v498 = vpack.c.b16 %v461, %v460
  %v499 = vpack.c.b16 %v463, %v462
  %v500 = vpack.c.b16 %v465, %v464
  %v501 = vpack.c.b16 %v467, %v466
  %v502 = vpack.c.b16 %v469, %v468
  %v503 = vpack.c.b16 %v471, %v470
  %536 = vmatprep.subr.bf16.mxu0 0
  %537 = vmatpush1.bf16.msra.mxu0 %v479
  %538 = vmatprep.subr.bf16.mxu0 0
  %539 = vmatpush1.bf16.msra.mxu0 %v478
  %540 = vmatprep.subr.bf16.mxu0 0
  %541 = vmatpush1.bf16.msra.mxu0 %v477
  %542 = vmatprep.subr.bf16.mxu0 0
  %543 = vmatpush1.bf16.msra.mxu0 %v476
  %544 = vmatprep.subr.bf16.mxu0 0
  %545 = vmatpush1.bf16.msra.mxu0 %v475
  %546 = vmatprep.subr.bf16.mxu0 0
  %547 = vmatpush1.bf16.msra.mxu0 %v474
  %548 = vmatprep.subr.bf16.mxu0 0
  %549 = vmatpush1.bf16.msra.mxu0 %v473
  %550 = vmatprep.subr.bf16.mxu0 0
  %551 = vmatpush1.bf16.msra.mxu0 %v472
  %552 = vmatprep.subr.bf16.mxu0 0
  %553 = vmatpush2.bf16.msra.mxu0 %v487
  %554 = vmatprep.subr.bf16.mxu0 0
  %555 = vmatpush2.bf16.msra.mxu0 %v486
  %556 = vmatprep.subr.bf16.mxu0 0
  %557 = vmatpush2.bf16.msra.mxu0 %v485
  %558 = vmatprep.subr.bf16.mxu0 0
  %559 = vmatpush2.bf16.msra.mxu0 %v484
  %560 = vmatprep.subr.bf16.mxu0 0
  %561 = vmatpush2.bf16.msra.mxu0 %v483
  %562 = vmatprep.subr.bf16.mxu0 0
  %563 = vmatpush2.bf16.msra.mxu0 %v482
  %564 = vmatprep.subr.bf16.mxu0 0
  %565 = vmatpush2.bf16.msra.mxu0 %v481
  %566 = vmatprep.subr.bf16.mxu0 0
  %567 = vmatpush2.bf16.msra.mxu0 %v480
  %568 = vmatprep.mubr.bf16.mxu0 %v89
  %569 = vmatmul.mubr.bf16.gmra.mxu0 %v88
  %v570 = vpop.f32.mrf.mxu0
  %v571 = vadd.f32 0.0, %v570
  %v572 = vpop.f32.mrf.mxu0
  %v573 = vpop.f32.mrf.mxu0
  %v574 = vadd.f32 0.0, %v573
  %v575 = vpop.f32.mrf.mxu0
  %576 = vmatprep.mubr.bf16.mxu0 %v93
  %577 = vmatmul.mubr.bf16.gmra.mxu0 %v92
  %v578 = vpop.f32.mrf.mxu0
  %v579 = vadd.f32 0.0, %v578
  %v580 = vpop.f32.mrf.mxu0
  %v581 = vpop.f32.mrf.mxu0
  %v582 = vadd.f32 0.0, %v581
  %v583 = vpop.f32.mrf.mxu0
  %584 = vmatprep.mubr.bf16.mxu0 %v97
  %585 = vmatmul.mubr.bf16.gmra.mxu0 %v96
  %v586 = vpop.f32.mrf.mxu0
  %v587 = vadd.f32 0.0, %v586
  %v588 = vpop.f32.mrf.mxu0
  %v589 = vpop.f32.mrf.mxu0
  %v590 = vadd.f32 0.0, %v589
  %v591 = vpop.f32.mrf.mxu0
  %592 = vmatprep.mubr.bf16.mxu0 %v101
  %593 = vmatmul.mubr.bf16.gmra.mxu0 %v100
  %v594 = vpop.f32.mrf.mxu0
  %v595 = vadd.f32 0.0, %v594
  %v596 = vpop.f32.mrf.mxu0
  %v597 = vpop.f32.mrf.mxu0
  %v598 = vadd.f32 0.0, %v597
  %v599 = vpop.f32.mrf.mxu0
  %600 = vmatprep.mubr.bf16.mxu0 %v105
  %601 = vmatmul.mubr.bf16.gmra.mxu0 %v104
  %v602 = vpop.f32.mrf.mxu0
  %v603 = vadd.f32 0.0, %v602
  %v604 = vpop.f32.mrf.mxu0
  %v605 = vpop.f32.mrf.mxu0
  %v606 = vadd.f32 0.0, %v605
  %v607 = vpop.f32.mrf.mxu0
  %608 = vmatprep.mubr.bf16.mxu0 %v109
  %609 = vmatmul.mubr.bf16.gmra.mxu0 %v108
  %v610 = vpop.f32.mrf.mxu0
  %v611 = vadd.f32 0.0, %v610
  %v612 = vpop.f32.mrf.mxu0
  %v613 = vpop.f32.mrf.mxu0
  %v614 = vadd.f32 0.0, %v613
  %v615 = vpop.f32.mrf.mxu0
  %616 = vmatprep.mubr.bf16.mxu0 %v113
  %617 = vmatmul.mubr.bf16.gmra.mxu0 %v112
  %v618 = vpop.f32.mrf.mxu0
  %v619 = vadd.f32 0.0, %v618
  %v620 = vpop.f32.mrf.mxu0
  %v621 = vpop.f32.mrf.mxu0
  %v622 = vadd.f32 0.0, %v621
  %v623 = vpop.f32.mrf.mxu0
  %624 = vmatprep.mubr.bf16.mxu0 %v117
  %625 = vmatmul.mubr.bf16.gmra.mxu0 %v116
  %v626 = vpop.f32.mrf.mxu0
  %v627 = vadd.f32 0.0, %v626
  %v628 = vpop.f32.mrf.mxu0
  %v629 = vpop.f32.mrf.mxu0
  %v630 = vadd.f32 0.0, %v629
  %v631 = vpop.f32.mrf.mxu0
  %632 = vmatprep.mubr.bf16.mxu0 %v121
  %633 = vmatmul.mubr.bf16.gmra.mxu0 %v120
  %v634 = vpop.f32.mrf.mxu0
  %v635 = vadd.f32 0.0, %v634
  %v636 = vpop.f32.mrf.mxu0
  %v637 = vpop.f32.mrf.mxu0
  %v638 = vadd.f32 0.0, %v637
  %v639 = vpop.f32.mrf.mxu0
  %640 = vmatprep.mubr.bf16.mxu0 %v125
  %641 = vmatmul.mubr.bf16.gmra.mxu0 %v124
  %v642 = vpop.f32.mrf.mxu0
  %v643 = vadd.f32 0.0, %v642
  %v644 = vpop.f32.mrf.mxu0
  %v645 = vpop.f32.mrf.mxu0
  %v646 = vadd.f32 0.0, %v645
  %v647 = vpop.f32.mrf.mxu0
  %648 = vmatprep.mubr.bf16.mxu0 %v129
  %649 = vmatmul.mubr.bf16.gmra.mxu0 %v128
  %v650 = vpop.f32.mrf.mxu0
  %v651 = vadd.f32 0.0, %v650
  %v652 = vpop.f32.mrf.mxu0
  %v653 = vpop.f32.mrf.mxu0
  %v654 = vadd.f32 0.0, %v653
  %v655 = vpop.f32.mrf.mxu0
  %656 = vmatprep.mubr.bf16.mxu0 %v133
  %657 = vmatmul.mubr.bf16.gmra.mxu0 %v132
  %v658 = vpop.f32.mrf.mxu0
  %v659 = vadd.f32 0.0, %v658
  %v660 = vpop.f32.mrf.mxu0
  %v661 = vpop.f32.mrf.mxu0
  %v662 = vadd.f32 0.0, %v661
  %v663 = vpop.f32.mrf.mxu0
  %664 = vmatprep.mubr.bf16.mxu0 %v137
  %665 = vmatmul.mubr.bf16.gmra.mxu0 %v136
  %v666 = vpop.f32.mrf.mxu0
  %v667 = vadd.f32 0.0, %v666
  %v668 = vpop.f32.mrf.mxu0
  %v669 = vpop.f32.mrf.mxu0
  %v670 = vadd.f32 0.0, %v669
  %v671 = vpop.f32.mrf.mxu0
  %672 = vmatprep.mubr.bf16.mxu0 %v141
  %673 = vmatmul.mubr.bf16.gmra.mxu0 %v140
  %v674 = vpop.f32.mrf.mxu0
  %v675 = vadd.f32 0.0, %v674
  %v676 = vpop.f32.mrf.mxu0
  %v677 = vpop.f32.mrf.mxu0
  %v678 = vadd.f32 0.0, %v677
  %v679 = vpop.f32.mrf.mxu0
  %680 = vmatprep.mubr.bf16.mxu0 %v145
  %681 = vmatmul.mubr.bf16.gmra.mxu0 %v144
  %v682 = vpop.f32.mrf.mxu0
  %v683 = vadd.f32 0.0, %v682
  %v684 = vpop.f32.mrf.mxu0
  %v685 = vpop.f32.mrf.mxu0
  %v686 = vadd.f32 0.0, %v685
  %v687 = vpop.f32.mrf.mxu0
  %688 = vmatprep.mubr.bf16.mxu0 %v149
  %689 = vmatmul.mubr.bf16.gmra.mxu0 %v148
  %v690 = vpop.f32.mrf.mxu0
  %v691 = vadd.f32 0.0, %v690
  %v692 = vpop.f32.mrf.mxu0
  %v693 = vpop.f32.mrf.mxu0
  %v694 = vadd.f32 0.0, %v693
  %v695 = vpop.f32.mrf.mxu0
  %696 = vmatprep.mubr.bf16.mxu0 %v153
  %697 = vmatmul.mubr.bf16.gmra.mxu0 %v152
  %v698 = vpop.f32.mrf.mxu0
  %v699 = vadd.f32 0.0, %v698
  %v700 = vpop.f32.mrf.mxu0
  %v701 = vpop.f32.mrf.mxu0
  %v702 = vadd.f32 0.0, %v701
  %v703 = vpop.f32.mrf.mxu0
  %704 = vmatprep.mubr.bf16.mxu0 %v157
  %705 = vmatmul.mubr.bf16.gmra.mxu0 %v156
  %v706 = vpop.f32.mrf.mxu0
  %v707 = vadd.f32 0.0, %v706
  %v708 = vpop.f32.mrf.mxu0
  %v709 = vpop.f32.mrf.mxu0
  %v710 = vadd.f32 0.0, %v709
  %v711 = vpop.f32.mrf.mxu0
  %712 = vmatprep.mubr.bf16.mxu0 %v161
  %713 = vmatmul.mubr.bf16.gmra.mxu0 %v160
  %v714 = vpop.f32.mrf.mxu0
  %v715 = vadd.f32 0.0, %v714
  %v716 = vpop.f32.mrf.mxu0
  %v717 = vpop.f32.mrf.mxu0
  %v718 = vadd.f32 0.0, %v717
  %v719 = vpop.f32.mrf.mxu0
  %720 = vmatprep.mubr.bf16.mxu0 %v165
  %721 = vmatmul.mubr.bf16.gmra.mxu0 %v164
  %v722 = vpop.f32.mrf.mxu0
  %v723 = vadd.f32 0.0, %v722
  %v724 = vpop.f32.mrf.mxu0
  %v725 = vpop.f32.mrf.mxu0
  %v726 = vadd.f32 0.0, %v725
  %v727 = vpop.f32.mrf.mxu0
  %728 = vmatprep.mubr.bf16.mxu0 %v169
  %729 = vmatmul.mubr.bf16.gmra.mxu0 %v168
  %v730 = vpop.f32.mrf.mxu0
  %v731 = vadd.f32 0.0, %v730
  %v732 = vpop.f32.mrf.mxu0
  %v733 = vpop.f32.mrf.mxu0
  %v734 = vadd.f32 0.0, %v733
  %v735 = vpop.f32.mrf.mxu0
  %736 = vmatprep.mubr.bf16.mxu0 %v173
  %737 = vmatmul.mubr.bf16.gmra.mxu0 %v172
  %v738 = vpop.f32.mrf.mxu0
  %v739 = vadd.f32 0.0, %v738
  %v740 = vpop.f32.mrf.mxu0
  %v741 = vpop.f32.mrf.mxu0
  %v742 = vadd.f32 0.0, %v741
  %v743 = vpop.f32.mrf.mxu0
  %744 = vmatprep.mubr.bf16.mxu0 %v177
  %745 = vmatmul.mubr.bf16.gmra.mxu0 %v176
  %v746 = vpop.f32.mrf.mxu0
  %v747 = vadd.f32 0.0, %v746
  %v748 = vpop.f32.mrf.mxu0
  %v749 = vpop.f32.mrf.mxu0
  %v750 = vadd.f32 0.0, %v749
  %v751 = vpop.f32.mrf.mxu0
  %752 = vmatprep.mubr.bf16.mxu0 %v181
  %753 = vmatmul.mubr.bf16.gmra.mxu0 %v180
  %v754 = vpop.f32.mrf.mxu0
  %v755 = vadd.f32 0.0, %v754
  %v756 = vpop.f32.mrf.mxu0
  %v757 = vpop.f32.mrf.mxu0
  %v758 = vadd.f32 0.0, %v757
  %v759 = vpop.f32.mrf.mxu0
  %760 = vmatprep.mubr.bf16.mxu0 %v185
  %761 = vmatmul.mubr.bf16.gmra.mxu0 %v184
  %v762 = vpop.f32.mrf.mxu0
  %v763 = vadd.f32 0.0, %v762
  %v764 = vpop.f32.mrf.mxu0
  %v765 = vpop.f32.mrf.mxu0
  %v766 = vadd.f32 0.0, %v765
  %v767 = vpop.f32.mrf.mxu0
  %768 = vmatprep.mubr.bf16.mxu0 %v189
  %769 = vmatmul.mubr.bf16.gmra.mxu0 %v188
  %v770 = vpop.f32.mrf.mxu0
  %v771 = vadd.f32 0.0, %v770
  %v772 = vpop.f32.mrf.mxu0
  %v773 = vpop.f32.mrf.mxu0
  %v774 = vadd.f32 0.0, %v773
  %v775 = vpop.f32.mrf.mxu0
  %776 = vmatprep.mubr.bf16.mxu0 %v193
  %777 = vmatmul.mubr.bf16.gmra.mxu0 %v192
  %v778 = vpop.f32.mrf.mxu0
  %v779 = vadd.f32 0.0, %v778
  %v780 = vpop.f32.mrf.mxu0
  %v781 = vpop.f32.mrf.mxu0
  %v782 = vadd.f32 0.0, %v781
  %v783 = vpop.f32.mrf.mxu0
  %784 = vmatprep.mubr.bf16.mxu0 %v197
  %785 = vmatmul.mubr.bf16.gmra.mxu0 %v196
  %v786 = vpop.f32.mrf.mxu0
  %v787 = vadd.f32 0.0, %v786
  %v788 = vpop.f32.mrf.mxu0
  %v789 = vpop.f32.mrf.mxu0
  %v790 = vadd.f32 0.0, %v789
  %v791 = vpop.f32.mrf.mxu0
  %792 = vmatprep.mubr.bf16.mxu0 %v201
  %793 = vmatmul.mubr.bf16.gmra.mxu0 %v200
  %v794 = vpop.f32.mrf.mxu0
  %v795 = vadd.f32 0.0, %v794
  %v796 = vpop.f32.mrf.mxu0
  %v797 = vpop.f32.mrf.mxu0
  %v798 = vadd.f32 0.0, %v797
  %v799 = vpop.f32.mrf.mxu0
  %800 = vmatprep.mubr.bf16.mxu0 %v205
  %801 = vmatmul.mubr.bf16.gmra.mxu0 %v204
  %v802 = vpop.f32.mrf.mxu0
  %v803 = vadd.f32 0.0, %v802
  %v804 = vpop.f32.mrf.mxu0
  %v805 = vpop.f32.mrf.mxu0
  %v806 = vadd.f32 0.0, %v805
  %v807 = vpop.f32.mrf.mxu0
  %808 = vmatprep.mubr.bf16.mxu0 %v209
  %809 = vmatmul.mubr.bf16.gmra.mxu0 %v208
  %v810 = vpop.f32.mrf.mxu0
  %v811 = vadd.f32 0.0, %v810
  %v812 = vpop.f32.mrf.mxu0
  %v813 = vpop.f32.mrf.mxu0
  %v814 = vadd.f32 0.0, %v813
  %v815 = vpop.f32.mrf.mxu0
  %816 = vmatprep.mubr.bf16.mxu0 %v213
  %817 = vmatmul.mubr.bf16.gmra.mxu0 %v212
  %v818 = vpop.f32.mrf.mxu0
  %v819 = vadd.f32 0.0, %v818
  %v820 = vpop.f32.mrf.mxu0
  %v821 = vpop.f32.mrf.mxu0
  %v822 = vadd.f32 0.0, %v821
  %v823 = vpop.f32.mrf.mxu0
  %824 = vdwg.mxu0
  %825 = vmatprep.subr.bf16.mxu0 0
  %826 = vmatpush1.bf16.msra.mxu0 %v495
  %827 = vmatprep.subr.bf16.mxu0 0
  %828 = vmatpush1.bf16.msra.mxu0 %v494
  %829 = vmatprep.subr.bf16.mxu0 0
  %830 = vmatpush1.bf16.msra.mxu0 %v493
  %831 = vmatprep.subr.bf16.mxu0 0
  %832 = vmatpush1.bf16.msra.mxu0 %v492
  %833 = vmatprep.subr.bf16.mxu0 0
  %834 = vmatpush1.bf16.msra.mxu0 %v491
  %835 = vmatprep.subr.bf16.mxu0 0
  %836 = vmatpush1.bf16.msra.mxu0 %v490
  %837 = vmatprep.subr.bf16.mxu0 0
  %838 = vmatpush1.bf16.msra.mxu0 %v489
  %839 = vmatprep.subr.bf16.mxu0 0
  %840 = vmatpush1.bf16.msra.mxu0 %v488
  %841 = vmatprep.subr.bf16.mxu0 0
  %842 = vmatpush2.bf16.msra.mxu0 %v503
  %843 = vmatprep.subr.bf16.mxu0 0
  %844 = vmatpush2.bf16.msra.mxu0 %v502
  %845 = vmatprep.subr.bf16.mxu0 0
  %846 = vmatpush2.bf16.msra.mxu0 %v501
  %847 = vmatprep.subr.bf16.mxu0 0
  %848 = vmatpush2.bf16.msra.mxu0 %v500
  %849 = vmatprep.subr.bf16.mxu0 0
  %850 = vmatpush2.bf16.msra.mxu0 %v499
  %851 = vmatprep.subr.bf16.mxu0 0
  %852 = vmatpush2.bf16.msra.mxu0 %v498
  %853 = vmatprep.subr.bf16.mxu0 0
  %854 = vmatpush2.bf16.msra.mxu0 %v497
  %855 = vmatprep.subr.bf16.mxu0 0
  %856 = vmatpush2.bf16.msra.mxu0 %v496
  %857 = vmatprep.mubr.bf16.mxu0 %v91
  %858 = vmatmul.mubr.bf16.gmra.mxu0 %v90
  %v859 = vpop.f32.mrf.mxu0
  %v860 = vadd.f32 %v571, %v859
  %v861 = vpop.f32.mrf.mxu0
  %v862 = vpop.f32.mrf.mxu0
  %v863 = vadd.f32 %v574, %v862
  %v864 = vpop.f32.mrf.mxu0
  %865 = vmatprep.mubr.bf16.mxu0 %v95
  %866 = vmatmul.mubr.bf16.gmra.mxu0 %v94
  %v867 = vpop.f32.mrf.mxu0
  %v868 = vadd.f32 %v579, %v867
  %v869 = vpop.f32.mrf.mxu0
  %v870 = vpop.f32.mrf.mxu0
  %v871 = vadd.f32 %v582, %v870
  %v872 = vpop.f32.mrf.mxu0
  %873 = vmatprep.mubr.bf16.mxu0 %v99
  %874 = vmatmul.mubr.bf16.gmra.mxu0 %v98
  %v875 = vpop.f32.mrf.mxu0
  %v876 = vadd.f32 %v587, %v875
  %v877 = vpop.f32.mrf.mxu0
  %v878 = vpop.f32.mrf.mxu0
  %v879 = vadd.f32 %v590, %v878
  %v880 = vpop.f32.mrf.mxu0
  %881 = vmatprep.mubr.bf16.mxu0 %v103
  %882 = vmatmul.mubr.bf16.gmra.mxu0 %v102
  %v883 = vpop.f32.mrf.mxu0
  %v884 = vadd.f32 %v595, %v883
  %v885 = vpop.f32.mrf.mxu0
  %v886 = vpop.f32.mrf.mxu0
  %v887 = vadd.f32 %v598, %v886
  %v888 = vpop.f32.mrf.mxu0
  %889 = vmatprep.mubr.bf16.mxu0 %v107
  %890 = vmatmul.mubr.bf16.gmra.mxu0 %v106
  %v891 = vpop.f32.mrf.mxu0
  %v892 = vadd.f32 %v603, %v891
  %v893 = vpop.f32.mrf.mxu0
  %v894 = vpop.f32.mrf.mxu0
  %v895 = vadd.f32 %v606, %v894
  %v896 = vpop.f32.mrf.mxu0
  %897 = vmatprep.mubr.bf16.mxu0 %v111
  %898 = vmatmul.mubr.bf16.gmra.mxu0 %v110
  %v899 = vpop.f32.mrf.mxu0
  %v900 = vadd.f32 %v611, %v899
  %v901 = vpop.f32.mrf.mxu0
  %v902 = vpop.f32.mrf.mxu0
  %v903 = vadd.f32 %v614, %v902
  %v904 = vpop.f32.mrf.mxu0
  %905 = vmatprep.mubr.bf16.mxu0 %v115
  %906 = vmatmul.mubr.bf16.gmra.mxu0 %v114
  %v907 = vpop.f32.mrf.mxu0
  %v908 = vadd.f32 %v619, %v907
  %v909 = vpop.f32.mrf.mxu0
  %v910 = vpop.f32.mrf.mxu0
  %v911 = vadd.f32 %v622, %v910
  %v912 = vpop.f32.mrf.mxu0
  %913 = vmatprep.mubr.bf16.mxu0 %v119
  %914 = vmatmul.mubr.bf16.gmra.mxu0 %v118
  %v915 = vpop.f32.mrf.mxu0
  %v916 = vadd.f32 %v627, %v915
  %v917 = vpop.f32.mrf.mxu0
  %v918 = vpop.f32.mrf.mxu0
  %v919 = vadd.f32 %v630, %v918
  %v920 = vpop.f32.mrf.mxu0
  %921 = vmatprep.mubr.bf16.mxu0 %v123
  %922 = vmatmul.mubr.bf16.gmra.mxu0 %v122
  %v923 = vpop.f32.mrf.mxu0
  %v924 = vadd.f32 %v635, %v923
  %v925 = vpop.f32.mrf.mxu0
  %v926 = vpop.f32.mrf.mxu0
  %v927 = vadd.f32 %v638, %v926
  %v928 = vpop.f32.mrf.mxu0
  %929 = vmatprep.mubr.bf16.mxu0 %v127
  %930 = vmatmul.mubr.bf16.gmra.mxu0 %v126
  %v931 = vpop.f32.mrf.mxu0
  %v932 = vadd.f32 %v643, %v931
  %v933 = vpop.f32.mrf.mxu0
  %v934 = vpop.f32.mrf.mxu0
  %v935 = vadd.f32 %v646, %v934
  %v936 = vpop.f32.mrf.mxu0
  %937 = vmatprep.mubr.bf16.mxu0 %v131
  %938 = vmatmul.mubr.bf16.gmra.mxu0 %v130
  %v939 = vpop.f32.mrf.mxu0
  %v940 = vadd.f32 %v651, %v939
  %v941 = vpop.f32.mrf.mxu0
  %v942 = vpop.f32.mrf.mxu0
  %v943 = vadd.f32 %v654, %v942
  %v944 = vpop.f32.mrf.mxu0
  %945 = vmatprep.mubr.bf16.mxu0 %v135
  %946 = vmatmul.mubr.bf16.gmra.mxu0 %v134
  %v947 = vpop.f32.mrf.mxu0
  %v948 = vadd.f32 %v659, %v947
  %v949 = vpop.f32.mrf.mxu0
  %v950 = vpop.f32.mrf.mxu0
  %v951 = vadd.f32 %v662, %v950
  %v952 = vpop.f32.mrf.mxu0
  %953 = vmatprep.mubr.bf16.mxu0 %v139
  %954 = vmatmul.mubr.bf16.gmra.mxu0 %v138
  %v955 = vpop.f32.mrf.mxu0
  %v956 = vadd.f32 %v667, %v955
  %v957 = vpop.f32.mrf.mxu0
  %v958 = vpop.f32.mrf.mxu0
  %v959 = vadd.f32 %v670, %v958
  %v960 = vpop.f32.mrf.mxu0
  %961 = vmatprep.mubr.bf16.mxu0 %v143
  %962 = vmatmul.mubr.bf16.gmra.mxu0 %v142
  %v963 = vpop.f32.mrf.mxu0
  %v964 = vadd.f32 %v675, %v963
  %v965 = vpop.f32.mrf.mxu0
  %v966 = vpop.f32.mrf.mxu0
  %v967 = vadd.f32 %v678, %v966
  %v968 = vpop.f32.mrf.mxu0
  %969 = vmatprep.mubr.bf16.mxu0 %v147
  %970 = vmatmul.mubr.bf16.gmra.mxu0 %v146
  %v971 = vpop.f32.mrf.mxu0
  %v972 = vadd.f32 %v683, %v971
  %v973 = vpop.f32.mrf.mxu0
  %v974 = vpop.f32.mrf.mxu0
  %v975 = vadd.f32 %v686, %v974
  %v976 = vpop.f32.mrf.mxu0
  %977 = vmatprep.mubr.bf16.mxu0 %v151
  %978 = vmatmul.mubr.bf16.gmra.mxu0 %v150
  %v979 = vpop.f32.mrf.mxu0
  %v980 = vadd.f32 %v691, %v979
  %v981 = vpop.f32.mrf.mxu0
  %v982 = vpop.f32.mrf.mxu0
  %v983 = vadd.f32 %v694, %v982
  %v984 = vpop.f32.mrf.mxu0
  %985 = vmatprep.mubr.bf16.mxu0 %v155
  %986 = vmatmul.mubr.bf16.gmra.mxu0 %v154
  %v987 = vpop.f32.mrf.mxu0
  %v988 = vadd.f32 %v699, %v987
  %v989 = vpop.f32.mrf.mxu0
  %v990 = vpop.f32.mrf.mxu0
  %v991 = vadd.f32 %v702, %v990
  %v992 = vpop.f32.mrf.mxu0
  %993 = vmatprep.mubr.bf16.mxu0 %v159
  %994 = vmatmul.mubr.bf16.gmra.mxu0 %v158
  %v995 = vpop.f32.mrf.mxu0
  %v996 = vadd.f32 %v707, %v995
  %v997 = vpop.f32.mrf.mxu0
  %v998 = vpop.f32.mrf.mxu0
  %v999 = vadd.f32 %v710, %v998
  %v1000 = vpop.f32.mrf.mxu0
  %1001 = vmatprep.mubr.bf16.mxu0 %v163
  %1002 = vmatmul.mubr.bf16.gmra.mxu0 %v162
  %v1003 = vpop.f32.mrf.mxu0
  %v1004 = vadd.f32 %v715, %v1003
  %v1005 = vpop.f32.mrf.mxu0
  %v1006 = vpop.f32.mrf.mxu0
  %v1007 = vadd.f32 %v718, %v1006
  %v1008 = vpop.f32.mrf.mxu0
  %1009 = vmatprep.mubr.bf16.mxu0 %v167
  %1010 = vmatmul.mubr.bf16.gmra.mxu0 %v166
  %v1011 = vpop.f32.mrf.mxu0
  %v1012 = vadd.f32 %v723, %v1011
  %v1013 = vpop.f32.mrf.mxu0
  %v1014 = vpop.f32.mrf.mxu0
  %v1015 = vadd.f32 %v726, %v1014
  %v1016 = vpop.f32.mrf.mxu0
  %1017 = vmatprep.mubr.bf16.mxu0 %v171
  %1018 = vmatmul.mubr.bf16.gmra.mxu0 %v170
  %v1019 = vpop.f32.mrf.mxu0
  %v1020 = vadd.f32 %v731, %v1019
  %v1021 = vpop.f32.mrf.mxu0
  %v1022 = vpop.f32.mrf.mxu0
  %v1023 = vadd.f32 %v734, %v1022
  %v1024 = vpop.f32.mrf.mxu0
  %1025 = vmatprep.mubr.bf16.mxu0 %v175
  %1026 = vmatmul.mubr.bf16.gmra.mxu0 %v174
  %v1027 = vpop.f32.mrf.mxu0
  %v1028 = vadd.f32 %v739, %v1027
  %v1029 = vpop.f32.mrf.mxu0
  %v1030 = vpop.f32.mrf.mxu0
  %v1031 = vadd.f32 %v742, %v1030
  %v1032 = vpop.f32.mrf.mxu0
  %1033 = vmatprep.mubr.bf16.mxu0 %v179
  %1034 = vmatmul.mubr.bf16.gmra.mxu0 %v178
  %v1035 = vpop.f32.mrf.mxu0
  %v1036 = vadd.f32 %v747, %v1035
  %v1037 = vpop.f32.mrf.mxu0
  %v1038 = vpop.f32.mrf.mxu0
  %v1039 = vadd.f32 %v750, %v1038
  %v1040 = vpop.f32.mrf.mxu0
  %1041 = vmatprep.mubr.bf16.mxu0 %v183
  %1042 = vmatmul.mubr.bf16.gmra.mxu0 %v182
  %v1043 = vpop.f32.mrf.mxu0
  %v1044 = vadd.f32 %v755, %v1043
  %v1045 = vpop.f32.mrf.mxu0
  %v1046 = vpop.f32.mrf.mxu0
  %v1047 = vadd.f32 %v758, %v1046
  %v1048 = vpop.f32.mrf.mxu0
  %1049 = vmatprep.mubr.bf16.mxu0 %v187
  %1050 = vmatmul.mubr.bf16.gmra.mxu0 %v186
  %v1051 = vpop.f32.mrf.mxu0
  %v1052 = vadd.f32 %v763, %v1051
  %v1053 = vpop.f32.mrf.mxu0
  %v1054 = vpop.f32.mrf.mxu0
  %v1055 = vadd.f32 %v766, %v1054
  %v1056 = vpop.f32.mrf.mxu0
  %1057 = vmatprep.mubr.bf16.mxu0 %v191
  %1058 = vmatmul.mubr.bf16.gmra.mxu0 %v190
  %v1059 = vpop.f32.mrf.mxu0
  %v1060 = vadd.f32 %v771, %v1059
  %v1061 = vpop.f32.mrf.mxu0
  %v1062 = vpop.f32.mrf.mxu0
  %v1063 = vadd.f32 %v774, %v1062
  %v1064 = vpop.f32.mrf.mxu0
  %1065 = vmatprep.mubr.bf16.mxu0 %v195
  %1066 = vmatmul.mubr.bf16.gmra.mxu0 %v194
  %v1067 = vpop.f32.mrf.mxu0
  %v1068 = vadd.f32 %v779, %v1067
  %v1069 = vpop.f32.mrf.mxu0
  %v1070 = vpop.f32.mrf.mxu0
  %v1071 = vadd.f32 %v782, %v1070
  %v1072 = vpop.f32.mrf.mxu0
  %1073 = vmatprep.mubr.bf16.mxu0 %v199
  %1074 = vmatmul.mubr.bf16.gmra.mxu0 %v198
  %v1075 = vpop.f32.mrf.mxu0
  %v1076 = vadd.f32 %v787, %v1075
  %v1077 = vpop.f32.mrf.mxu0
  %v1078 = vpop.f32.mrf.mxu0
  %v1079 = vadd.f32 %v790, %v1078
  %v1080 = vpop.f32.mrf.mxu0
  %1081 = vmatprep.mubr.bf16.mxu0 %v203
  %1082 = vmatmul.mubr.bf16.gmra.mxu0 %v202
  %v1083 = vpop.f32.mrf.mxu0
  %v1084 = vadd.f32 %v795, %v1083
  %v1085 = vpop.f32.mrf.mxu0
  %v1086 = vpop.f32.mrf.mxu0
  %v1087 = vadd.f32 %v798, %v1086
  %v1088 = vpop.f32.mrf.mxu0
  %1089 = vmatprep.mubr.bf16.mxu0 %v207
  %1090 = vmatmul.mubr.bf16.gmra.mxu0 %v206
  %v1091 = vpop.f32.mrf.mxu0
  %v1092 = vadd.f32 %v803, %v1091
  %v1093 = vpop.f32.mrf.mxu0
  %v1094 = vpop.f32.mrf.mxu0
  %v1095 = vadd.f32 %v806, %v1094
  %v1096 = vpop.f32.mrf.mxu0
  %1097 = vmatprep.mubr.bf16.mxu0 %v211
  %1098 = vmatmul.mubr.bf16.gmra.mxu0 %v210
  %v1099 = vpop.f32.mrf.mxu0
  %v1100 = vadd.f32 %v811, %v1099
  %v1101 = vpop.f32.mrf.mxu0
  %v1102 = vpop.f32.mrf.mxu0
  %v1103 = vadd.f32 %v814, %v1102
  %v1104 = vpop.f32.mrf.mxu0
  %1105 = vmatprep.mubr.bf16.mxu0 %v215
  %1106 = vmatmul.mubr.bf16.gmra.mxu0 %v214
  %v1107 = vpop.f32.mrf.mxu0
  %v1108 = vadd.f32 %v819, %v1107
  %v1109 = vpop.f32.mrf.mxu0
  %v1110 = vpop.f32.mrf.mxu0
  %v1111 = vadd.f32 %v822, %v1110
  %v1112 = vpop.f32.mrf.mxu0
  %1113 = vdwg.mxu0
  %1115 = vset.pattern.permute.xlu0 0
  %1116 = vperm.xlu0 %1115, %v216
  %v1117 = vpop.permute.xlu0 %1116
  %1120 = vset.pattern.permute.xlu0 0
  %1121 = vperm.xlu0 %1120, %v217
  %v1122 = vpop.permute.xlu0 %1121
  %1125 = vset.pattern.permute.xlu0 0
  %1126 = vperm.xlu0 %1125, %v218
  %v1127 = vpop.permute.xlu0 %1126
  %1130 = vset.pattern.permute.xlu0 0
  %1131 = vperm.xlu0 %1130, %v219
  %v1132 = vpop.permute.xlu0 %1131
  %1135 = vset.pattern.permute.xlu0 0
  %1136 = vperm.xlu0 %1135, %v220
  %v1137 = vpop.permute.xlu0 %1136
  %1140 = vset.pattern.permute.xlu0 0
  %1141 = vperm.xlu0 %1140, %v221
  %v1142 = vpop.permute.xlu0 %1141
  %1145 = vset.pattern.permute.xlu0 0
  %1146 = vperm.xlu0 %1145, %v222
  %v1147 = vpop.permute.xlu0 %1146
  %1150 = vset.pattern.permute.xlu0 0
  %1151 = vperm.xlu0 %1150, %v223
  %v1152 = vpop.permute.xlu0 %1151
  %1155 = vset.pattern.permute.xlu0 0
  %1156 = vperm.xlu0 %1155, %v224
  %v1157 = vpop.permute.xlu0 %1156
  %1160 = vset.pattern.permute.xlu0 0
  %1161 = vperm.xlu0 %1160, %v225
  %v1162 = vpop.permute.xlu0 %1161
  %1165 = vset.pattern.permute.xlu0 0
  %1166 = vperm.xlu0 %1165, %v226
  %v1167 = vpop.permute.xlu0 %1166
  %1170 = vset.pattern.permute.xlu0 0
  %1171 = vperm.xlu0 %1170, %v227
  %v1172 = vpop.permute.xlu0 %1171
  %1175 = vset.pattern.permute.xlu0 0
  %1176 = vperm.xlu0 %1175, %v228
  %v1177 = vpop.permute.xlu0 %1176
  %1180 = vset.pattern.permute.xlu0 0
  %1181 = vperm.xlu0 %1180, %v229
  %v1182 = vpop.permute.xlu0 %1181
  %1185 = vset.pattern.permute.xlu0 0
  %1186 = vperm.xlu0 %1185, %v230
  %v1187 = vpop.permute.xlu0 %1186
  %1190 = vset.pattern.permute.xlu0 0
  %1191 = vperm.xlu0 %1190, %v231
  %v1192 = vpop.permute.xlu0 %1191
  %1195 = vset.pattern.permute.xlu0 0
  %1196 = vperm.xlu0 %1195, %v232
  %v1197 = vpop.permute.xlu0 %1196
  %1200 = vset.pattern.permute.xlu0 0
  %1201 = vperm.xlu0 %1200, %v233
  %v1202 = vpop.permute.xlu0 %1201
  %1205 = vset.pattern.permute.xlu0 0
  %1206 = vperm.xlu0 %1205, %v234
  %v1207 = vpop.permute.xlu0 %1206
  %1210 = vset.pattern.permute.xlu0 0
  %1211 = vperm.xlu0 %1210, %v235
  %v1212 = vpop.permute.xlu0 %1211
  %1215 = vset.pattern.permute.xlu0 0
  %1216 = vperm.xlu0 %1215, %v236
  %v1217 = vpop.permute.xlu0 %1216
  %1220 = vset.pattern.permute.xlu0 0
  %1221 = vperm.xlu0 %1220, %v237
  %v1222 = vpop.permute.xlu0 %1221
  %1225 = vset.pattern.permute.xlu0 0
  %1226 = vperm.xlu0 %1225, %v238
  %v1227 = vpop.permute.xlu0 %1226
  %1230 = vset.pattern.permute.xlu0 0
  %1231 = vperm.xlu0 %1230, %v239
  %v1232 = vpop.permute.xlu0 %1231
  %1235 = vset.pattern.permute.xlu0 0
  %1236 = vperm.xlu0 %1235, %v240
  %v1237 = vpop.permute.xlu0 %1236
  %1240 = vset.pattern.permute.xlu0 0
  %1241 = vperm.xlu0 %1240, %v241
  %v1242 = vpop.permute.xlu0 %1241
  %1245 = vset.pattern.permute.xlu0 0
  %1246 = vperm.xlu0 %1245, %v242
  %v1247 = vpop.permute.xlu0 %1246
  %1250 = vset.pattern.permute.xlu0 0
  %1251 = vperm.xlu0 %1250, %v243
  %v1252 = vpop.permute.xlu0 %1251
  %1255 = vset.pattern.permute.xlu0 0
  %1256 = vperm.xlu0 %1255, %v244
  %v1257 = vpop.permute.xlu0 %1256
  %1260 = vset.pattern.permute.xlu0 0
  %1261 = vperm.xlu0 %1260, %v245
  %v1262 = vpop.permute.xlu0 %1261
  %1265 = vset.pattern.permute.xlu0 0
  %1266 = vperm.xlu0 %1265, %v246
  %v1267 = vpop.permute.xlu0 %1266
  %1270 = vset.pattern.permute.xlu0 0
  %1271 = vperm.xlu0 %1270, %v247
  %v1272 = vpop.permute.xlu0 %1271
  %1275 = vset.pattern.permute.xlu0 0
  %1276 = vperm.xlu0 %1275, %v248
  %v1277 = vpop.permute.xlu0 %1276
  %1280 = vset.pattern.permute.xlu0 0
  %1281 = vperm.xlu0 %1280, %v249
  %v1282 = vpop.permute.xlu0 %1281
  %1285 = vset.pattern.permute.xlu0 0
  %1286 = vperm.xlu0 %1285, %v250
  %v1287 = vpop.permute.xlu0 %1286
  %1290 = vset.pattern.permute.xlu0 0
  %1291 = vperm.xlu0 %1290, %v251
  %v1292 = vpop.permute.xlu0 %1291
  %1295 = vset.pattern.permute.xlu0 0
  %1296 = vperm.xlu0 %1295, %v252
  %v1297 = vpop.permute.xlu0 %1296
  %1300 = vset.pattern.permute.xlu0 0
  %1301 = vperm.xlu0 %1300, %v253
  %v1302 = vpop.permute.xlu0 %1301
  %1305 = vset.pattern.permute.xlu0 0
  %1306 = vperm.xlu0 %1305, %v254
  %v1307 = vpop.permute.xlu0 %1306
  %1310 = vset.pattern.permute.xlu0 0
  %1311 = vperm.xlu0 %1310, %v255
  %v1312 = vpop.permute.xlu0 %1311
  %1315 = vset.pattern.permute.xlu0 0
  %1316 = vperm.xlu0 %1315, %v256
  %v1317 = vpop.permute.xlu0 %1316
  %1320 = vset.pattern.permute.xlu0 0
  %1321 = vperm.xlu0 %1320, %v257
  %v1322 = vpop.permute.xlu0 %1321
  %1325 = vset.pattern.permute.xlu0 0
  %1326 = vperm.xlu0 %1325, %v258
  %v1327 = vpop.permute.xlu0 %1326
  %1330 = vset.pattern.permute.xlu0 0
  %1331 = vperm.xlu0 %1330, %v259
  %v1332 = vpop.permute.xlu0 %1331
  %1335 = vset.pattern.permute.xlu0 0
  %1336 = vperm.xlu0 %1335, %v260
  %v1337 = vpop.permute.xlu0 %1336
  %1340 = vset.pattern.permute.xlu0 0
  %1341 = vperm.xlu0 %1340, %v261
  %v1342 = vpop.permute.xlu0 %1341
  %1345 = vset.pattern.permute.xlu0 0
  %1346 = vperm.xlu0 %1345, %v262
  %v1347 = vpop.permute.xlu0 %1346
  %1350 = vset.pattern.permute.xlu0 0
  %1351 = vperm.xlu0 %1350, %v263
  %v1352 = vpop.permute.xlu0 %1351
  %1355 = vset.pattern.permute.xlu0 0
  %1356 = vperm.xlu0 %1355, %v264
  %v1357 = vpop.permute.xlu0 %1356
  %1360 = vset.pattern.permute.xlu0 0
  %1361 = vperm.xlu0 %1360, %v265
  %v1362 = vpop.permute.xlu0 %1361
  %1365 = vset.pattern.permute.xlu0 0
  %1366 = vperm.xlu0 %1365, %v266
  %v1367 = vpop.permute.xlu0 %1366
  %1370 = vset.pattern.permute.xlu0 0
  %1371 = vperm.xlu0 %1370, %v267
  %v1372 = vpop.permute.xlu0 %1371
  %1375 = vset.pattern.permute.xlu0 0
  %1376 = vperm.xlu0 %1375, %v268
  %v1377 = vpop.permute.xlu0 %1376
  %1380 = vset.pattern.permute.xlu0 0
  %1381 = vperm.xlu0 %1380, %v269
  %v1382 = vpop.permute.xlu0 %1381
  %1385 = vset.pattern.permute.xlu0 0
  %1386 = vperm.xlu0 %1385, %v270
  %v1387 = vpop.permute.xlu0 %1386
  %1390 = vset.pattern.permute.xlu0 0
  %1391 = vperm.xlu0 %1390, %v271
  %v1392 = vpop.permute.xlu0 %1391
  %1395 = vset.pattern.permute.xlu0 0
  %1396 = vperm.xlu0 %1395, %v272
  %v1397 = vpop.permute.xlu0 %1396
  %1400 = vset.pattern.permute.xlu0 0
  %1401 = vperm.xlu0 %1400, %v273
  %v1402 = vpop.permute.xlu0 %1401
  %1405 = vset.pattern.permute.xlu0 0
  %1406 = vperm.xlu0 %1405, %v274
  %v1407 = vpop.permute.xlu0 %1406
  %1410 = vset.pattern.permute.xlu0 0
  %1411 = vperm.xlu0 %1410, %v275
  %v1412 = vpop.permute.xlu0 %1411
  %1415 = vset.pattern.permute.xlu0 0
  %1416 = vperm.xlu0 %1415, %v276
  %v1417 = vpop.permute.xlu0 %1416
  %1420 = vset.pattern.permute.xlu0 0
  %1421 = vperm.xlu0 %1420, %v277
  %v1422 = vpop.permute.xlu0 %1421
  %1425 = vset.pattern.permute.xlu0 0
  %1426 = vperm.xlu0 %1425, %v278
  %v1427 = vpop.permute.xlu0 %1426
  %1430 = vset.pattern.permute.xlu0 0
  %1431 = vperm.xlu0 %1430, %v279
  %v1432 = vpop.permute.xlu0 %1431
  %v1434 = vmul.f32 %v1117, %v860
  %v1435 = vmul.f32 %v1122, %v863
  %v1436 = vmul.f32 %v1127, %v868
  %v1437 = vmul.f32 %v1132, %v871
  %v1438 = vmul.f32 %v1137, %v876
  %v1439 = vmul.f32 %v1142, %v879
  %v1440 = vmul.f32 %v1147, %v884
  %v1441 = vmul.f32 %v1152, %v887
  %v1442 = vmul.f32 %v1157, %v892
  %v1443 = vmul.f32 %v1162, %v895
  %v1444 = vmul.f32 %v1167, %v900
  %v1445 = vmul.f32 %v1172, %v903
  %v1446 = vmul.f32 %v1177, %v908
  %v1447 = vmul.f32 %v1182, %v911
  %v1448 = vmul.f32 %v1187, %v916
  %v1449 = vmul.f32 %v1192, %v919
  %v1450 = vmul.f32 %v1197, %v924
  %v1451 = vmul.f32 %v1202, %v927
  %v1452 = vmul.f32 %v1207, %v932
  %v1453 = vmul.f32 %v1212, %v935
  %v1454 = vmul.f32 %v1217, %v940
  %v1455 = vmul.f32 %v1222, %v943
  %v1456 = vmul.f32 %v1227, %v948
  %v1457 = vmul.f32 %v1232, %v951
  %v1458 = vmul.f32 %v1237, %v956
  %v1459 = vmul.f32 %v1242, %v959
  %v1460 = vmul.f32 %v1247, %v964
  %v1461 = vmul.f32 %v1252, %v967
  %v1462 = vmul.f32 %v1257, %v972
  %v1463 = vmul.f32 %v1262, %v975
  %v1464 = vmul.f32 %v1267, %v980
  %v1465 = vmul.f32 %v1272, %v983
  %v1466 = vmul.f32 %v1277, %v988
  %v1467 = vmul.f32 %v1282, %v991
  %v1468 = vmul.f32 %v1287, %v996
  %v1469 = vmul.f32 %v1292, %v999
  %v1470 = vmul.f32 %v1297, %v1004
  %v1471 = vmul.f32 %v1302, %v1007
  %v1472 = vmul.f32 %v1307, %v1012
  %v1473 = vmul.f32 %v1312, %v1015
  %v1474 = vmul.f32 %v1317, %v1020
  %v1475 = vmul.f32 %v1322, %v1023
  %v1476 = vmul.f32 %v1327, %v1028
  %v1477 = vmul.f32 %v1332, %v1031
  %v1478 = vmul.f32 %v1337, %v1036
  %v1479 = vmul.f32 %v1342, %v1039
  %v1480 = vmul.f32 %v1347, %v1044
  %v1481 = vmul.f32 %v1352, %v1047
  %v1482 = vmul.f32 %v1357, %v1052
  %v1483 = vmul.f32 %v1362, %v1055
  %v1484 = vmul.f32 %v1367, %v1060
  %v1485 = vmul.f32 %v1372, %v1063
  %v1486 = vmul.f32 %v1377, %v1068
  %v1487 = vmul.f32 %v1382, %v1071
  %v1488 = vmul.f32 %v1387, %v1076
  %v1489 = vmul.f32 %v1392, %v1079
  %v1490 = vmul.f32 %v1397, %v1084
  %v1491 = vmul.f32 %v1402, %v1087
  %v1492 = vmul.f32 %v1407, %v1092
  %v1493 = vmul.f32 %v1412, %v1095
  %v1494 = vmul.f32 %v1417, %v1100
  %v1495 = vmul.f32 %v1422, %v1103
  %v1496 = vmul.f32 %v1427, %v1108
  %v1497 = vmul.f32 %v1432, %v1111
  %v1498 = vld [vmem:[%s3] sm:$0x1]
  %v1500 = vlaneseq
  %v1501 = vshrl.u32 %v1500, 7
  %v1502 = vsub.s32 0, %v1501
  %v1503 = vrot.slane %v1498, %v1502
  %v1505 = vadd.f32 %v1434, %v1503
  %v1506 = vadd.f32 %v1435, %v1503
  %v1507 = vadd.f32 %v1436, %v1503
  %v1508 = vadd.f32 %v1437, %v1503
  %v1509 = vadd.f32 %v1438, %v1503
  %v1510 = vadd.f32 %v1439, %v1503
  %v1511 = vadd.f32 %v1440, %v1503
  %v1512 = vadd.f32 %v1441, %v1503
  %v1513 = vadd.f32 %v1442, %v1503
  %v1514 = vadd.f32 %v1443, %v1503
  %v1515 = vadd.f32 %v1444, %v1503
  %v1516 = vadd.f32 %v1445, %v1503
  %v1517 = vadd.f32 %v1446, %v1503
  %v1518 = vadd.f32 %v1447, %v1503
  %v1519 = vadd.f32 %v1448, %v1503
  %v1520 = vadd.f32 %v1449, %v1503
  %v1521 = vadd.f32 %v1450, %v1503
  %v1522 = vadd.f32 %v1451, %v1503
  %v1523 = vadd.f32 %v1452, %v1503
  %v1524 = vadd.f32 %v1453, %v1503
  %v1525 = vadd.f32 %v1454, %v1503
  %v1526 = vadd.f32 %v1455, %v1503
  %v1527 = vadd.f32 %v1456, %v1503
  %v1528 = vadd.f32 %v1457, %v1503
  %v1529 = vadd.f32 %v1458, %v1503
  %v1530 = vadd.f32 %v1459, %v1503
  %v1531 = vadd.f32 %v1460, %v1503
  %v1532 = vadd.f32 %v1461, %v1503
  %v1533 = vadd.f32 %v1462, %v1503
  %v1534 = vadd.f32 %v1463, %v1503
  %v1535 = vadd.f32 %v1464, %v1503
  %v1536 = vadd.f32 %v1465, %v1503
  %v1537 = vadd.f32 %v1466, %v1503
  %v1538 = vadd.f32 %v1467, %v1503
  %v1539 = vadd.f32 %v1468, %v1503
  %v1540 = vadd.f32 %v1469, %v1503
  %v1541 = vadd.f32 %v1470, %v1503
  %v1542 = vadd.f32 %v1471, %v1503
  %v1543 = vadd.f32 %v1472, %v1503
  %v1544 = vadd.f32 %v1473, %v1503
  %v1545 = vadd.f32 %v1474, %v1503
  %v1546 = vadd.f32 %v1475, %v1503
  %v1547 = vadd.f32 %v1476, %v1503
  %v1548 = vadd.f32 %v1477, %v1503
  %v1549 = vadd.f32 %v1478, %v1503
  %v1550 = vadd.f32 %v1479, %v1503
  %v1551 = vadd.f32 %v1480, %v1503
  %v1552 = vadd.f32 %v1481, %v1503
  %v1553 = vadd.f32 %v1482, %v1503
  %v1554 = vadd.f32 %v1483, %v1503
  %v1555 = vadd.f32 %v1484, %v1503
  %v1556 = vadd.f32 %v1485, %v1503
  %v1557 = vadd.f32 %v1486, %v1503
  %v1558 = vadd.f32 %v1487, %v1503
  %v1559 = vadd.f32 %v1488, %v1503
  %v1560 = vadd.f32 %v1489, %v1503
  %v1561 = vadd.f32 %v1490, %v1503
  %v1562 = vadd.f32 %v1491, %v1503
  %v1563 = vadd.f32 %v1492, %v1503
  %v1564 = vadd.f32 %v1493, %v1503
  %v1565 = vadd.f32 %v1494, %v1503
  %v1566 = vadd.f32 %v1495, %v1503
  %v1567 = vadd.f32 %v1496, %v1503
  %v1568 = vadd.f32 %v1497, %v1503
  %v1569 = vmax.f32 %v1505, 0.0
  %v1570 = vmax.f32 %v1506, 0.0
  %v1571 = vmax.f32 %v1507, 0.0
  %v1572 = vmax.f32 %v1508, 0.0
  %v1573 = vmax.f32 %v1509, 0.0
  %v1574 = vmax.f32 %v1510, 0.0
  %v1575 = vmax.f32 %v1511, 0.0
  %v1576 = vmax.f32 %v1512, 0.0
  %v1577 = vmax.f32 %v1513, 0.0
  %v1578 = vmax.f32 %v1514, 0.0
  %v1579 = vmax.f32 %v1515, 0.0
  %v1580 = vmax.f32 %v1516, 0.0
  %v1581 = vmax.f32 %v1517, 0.0
  %v1582 = vmax.f32 %v1518, 0.0
  %v1583 = vmax.f32 %v1519, 0.0
  %v1584 = vmax.f32 %v1520, 0.0
  %v1585 = vmax.f32 %v1521, 0.0
  %v1586 = vmax.f32 %v1522, 0.0
  %v1587 = vmax.f32 %v1523, 0.0
  %v1588 = vmax.f32 %v1524, 0.0
  %v1589 = vmax.f32 %v1525, 0.0
  %v1590 = vmax.f32 %v1526, 0.0
  %v1591 = vmax.f32 %v1527, 0.0
  %v1592 = vmax.f32 %v1528, 0.0
  %v1593 = vmax.f32 %v1529, 0.0
  %v1594 = vmax.f32 %v1530, 0.0
  %v1595 = vmax.f32 %v1531, 0.0
  %v1596 = vmax.f32 %v1532, 0.0
  %v1597 = vmax.f32 %v1533, 0.0
  %v1598 = vmax.f32 %v1534, 0.0
  %v1599 = vmax.f32 %v1535, 0.0
  %v1600 = vmax.f32 %v1536, 0.0
  %v1601 = vmax.f32 %v1537, 0.0
  %v1602 = vmax.f32 %v1538, 0.0
  %v1603 = vmax.f32 %v1539, 0.0
  %v1604 = vmax.f32 %v1540, 0.0
  %v1605 = vmax.f32 %v1541, 0.0
  %v1606 = vmax.f32 %v1542, 0.0
  %v1607 = vmax.f32 %v1543, 0.0
  %v1608 = vmax.f32 %v1544, 0.0
  %v1609 = vmax.f32 %v1545, 0.0
  %v1610 = vmax.f32 %v1546, 0.0
  %v1611 = vmax.f32 %v1547, 0.0
  %v1612 = vmax.f32 %v1548, 0.0
  %v1613 = vmax.f32 %v1549, 0.0
  %v1614 = vmax.f32 %v1550, 0.0
  %v1615 = vmax.f32 %v1551, 0.0
  %v1616 = vmax.f32 %v1552, 0.0
  %v1617 = vmax.f32 %v1553, 0.0
  %v1618 = vmax.f32 %v1554, 0.0
  %v1619 = vmax.f32 %v1555, 0.0
  %v1620 = vmax.f32 %v1556, 0.0
  %v1621 = vmax.f32 %v1557, 0.0
  %v1622 = vmax.f32 %v1558, 0.0
  %v1623 = vmax.f32 %v1559, 0.0
  %v1624 = vmax.f32 %v1560, 0.0
  %v1625 = vmax.f32 %v1561, 0.0
  %v1626 = vmax.f32 %v1562, 0.0
  %v1627 = vmax.f32 %v1563, 0.0
  %v1628 = vmax.f32 %v1564, 0.0
  %v1629 = vmax.f32 %v1565, 0.0
  %v1630 = vmax.f32 %v1566, 0.0
  %v1631 = vmax.f32 %v1567, 0.0
  %v1632 = vmax.f32 %v1568, 0.0
  %v1633 = vld [vmem:[%s4] sm:$0xff]
  %v1634 = vld [vmem:[%s4 + $0x8] sm:$0xff]
  %v1635 = vld [vmem:[%s4 + $0x10] sm:$0xff]
  %v1636 = vld [vmem:[%s4 + $0x18] sm:$0xff]
  %v1637 = vld [vmem:[%s4 + $0x20] sm:$0xff]
  %v1638 = vld [vmem:[%s4 + $0x28] sm:$0xff]
  %v1639 = vld [vmem:[%s4 + $0x30] sm:$0xff]
  %v1640 = vld [vmem:[%s4 + $0x38] sm:$0xff]
  %v1641 = vld [vmem:[%s4 + $0x40] sm:$0xff]
  %v1642 = vld [vmem:[%s4 + $0x48] sm:$0xff]
  %v1643 = vld [vmem:[%s4 + $0x50] sm:$0xff]
  %v1644 = vld [vmem:[%s4 + $0x58] sm:$0xff]
  %v1645 = vld [vmem:[%s4 + $0x60] sm:$0xff]
  %v1646 = vld [vmem:[%s4 + $0x68] sm:$0xff]
  %v1647 = vld [vmem:[%s4 + $0x70] sm:$0xff]
  %v1648 = vld [vmem:[%s4 + $0x78] sm:$0xff]
  %1649 = vmatprep.subr.mxu0 0.0
  %1650 = vmatpush1.msra.mxu0 %v1648
  %1651 = vmatprep.subr.mxu0 0.0
  %1652 = vmatpush1.msra.mxu0 %v1647
  %1653 = vmatprep.subr.mxu0 0.0
  %1654 = vmatpush1.msra.mxu0 %v1646
  %1655 = vmatprep.subr.mxu0 0.0
  %1656 = vmatpush1.msra.mxu0 %v1645
  %1657 = vmatprep.subr.mxu0 0.0
  %1658 = vmatpush1.msra.mxu0 %v1644
  %1659 = vmatprep.subr.mxu0 0.0
  %1660 = vmatpush1.msra.mxu0 %v1643
  %1661 = vmatprep.subr.mxu0 0.0
  %1662 = vmatpush1.msra.mxu0 %v1642
  %1663 = vmatprep.subr.mxu0 0.0
  %1664 = vmatpush1.msra.mxu0 %v1641
  %1665 = vmatprep.subr.mxu0 0.0
  %1666 = vmatpush1.msra.mxu0 %v1640
  %1667 = vmatprep.subr.mxu0 0.0
  %1668 = vmatpush1.msra.mxu0 %v1639
  %1669 = vmatprep.subr.mxu0 0.0
  %1670 = vmatpush1.msra.mxu0 %v1638
  %1671 = vmatprep.subr.mxu0 0.0
  %1672 = vmatpush1.msra.mxu0 %v1637
  %1673 = vmatprep.subr.mxu0 0.0
  %1674 = vmatpush1.msra.mxu0 %v1636
  %1675 = vmatprep.subr.mxu0 0.0
  %1676 = vmatpush1.msra.mxu0 %v1635
  %1677 = vmatprep.subr.mxu0 0.0
  %1678 = vmatpush1.msra.mxu0 %v1634
  %1679 = vmatprep.subr.mxu0 0.0
  %1680 = vmatpush1.msra.mxu0 %v1633
  %1681 = vmatprep.subr.mxu0 0.0
  %1682 = vmatpush2.msra.mxu0 0.0
  %1683 = vmatprep.subr.mxu0 0.0
  %1684 = vmatpush2.msra.mxu0 0.0
  %1685 = vmatprep.subr.mxu0 0.0
  %1686 = vmatpush2.msra.mxu0 0.0
  %1687 = vmatprep.subr.mxu0 0.0
  %1688 = vmatpush2.msra.mxu0 0.0
  %1689 = vmatprep.subr.mxu0 0.0
  %1690 = vmatpush2.msra.mxu0 0.0
  %1691 = vmatprep.subr.mxu0 0.0
  %1692 = vmatpush2.msra.mxu0 0.0
  %1693 = vmatprep.subr.mxu0 0.0
  %1694 = vmatpush2.msra.mxu0 0.0
  %1695 = vmatprep.subr.mxu0 0.0
  %1696 = vmatpush2.msra.mxu0 0.0
  %1697 = vmatprep.subr.mxu0 0.0
  %1698 = vmatpush2.msra.mxu0 0.0
  %1699 = vmatprep.subr.mxu0 0.0
  %1700 = vmatpush2.msra.mxu0 0.0
  %1701 = vmatprep.subr.mxu0 0.0
  %1702 = vmatpush2.msra.mxu0 0.0
  %1703 = vmatprep.subr.mxu0 0.0
  %1704 = vmatpush2.msra.mxu0 0.0
  %1705 = vmatprep.subr.mxu0 0.0
  %1706 = vmatpush2.msra.mxu0 0.0
  %1707 = vmatprep.subr.mxu0 0.0
  %1708 = vmatpush2.msra.mxu0 0.0
  %1709 = vmatprep.subr.mxu0 0.0
  %1710 = vmatpush2.msra.mxu0 0.0
  %1711 = vmatprep.subr.mxu0 0.0
  %1712 = vmatpush2.msra.mxu0 0.0
  %1713 = vmatprep.mubr.f32.mxu0 0.0
  %1714 = vmatmul.mubr.f32.gmra.mxu0 %v1569
  %v1715 = vpop.f32.mrf.mxu0
  %v1716 = vadd.f32 0.0, %v1715
  %v1717 = vpop.f32.mrf.mxu0
  %1718 = vmatprep.mubr.f32.mxu0 0.0
  %1719 = vmatmul.mubr.f32.gmra.mxu0 %v1570
  %v1720 = vpop.f32.mrf.mxu0
  %v1721 = vadd.f32 0.0, %v1720
  %v1722 = vpop.f32.mrf.mxu0
  %1723 = vmatprep.mubr.f32.mxu0 0.0
  %1724 = vmatmul.mubr.f32.gmra.mxu0 %v1571
  %v1725 = vpop.f32.mrf.mxu0
  %v1726 = vadd.f32 0.0, %v1725
  %v1727 = vpop.f32.mrf.mxu0
  %1728 = vmatprep.mubr.f32.mxu0 0.0
  %1729 = vmatmul.mubr.f32.gmra.mxu0 %v1572
  %v1730 = vpop.f32.mrf.mxu0
  %v1731 = vadd.f32 0.0, %v1730
  %v1732 = vpop.f32.mrf.mxu0
  %1733 = vmatprep.mubr.f32.mxu0 0.0
  %1734 = vmatmul.mubr.f32.gmra.mxu0 %v1573
  %v1735 = vpop.f32.mrf.mxu0
  %v1736 = vadd.f32 0.0, %v1735
  %v1737 = vpop.f32.mrf.mxu0
  %1738 = vmatprep.mubr.f32.mxu0 0.0
  %1739 = vmatmul.mubr.f32.gmra.mxu0 %v1574
  %v1740 = vpop.f32.mrf.mxu0
  %v1741 = vadd.f32 0.0, %v1740
  %v1742 = vpop.f32.mrf.mxu0
  %1743 = vmatprep.mubr.f32.mxu0 0.0
  %1744 = vmatmul.mubr.f32.gmra.mxu0 %v1575
  %v1745 = vpop.f32.mrf.mxu0
  %v1746 = vadd.f32 0.0, %v1745
  %v1747 = vpop.f32.mrf.mxu0
  %1748 = vmatprep.mubr.f32.mxu0 0.0
  %1749 = vmatmul.mubr.f32.gmra.mxu0 %v1576
  %v1750 = vpop.f32.mrf.mxu0
  %v1751 = vadd.f32 0.0, %v1750
  %v1752 = vpop.f32.mrf.mxu0
  %1753 = vmatprep.mubr.f32.mxu0 0.0
  %1754 = vmatmul.mubr.f32.gmra.mxu0 %v1577
  %v1755 = vpop.f32.mrf.mxu0
  %v1756 = vadd.f32 0.0, %v1755
  %v1757 = vpop.f32.mrf.mxu0
  %1758 = vmatprep.mubr.f32.mxu0 0.0
  %1759 = vmatmul.mubr.f32.gmra.mxu0 %v1578
  %v1760 = vpop.f32.mrf.mxu0
  %v1761 = vadd.f32 0.0, %v1760
  %v1762 = vpop.f32.mrf.mxu0
  %1763 = vmatprep.mubr.f32.mxu0 0.0
  %1764 = vmatmul.mubr.f32.gmra.mxu0 %v1579
  %v1765 = vpop.f32.mrf.mxu0
  %v1766 = vadd.f32 0.0, %v1765
  %v1767 = vpop.f32.mrf.mxu0
  %1768 = vmatprep.mubr.f32.mxu0 0.0
  %1769 = vmatmul.mubr.f32.gmra.mxu0 %v1580
  %v1770 = vpop.f32.mrf.mxu0
  %v1771 = vadd.f32 0.0, %v1770
  %v1772 = vpop.f32.mrf.mxu0
  %1773 = vmatprep.mubr.f32.mxu0 0.0
  %1774 = vmatmul.mubr.f32.gmra.mxu0 %v1581
  %v1775 = vpop.f32.mrf.mxu0
  %v1776 = vadd.f32 0.0, %v1775
  %v1777 = vpop.f32.mrf.mxu0
  %1778 = vmatprep.mubr.f32.mxu0 0.0
  %1779 = vmatmul.mubr.f32.gmra.mxu0 %v1582
  %v1780 = vpop.f32.mrf.mxu0
  %v1781 = vadd.f32 0.0, %v1780
  %v1782 = vpop.f32.mrf.mxu0
  %1783 = vmatprep.mubr.f32.mxu0 0.0
  %1784 = vmatmul.mubr.f32.gmra.mxu0 %v1583
  %v1785 = vpop.f32.mrf.mxu0
  %v1786 = vadd.f32 0.0, %v1785
  %v1787 = vpop.f32.mrf.mxu0
  %1788 = vmatprep.mubr.f32.mxu0 0.0
  %1789 = vmatmul.mubr.f32.gmra.mxu0 %v1584
  %v1790 = vpop.f32.mrf.mxu0
  %v1791 = vadd.f32 0.0, %v1790
  %v1792 = vpop.f32.mrf.mxu0
  %1793 = vmatprep.mubr.f32.mxu0 0.0
  %1794 = vmatmul.mubr.f32.gmra.mxu0 %v1585
  %v1795 = vpop.f32.mrf.mxu0
  %v1796 = vadd.f32 0.0, %v1795
  %v1797 = vpop.f32.mrf.mxu0
  %1798 = vmatprep.mubr.f32.mxu0 0.0
  %1799 = vmatmul.mubr.f32.gmra.mxu0 %v1586
  %v1800 = vpop.f32.mrf.mxu0
  %v1801 = vadd.f32 0.0, %v1800
  %v1802 = vpop.f32.mrf.mxu0
  %1803 = vmatprep.mubr.f32.mxu0 0.0
  %1804 = vmatmul.mubr.f32.gmra.mxu0 %v1587
  %v1805 = vpop.f32.mrf.mxu0
  %v1806 = vadd.f32 0.0, %v1805
  %v1807 = vpop.f32.mrf.mxu0
  %1808 = vmatprep.mubr.f32.mxu0 0.0
  %1809 = vmatmul.mubr.f32.gmra.mxu0 %v1588
  %v1810 = vpop.f32.mrf.mxu0
  %v1811 = vadd.f32 0.0, %v1810
  %v1812 = vpop.f32.mrf.mxu0
  %1813 = vmatprep.mubr.f32.mxu0 0.0
  %1814 = vmatmul.mubr.f32.gmra.mxu0 %v1589
  %v1815 = vpop.f32.mrf.mxu0
  %v1816 = vadd.f32 0.0, %v1815
  %v1817 = vpop.f32.mrf.mxu0
  %1818 = vmatprep.mubr.f32.mxu0 0.0
  %1819 = vmatmul.mubr.f32.gmra.mxu0 %v1590
  %v1820 = vpop.f32.mrf.mxu0
  %v1821 = vadd.f32 0.0, %v1820
  %v1822 = vpop.f32.mrf.mxu0
  %1823 = vmatprep.mubr.f32.mxu0 0.0
  %1824 = vmatmul.mubr.f32.gmra.mxu0 %v1591
  %v1825 = vpop.f32.mrf.mxu0
  %v1826 = vadd.f32 0.0, %v1825
  %v1827 = vpop.f32.mrf.mxu0
  %1828 = vmatprep.mubr.f32.mxu0 0.0
  %1829 = vmatmul.mubr.f32.gmra.mxu0 %v1592
  %v1830 = vpop.f32.mrf.mxu0
  %v1831 = vadd.f32 0.0, %v1830
  %v1832 = vpop.f32.mrf.mxu0
  %1833 = vmatprep.mubr.f32.mxu0 0.0
  %1834 = vmatmul.mubr.f32.gmra.mxu0 %v1593
  %v1835 = vpop.f32.mrf.mxu0
  %v1836 = vadd.f32 0.0, %v1835
  %v1837 = vpop.f32.mrf.mxu0
  %1838 = vmatprep.mubr.f32.mxu0 0.0
  %1839 = vmatmul.mubr.f32.gmra.mxu0 %v1594
  %v1840 = vpop.f32.mrf.mxu0
  %v1841 = vadd.f32 0.0, %v1840
  %v1842 = vpop.f32.mrf.mxu0
  %1843 = vmatprep.mubr.f32.mxu0 0.0
  %1844 = vmatmul.mubr.f32.gmra.mxu0 %v1595
  %v1845 = vpop.f32.mrf.mxu0
  %v1846 = vadd.f32 0.0, %v1845
  %v1847 = vpop.f32.mrf.mxu0
  %1848 = vmatprep.mubr.f32.mxu0 0.0
  %1849 = vmatmul.mubr.f32.gmra.mxu0 %v1596
  %v1850 = vpop.f32.mrf.mxu0
  %v1851 = vadd.f32 0.0, %v1850
  %v1852 = vpop.f32.mrf.mxu0
  %1853 = vmatprep.mubr.f32.mxu0 0.0
  %1854 = vmatmul.mubr.f32.gmra.mxu0 %v1597
  %v1855 = vpop.f32.mrf.mxu0
  %v1856 = vadd.f32 0.0, %v1855
  %v1857 = vpop.f32.mrf.mxu0
  %1858 = vmatprep.mubr.f32.mxu0 0.0
  %1859 = vmatmul.mubr.f32.gmra.mxu0 %v1598
  %v1860 = vpop.f32.mrf.mxu0
  %v1861 = vadd.f32 0.0, %v1860
  %v1862 = vpop.f32.mrf.mxu0
  %1863 = vmatprep.mubr.f32.mxu0 0.0
  %1864 = vmatmul.mubr.f32.gmra.mxu0 %v1599
  %v1865 = vpop.f32.mrf.mxu0
  %v1866 = vadd.f32 0.0, %v1865
  %v1867 = vpop.f32.mrf.mxu0
  %1868 = vmatprep.mubr.f32.mxu0 0.0
  %1869 = vmatmul.mubr.f32.gmra.mxu0 %v1600
  %v1870 = vpop.f32.mrf.mxu0
  %v1871 = vadd.f32 0.0, %v1870
  %v1872 = vpop.f32.mrf.mxu0
  %1873 = vmatprep.mubr.f32.mxu0 0.0
  %1874 = vmatmul.mubr.f32.gmra.mxu0 %v1601
  %v1875 = vpop.f32.mrf.mxu0
  %v1876 = vadd.f32 0.0, %v1875
  %v1877 = vpop.f32.mrf.mxu0
  %1878 = vmatprep.mubr.f32.mxu0 0.0
  %1879 = vmatmul.mubr.f32.gmra.mxu0 %v1602
  %v1880 = vpop.f32.mrf.mxu0
  %v1881 = vadd.f32 0.0, %v1880
  %v1882 = vpop.f32.mrf.mxu0
  %1883 = vmatprep.mubr.f32.mxu0 0.0
  %1884 = vmatmul.mubr.f32.gmra.mxu0 %v1603
  %v1885 = vpop.f32.mrf.mxu0
  %v1886 = vadd.f32 0.0, %v1885
  %v1887 = vpop.f32.mrf.mxu0
  %1888 = vmatprep.mubr.f32.mxu0 0.0
  %1889 = vmatmul.mubr.f32.gmra.mxu0 %v1604
  %v1890 = vpop.f32.mrf.mxu0
  %v1891 = vadd.f32 0.0, %v1890
  %v1892 = vpop.f32.mrf.mxu0
  %1893 = vmatprep.mubr.f32.mxu0 0.0
  %1894 = vmatmul.mubr.f32.gmra.mxu0 %v1605
  %v1895 = vpop.f32.mrf.mxu0
  %v1896 = vadd.f32 0.0, %v1895
  %v1897 = vpop.f32.mrf.mxu0
  %1898 = vmatprep.mubr.f32.mxu0 0.0
  %1899 = vmatmul.mubr.f32.gmra.mxu0 %v1606
  %v1900 = vpop.f32.mrf.mxu0
  %v1901 = vadd.f32 0.0, %v1900
  %v1902 = vpop.f32.mrf.mxu0
  %1903 = vmatprep.mubr.f32.mxu0 0.0
  %1904 = vmatmul.mubr.f32.gmra.mxu0 %v1607
  %v1905 = vpop.f32.mrf.mxu0
  %v1906 = vadd.f32 0.0, %v1905
  %v1907 = vpop.f32.mrf.mxu0
  %1908 = vmatprep.mubr.f32.mxu0 0.0
  %1909 = vmatmul.mubr.f32.gmra.mxu0 %v1608
  %v1910 = vpop.f32.mrf.mxu0
  %v1911 = vadd.f32 0.0, %v1910
  %v1912 = vpop.f32.mrf.mxu0
  %1913 = vmatprep.mubr.f32.mxu0 0.0
  %1914 = vmatmul.mubr.f32.gmra.mxu0 %v1609
  %v1915 = vpop.f32.mrf.mxu0
  %v1916 = vadd.f32 0.0, %v1915
  %v1917 = vpop.f32.mrf.mxu0
  %1918 = vmatprep.mubr.f32.mxu0 0.0
  %1919 = vmatmul.mubr.f32.gmra.mxu0 %v1610
  %v1920 = vpop.f32.mrf.mxu0
  %v1921 = vadd.f32 0.0, %v1920
  %v1922 = vpop.f32.mrf.mxu0
  %1923 = vmatprep.mubr.f32.mxu0 0.0
  %1924 = vmatmul.mubr.f32.gmra.mxu0 %v1611
  %v1925 = vpop.f32.mrf.mxu0
  %v1926 = vadd.f32 0.0, %v1925
  %v1927 = vpop.f32.mrf.mxu0
  %1928 = vmatprep.mubr.f32.mxu0 0.0
  %1929 = vmatmul.mubr.f32.gmra.mxu0 %v1612
  %v1930 = vpop.f32.mrf.mxu0
  %v1931 = vadd.f32 0.0, %v1930
  %v1932 = vpop.f32.mrf.mxu0
  %1933 = vmatprep.mubr.f32.mxu0 0.0
  %1934 = vmatmul.mubr.f32.gmra.mxu0 %v1613
  %v1935 = vpop.f32.mrf.mxu0
  %v1936 = vadd.f32 0.0, %v1935
  %v1937 = vpop.f32.mrf.mxu0
  %1938 = vmatprep.mubr.f32.mxu0 0.0
  %1939 = vmatmul.mubr.f32.gmra.mxu0 %v1614
  %v1940 = vpop.f32.mrf.mxu0
  %v1941 = vadd.f32 0.0, %v1940
  %v1942 = vpop.f32.mrf.mxu0
  %1943 = vmatprep.mubr.f32.mxu0 0.0
  %1944 = vmatmul.mubr.f32.gmra.mxu0 %v1615
  %v1945 = vpop.f32.mrf.mxu0
  %v1946 = vadd.f32 0.0, %v1945
  %v1947 = vpop.f32.mrf.mxu0
  %1948 = vmatprep.mubr.f32.mxu0 0.0
  %1949 = vmatmul.mubr.f32.gmra.mxu0 %v1616
  %v1950 = vpop.f32.mrf.mxu0
  %v1951 = vadd.f32 0.0, %v1950
  %v1952 = vpop.f32.mrf.mxu0
  %1953 = vmatprep.mubr.f32.mxu0 0.0
  %1954 = vmatmul.mubr.f32.gmra.mxu0 %v1617
  %v1955 = vpop.f32.mrf.mxu0
  %v1956 = vadd.f32 0.0, %v1955
  %v1957 = vpop.f32.mrf.mxu0
  %1958 = vmatprep.mubr.f32.mxu0 0.0
  %1959 = vmatmul.mubr.f32.gmra.mxu0 %v1618
  %v1960 = vpop.f32.mrf.mxu0
  %v1961 = vadd.f32 0.0, %v1960
  %v1962 = vpop.f32.mrf.mxu0
  %1963 = vmatprep.mubr.f32.mxu0 0.0
  %1964 = vmatmul.mubr.f32.gmra.mxu0 %v1619
  %v1965 = vpop.f32.mrf.mxu0
  %v1966 = vadd.f32 0.0, %v1965
  %v1967 = vpop.f32.mrf.mxu0
  %1968 = vmatprep.mubr.f32.mxu0 0.0
  %1969 = vmatmul.mubr.f32.gmra.mxu0 %v1620
  %v1970 = vpop.f32.mrf.mxu0
  %v1971 = vadd.f32 0.0, %v1970
  %v1972 = vpop.f32.mrf.mxu0
  %1973 = vmatprep.mubr.f32.mxu0 0.0
  %1974 = vmatmul.mubr.f32.gmra.mxu0 %v1621
  %v1975 = vpop.f32.mrf.mxu0
  %v1976 = vadd.f32 0.0, %v1975
  %v1977 = vpop.f32.mrf.mxu0
  %1978 = vmatprep.mubr.f32.mxu0 0.0
  %1979 = vmatmul.mubr.f32.gmra.mxu0 %v1622
  %v1980 = vpop.f32.mrf.mxu0
  %v1981 = vadd.f32 0.0, %v1980
  %v1982 = vpop.f32.mrf.mxu0
  %1983 = vmatprep.mubr.f32.mxu0 0.0
  %1984 = vmatmul.mubr.f32.gmra.mxu0 %v1623
  %v1985 = vpop.f32.mrf.mxu0
  %v1986 = vadd.f32 0.0, %v1985
  %v1987 = vpop.f32.mrf.mxu0
  %1988 = vmatprep.mubr.f32.mxu0 0.0
  %1989 = vmatmul.mubr.f32.gmra.mxu0 %v1624
  %v1990 = vpop.f32.mrf.mxu0
  %v1991 = vadd.f32 0.0, %v1990
  %v1992 = vpop.f32.mrf.mxu0
  %1993 = vmatprep.mubr.f32.mxu0 0.0
  %1994 = vmatmul.mubr.f32.gmra.mxu0 %v1625
  %v1995 = vpop.f32.mrf.mxu0
  %v1996 = vadd.f32 0.0, %v1995
  %v1997 = vpop.f32.mrf.mxu0
  %1998 = vmatprep.mubr.f32.mxu0 0.0
  %1999 = vmatmul.mubr.f32.gmra.mxu0 %v1626
  %v2000 = vpop.f32.mrf.mxu0
  %v2001 = vadd.f32 0.0, %v2000
  %v2002 = vpop.f32.mrf.mxu0
  %2003 = vmatprep.mubr.f32.mxu0 0.0
  %2004 = vmatmul.mubr.f32.gmra.mxu0 %v1627
  %v2005 = vpop.f32.mrf.mxu0
  %v2006 = vadd.f32 0.0, %v2005
  %v2007 = vpop.f32.mrf.mxu0
  %2008 = vmatprep.mubr.f32.mxu0 0.0
  %2009 = vmatmul.mubr.f32.gmra.mxu0 %v1628
  %v2010 = vpop.f32.mrf.mxu0
  %v2011 = vadd.f32 0.0, %v2010
  %v2012 = vpop.f32.mrf.mxu0
  %2013 = vmatprep.mubr.f32.mxu0 0.0
  %2014 = vmatmul.mubr.f32.gmra.mxu0 %v1629
  %v2015 = vpop.f32.mrf.mxu0
  %v2016 = vadd.f32 0.0, %v2015
  %v2017 = vpop.f32.mrf.mxu0
  %2018 = vmatprep.mubr.f32.mxu0 0.0
  %2019 = vmatmul.mubr.f32.gmra.mxu0 %v1630
  %v2020 = vpop.f32.mrf.mxu0
  %v2021 = vadd.f32 0.0, %v2020
  %v2022 = vpop.f32.mrf.mxu0
  %2023 = vmatprep.mubr.f32.mxu0 0.0
  %2024 = vmatmul.mubr.f32.gmra.mxu0 %v1631
  %v2025 = vpop.f32.mrf.mxu0
  %v2026 = vadd.f32 0.0, %v2025
  %v2027 = vpop.f32.mrf.mxu0
  %2028 = vmatprep.mubr.f32.mxu0 0.0
  %2029 = vmatmul.mubr.f32.gmra.mxu0 %v1632
  %v2030 = vpop.f32.mrf.mxu0
  %v2031 = vadd.f32 0.0, %v2030
  %v2032 = vpop.f32.mrf.mxu0
  %2033 = vdwg.mxu0
  %v2034 = vmul.f32 %v1117, %v1716
  %v2035 = vmul.f32 %v1122, %v1721
  %v2036 = vmul.f32 %v1127, %v1726
  %v2037 = vmul.f32 %v1132, %v1731
  %v2038 = vmul.f32 %v1137, %v1736
  %v2039 = vmul.f32 %v1142, %v1741
  %v2040 = vmul.f32 %v1147, %v1746
  %v2041 = vmul.f32 %v1152, %v1751
  %v2042 = vmul.f32 %v1157, %v1756
  %v2043 = vmul.f32 %v1162, %v1761
  %v2044 = vmul.f32 %v1167, %v1766
  %v2045 = vmul.f32 %v1172, %v1771
  %v2046 = vmul.f32 %v1177, %v1776
  %v2047 = vmul.f32 %v1182, %v1781
  %v2048 = vmul.f32 %v1187, %v1786
  %v2049 = vmul.f32 %v1192, %v1791
  %v2050 = vmul.f32 %v1197, %v1796
  %v2051 = vmul.f32 %v1202, %v1801
  %v2052 = vmul.f32 %v1207, %v1806
  %v2053 = vmul.f32 %v1212, %v1811
  %v2054 = vmul.f32 %v1217, %v1816
  %v2055 = vmul.f32 %v1222, %v1821
  %v2056 = vmul.f32 %v1227, %v1826
  %v2057 = vmul.f32 %v1232, %v1831
  %v2058 = vmul.f32 %v1237, %v1836
  %v2059 = vmul.f32 %v1242, %v1841
  %v2060 = vmul.f32 %v1247, %v1846
  %v2061 = vmul.f32 %v1252, %v1851
  %v2062 = vmul.f32 %v1257, %v1856
  %v2063 = vmul.f32 %v1262, %v1861
  %v2064 = vmul.f32 %v1267, %v1866
  %v2065 = vmul.f32 %v1272, %v1871
  %v2066 = vmul.f32 %v1277, %v1876
  %v2067 = vmul.f32 %v1282, %v1881
  %v2068 = vmul.f32 %v1287, %v1886
  %v2069 = vmul.f32 %v1292, %v1891
  %v2070 = vmul.f32 %v1297, %v1896
  %v2071 = vmul.f32 %v1302, %v1901
  %v2072 = vmul.f32 %v1307, %v1906
  %v2073 = vmul.f32 %v1312, %v1911
  %v2074 = vmul.f32 %v1317, %v1916
  %v2075 = vmul.f32 %v1322, %v1921
  %v2076 = vmul.f32 %v1327, %v1926
  %v2077 = vmul.f32 %v1332, %v1931
  %v2078 = vmul.f32 %v1337, %v1936
  %v2079 = vmul.f32 %v1342, %v1941
  %v2080 = vmul.f32 %v1347, %v1946
  %v2081 = vmul.f32 %v1352, %v1951
  %v2082 = vmul.f32 %v1357, %v1956
  %v2083 = vmul.f32 %v1362, %v1961
  %v2084 = vmul.f32 %v1367, %v1966
  %v2085 = vmul.f32 %v1372, %v1971
  %v2086 = vmul.f32 %v1377, %v1976
  %v2087 = vmul.f32 %v1382, %v1981
  %v2088 = vmul.f32 %v1387, %v1986
  %v2089 = vmul.f32 %v1392, %v1991
  %v2090 = vmul.f32 %v1397, %v1996
  %v2091 = vmul.f32 %v1402, %v2001
  %v2092 = vmul.f32 %v1407, %v2006
  %v2093 = vmul.f32 %v1412, %v2011
  %v2094 = vmul.f32 %v1417, %v2016
  %v2095 = vmul.f32 %v1422, %v2021
  %v2096 = vmul.f32 %v1427, %v2026
  %v2097 = vmul.f32 %v1432, %v2031
  %v2098 = vpack.c.bf16 %v2035, %v2034
  %v2099 = vpack.c.bf16 %v2037, %v2036
  %v2100 = vpack.c.bf16 %v2039, %v2038
  %v2101 = vpack.c.bf16 %v2041, %v2040
  %v2102 = vpack.c.bf16 %v2043, %v2042
  %v2103 = vpack.c.bf16 %v2045, %v2044
  %v2104 = vpack.c.bf16 %v2047, %v2046
  %v2105 = vpack.c.bf16 %v2049, %v2048
  %v2106 = vpack.c.bf16 %v2051, %v2050
  %v2107 = vpack.c.bf16 %v2053, %v2052
  %v2108 = vpack.c.bf16 %v2055, %v2054
  %v2109 = vpack.c.bf16 %v2057, %v2056
  %v2110 = vpack.c.bf16 %v2059, %v2058
  %v2111 = vpack.c.bf16 %v2061, %v2060
  %v2112 = vpack.c.bf16 %v2063, %v2062
  %v2113 = vpack.c.bf16 %v2065, %v2064
  %v2114 = vpack.c.bf16 %v2067, %v2066
  %v2115 = vpack.c.bf16 %v2069, %v2068
  %v2116 = vpack.c.bf16 %v2071, %v2070
  %v2117 = vpack.c.bf16 %v2073, %v2072
  %v2118 = vpack.c.bf16 %v2075, %v2074
  %v2119 = vpack.c.bf16 %v2077, %v2076
  %v2120 = vpack.c.bf16 %v2079, %v2078
  %v2121 = vpack.c.bf16 %v2081, %v2080
  %v2122 = vpack.c.bf16 %v2083, %v2082
  %v2123 = vpack.c.bf16 %v2085, %v2084
  %v2124 = vpack.c.bf16 %v2087, %v2086
  %v2125 = vpack.c.bf16 %v2089, %v2088
  %v2126 = vpack.c.bf16 %v2091, %v2090
  %v2127 = vpack.c.bf16 %v2093, %v2092
  %v2128 = vpack.c.bf16 %v2095, %v2094
  %v2129 = vpack.c.bf16 %v2097, %v2096
  %2130 = vmatprep.subr.bf16.mxu0 0
  %2131 = vmatpush1.bf16.msra.mxu0 %v2105
  %2132 = vmatprep.subr.bf16.mxu0 0
  %2133 = vmatpush1.bf16.msra.mxu0 %v2104
  %2134 = vmatprep.subr.bf16.mxu0 0
  %2135 = vmatpush1.bf16.msra.mxu0 %v2103
  %2136 = vmatprep.subr.bf16.mxu0 0
  %2137 = vmatpush1.bf16.msra.mxu0 %v2102
  %2138 = vmatprep.subr.bf16.mxu0 0
  %2139 = vmatpush1.bf16.msra.mxu0 %v2101
  %2140 = vmatprep.subr.bf16.mxu0 0
  %2141 = vmatpush1.bf16.msra.mxu0 %v2100
  %2142 = vmatprep.subr.bf16.mxu0 0
  %2143 = vmatpush1.bf16.msra.mxu0 %v2099
  %2144 = vmatprep.subr.bf16.mxu0 0
  %2145 = vmatpush1.bf16.msra.mxu0 %v2098
  %2146 = vmatprep.subr.bf16.mxu0 0
  %2147 = vmatpush2.bf16.msra.mxu0 %v2113
  %2148 = vmatprep.subr.bf16.mxu0 0
  %2149 = vmatpush2.bf16.msra.mxu0 %v2112
  %2150 = vmatprep.subr.bf16.mxu0 0
  %2151 = vmatpush2.bf16.msra.mxu0 %v2111
  %2152 = vmatprep.subr.bf16.mxu0 0
  %2153 = vmatpush2.bf16.msra.mxu0 %v2110
  %2154 = vmatprep.subr.bf16.mxu0 0
  %2155 = vmatpush2.bf16.msra.mxu0 %v2109
  %2156 = vmatprep.subr.bf16.mxu0 0
  %2157 = vmatpush2.bf16.msra.mxu0 %v2108
  %2158 = vmatprep.subr.bf16.mxu0 0
  %2159 = vmatpush2.bf16.msra.mxu0 %v2107
  %2160 = vmatprep.subr.bf16.mxu0 0
  %2161 = vmatpush2.bf16.msra.mxu0 %v2106
  %2162 = vmatprep.mubr.bf16.mxu0 %v89
  %2163 = vmatmul.mubr.bf16.gmra.mxu0 %v88
  %v2164 = vpop.f32.mrf.mxu0
  %v2165 = vadd.f32 0.0, %v2164
  %v2166 = vpop.f32.mrf.mxu0
  %v2167 = vpop.f32.mrf.mxu0
  %v2168 = vadd.f32 0.0, %v2167
  %v2169 = vpop.f32.mrf.mxu0
  %2170 = vmatprep.mubr.bf16.mxu0 %v93
  %2171 = vmatmul.mubr.bf16.gmra.mxu0 %v92
  %v2172 = vpop.f32.mrf.mxu0
  %v2173 = vadd.f32 0.0, %v2172
  %v2174 = vpop.f32.mrf.mxu0
  %v2175 = vpop.f32.mrf.mxu0
  %v2176 = vadd.f32 0.0, %v2175
  %v2177 = vpop.f32.mrf.mxu0
  %2178 = vmatprep.mubr.bf16.mxu0 %v97
  %2179 = vmatmul.mubr.bf16.gmra.mxu0 %v96
  %v2180 = vpop.f32.mrf.mxu0
  %v2181 = vadd.f32 0.0, %v2180
  %v2182 = vpop.f32.mrf.mxu0
  %v2183 = vpop.f32.mrf.mxu0
  %v2184 = vadd.f32 0.0, %v2183
  %v2185 = vpop.f32.mrf.mxu0
  %2186 = vmatprep.mubr.bf16.mxu0 %v101
  %2187 = vmatmul.mubr.bf16.gmra.mxu0 %v100
  %v2188 = vpop.f32.mrf.mxu0
  %v2189 = vadd.f32 0.0, %v2188
  %v2190 = vpop.f32.mrf.mxu0
  %v2191 = vpop.f32.mrf.mxu0
  %v2192 = vadd.f32 0.0, %v2191
  %v2193 = vpop.f32.mrf.mxu0
  %2194 = vmatprep.mubr.bf16.mxu0 %v105
  %2195 = vmatmul.mubr.bf16.gmra.mxu0 %v104
  %v2196 = vpop.f32.mrf.mxu0
  %v2197 = vadd.f32 0.0, %v2196
  %v2198 = vpop.f32.mrf.mxu0
  %v2199 = vpop.f32.mrf.mxu0
  %v2200 = vadd.f32 0.0, %v2199
  %v2201 = vpop.f32.mrf.mxu0
  %2202 = vmatprep.mubr.bf16.mxu0 %v109
  %2203 = vmatmul.mubr.bf16.gmra.mxu0 %v108
  %v2204 = vpop.f32.mrf.mxu0
  %v2205 = vadd.f32 0.0, %v2204
  %v2206 = vpop.f32.mrf.mxu0
  %v2207 = vpop.f32.mrf.mxu0
  %v2208 = vadd.f32 0.0, %v2207
  %v2209 = vpop.f32.mrf.mxu0
  %2210 = vmatprep.mubr.bf16.mxu0 %v113
  %2211 = vmatmul.mubr.bf16.gmra.mxu0 %v112
  %v2212 = vpop.f32.mrf.mxu0
  %v2213 = vadd.f32 0.0, %v2212
  %v2214 = vpop.f32.mrf.mxu0
  %v2215 = vpop.f32.mrf.mxu0
  %v2216 = vadd.f32 0.0, %v2215
  %v2217 = vpop.f32.mrf.mxu0
  %2218 = vmatprep.mubr.bf16.mxu0 %v117
  %2219 = vmatmul.mubr.bf16.gmra.mxu0 %v116
  %v2220 = vpop.f32.mrf.mxu0
  %v2221 = vadd.f32 0.0, %v2220
  %v2222 = vpop.f32.mrf.mxu0
  %v2223 = vpop.f32.mrf.mxu0
  %v2224 = vadd.f32 0.0, %v2223
  %v2225 = vpop.f32.mrf.mxu0
  %2226 = vmatprep.mubr.bf16.mxu0 %v121
  %2227 = vmatmul.mubr.bf16.gmra.mxu0 %v120
  %v2228 = vpop.f32.mrf.mxu0
  %v2229 = vadd.f32 0.0, %v2228
  %v2230 = vpop.f32.mrf.mxu0
  %v2231 = vpop.f32.mrf.mxu0
  %v2232 = vadd.f32 0.0, %v2231
  %v2233 = vpop.f32.mrf.mxu0
  %2234 = vmatprep.mubr.bf16.mxu0 %v125
  %2235 = vmatmul.mubr.bf16.gmra.mxu0 %v124
  %v2236 = vpop.f32.mrf.mxu0
  %v2237 = vadd.f32 0.0, %v2236
  %v2238 = vpop.f32.mrf.mxu0
  %v2239 = vpop.f32.mrf.mxu0
  %v2240 = vadd.f32 0.0, %v2239
  %v2241 = vpop.f32.mrf.mxu0
  %2242 = vmatprep.mubr.bf16.mxu0 %v129
  %2243 = vmatmul.mubr.bf16.gmra.mxu0 %v128
  %v2244 = vpop.f32.mrf.mxu0
  %v2245 = vadd.f32 0.0, %v2244
  %v2246 = vpop.f32.mrf.mxu0
  %v2247 = vpop.f32.mrf.mxu0
  %v2248 = vadd.f32 0.0, %v2247
  %v2249 = vpop.f32.mrf.mxu0
  %2250 = vmatprep.mubr.bf16.mxu0 %v133
  %2251 = vmatmul.mubr.bf16.gmra.mxu0 %v132
  %v2252 = vpop.f32.mrf.mxu0
  %v2253 = vadd.f32 0.0, %v2252
  %v2254 = vpop.f32.mrf.mxu0
  %v2255 = vpop.f32.mrf.mxu0
  %v2256 = vadd.f32 0.0, %v2255
  %v2257 = vpop.f32.mrf.mxu0
  %2258 = vmatprep.mubr.bf16.mxu0 %v137
  %2259 = vmatmul.mubr.bf16.gmra.mxu0 %v136
  %v2260 = vpop.f32.mrf.mxu0
  %v2261 = vadd.f32 0.0, %v2260
  %v2262 = vpop.f32.mrf.mxu0
  %v2263 = vpop.f32.mrf.mxu0
  %v2264 = vadd.f32 0.0, %v2263
  %v2265 = vpop.f32.mrf.mxu0
  %2266 = vmatprep.mubr.bf16.mxu0 %v141
  %2267 = vmatmul.mubr.bf16.gmra.mxu0 %v140
  %v2268 = vpop.f32.mrf.mxu0
  %v2269 = vadd.f32 0.0, %v2268
  %v2270 = vpop.f32.mrf.mxu0
  %v2271 = vpop.f32.mrf.mxu0
  %v2272 = vadd.f32 0.0, %v2271
  %v2273 = vpop.f32.mrf.mxu0
  %2274 = vmatprep.mubr.bf16.mxu0 %v145
  %2275 = vmatmul.mubr.bf16.gmra.mxu0 %v144
  %v2276 = vpop.f32.mrf.mxu0
  %v2277 = vadd.f32 0.0, %v2276
  %v2278 = vpop.f32.mrf.mxu0
  %v2279 = vpop.f32.mrf.mxu0
  %v2280 = vadd.f32 0.0, %v2279
  %v2281 = vpop.f32.mrf.mxu0
  %2282 = vmatprep.mubr.bf16.mxu0 %v149
  %2283 = vmatmul.mubr.bf16.gmra.mxu0 %v148
  %v2284 = vpop.f32.mrf.mxu0
  %v2285 = vadd.f32 0.0, %v2284
  %v2286 = vpop.f32.mrf.mxu0
  %v2287 = vpop.f32.mrf.mxu0
  %v2288 = vadd.f32 0.0, %v2287
  %v2289 = vpop.f32.mrf.mxu0
  %2290 = vmatprep.mubr.bf16.mxu0 %v153
  %2291 = vmatmul.mubr.bf16.gmra.mxu0 %v152
  %v2292 = vpop.f32.mrf.mxu0
  %v2293 = vadd.f32 0.0, %v2292
  %v2294 = vpop.f32.mrf.mxu0
  %v2295 = vpop.f32.mrf.mxu0
  %v2296 = vadd.f32 0.0, %v2295
  %v2297 = vpop.f32.mrf.mxu0
  %2298 = vmatprep.mubr.bf16.mxu0 %v157
  %2299 = vmatmul.mubr.bf16.gmra.mxu0 %v156
  %v2300 = vpop.f32.mrf.mxu0
  %v2301 = vadd.f32 0.0, %v2300
  %v2302 = vpop.f32.mrf.mxu0
  %v2303 = vpop.f32.mrf.mxu0
  %v2304 = vadd.f32 0.0, %v2303
  %v2305 = vpop.f32.mrf.mxu0
  %2306 = vmatprep.mubr.bf16.mxu0 %v161
  %2307 = vmatmul.mubr.bf16.gmra.mxu0 %v160
  %v2308 = vpop.f32.mrf.mxu0
  %v2309 = vadd.f32 0.0, %v2308
  %v2310 = vpop.f32.mrf.mxu0
  %v2311 = vpop.f32.mrf.mxu0
  %v2312 = vadd.f32 0.0, %v2311
  %v2313 = vpop.f32.mrf.mxu0
  %2314 = vmatprep.mubr.bf16.mxu0 %v165
  %2315 = vmatmul.mubr.bf16.gmra.mxu0 %v164
  %v2316 = vpop.f32.mrf.mxu0
  %v2317 = vadd.f32 0.0, %v2316
  %v2318 = vpop.f32.mrf.mxu0
  %v2319 = vpop.f32.mrf.mxu0
  %v2320 = vadd.f32 0.0, %v2319
  %v2321 = vpop.f32.mrf.mxu0
  %2322 = vmatprep.mubr.bf16.mxu0 %v169
  %2323 = vmatmul.mubr.bf16.gmra.mxu0 %v168
  %v2324 = vpop.f32.mrf.mxu0
  %v2325 = vadd.f32 0.0, %v2324
  %v2326 = vpop.f32.mrf.mxu0
  %v2327 = vpop.f32.mrf.mxu0
  %v2328 = vadd.f32 0.0, %v2327
  %v2329 = vpop.f32.mrf.mxu0
  %2330 = vmatprep.mubr.bf16.mxu0 %v173
  %2331 = vmatmul.mubr.bf16.gmra.mxu0 %v172
  %v2332 = vpop.f32.mrf.mxu0
  %v2333 = vadd.f32 0.0, %v2332
  %v2334 = vpop.f32.mrf.mxu0
  %v2335 = vpop.f32.mrf.mxu0
  %v2336 = vadd.f32 0.0, %v2335
  %v2337 = vpop.f32.mrf.mxu0
  %2338 = vmatprep.mubr.bf16.mxu0 %v177
  %2339 = vmatmul.mubr.bf16.gmra.mxu0 %v176
  %v2340 = vpop.f32.mrf.mxu0
  %v2341 = vadd.f32 0.0, %v2340
  %v2342 = vpop.f32.mrf.mxu0
  %v2343 = vpop.f32.mrf.mxu0
  %v2344 = vadd.f32 0.0, %v2343
  %v2345 = vpop.f32.mrf.mxu0
  %2346 = vmatprep.mubr.bf16.mxu0 %v181
  %2347 = vmatmul.mubr.bf16.gmra.mxu0 %v180
  %v2348 = vpop.f32.mrf.mxu0
  %v2349 = vadd.f32 0.0, %v2348
  %v2350 = vpop.f32.mrf.mxu0
  %v2351 = vpop.f32.mrf.mxu0
  %v2352 = vadd.f32 0.0, %v2351
  %v2353 = vpop.f32.mrf.mxu0
  %2354 = vmatprep.mubr.bf16.mxu0 %v185
  %2355 = vmatmul.mubr.bf16.gmra.mxu0 %v184
  %v2356 = vpop.f32.mrf.mxu0
  %v2357 = vadd.f32 0.0, %v2356
  %v2358 = vpop.f32.mrf.mxu0
  %v2359 = vpop.f32.mrf.mxu0
  %v2360 = vadd.f32 0.0, %v2359
  %v2361 = vpop.f32.mrf.mxu0
  %2362 = vmatprep.mubr.bf16.mxu0 %v189
  %2363 = vmatmul.mubr.bf16.gmra.mxu0 %v188
  %v2364 = vpop.f32.mrf.mxu0
  %v2365 = vadd.f32 0.0, %v2364
  %v2366 = vpop.f32.mrf.mxu0
  %v2367 = vpop.f32.mrf.mxu0
  %v2368 = vadd.f32 0.0, %v2367
  %v2369 = vpop.f32.mrf.mxu0
  %2370 = vmatprep.mubr.bf16.mxu0 %v193
  %2371 = vmatmul.mubr.bf16.gmra.mxu0 %v192
  %v2372 = vpop.f32.mrf.mxu0
  %v2373 = vadd.f32 0.0, %v2372
  %v2374 = vpop.f32.mrf.mxu0
  %v2375 = vpop.f32.mrf.mxu0
  %v2376 = vadd.f32 0.0, %v2375
  %v2377 = vpop.f32.mrf.mxu0
  %2378 = vmatprep.mubr.bf16.mxu0 %v197
  %2379 = vmatmul.mubr.bf16.gmra.mxu0 %v196
  %v2380 = vpop.f32.mrf.mxu0
  %v2381 = vadd.f32 0.0, %v2380
  %v2382 = vpop.f32.mrf.mxu0
  %v2383 = vpop.f32.mrf.mxu0
  %v2384 = vadd.f32 0.0, %v2383
  %v2385 = vpop.f32.mrf.mxu0
  %2386 = vmatprep.mubr.bf16.mxu0 %v201
  %2387 = vmatmul.mubr.bf16.gmra.mxu0 %v200
  %v2388 = vpop.f32.mrf.mxu0
  %v2389 = vadd.f32 0.0, %v2388
  %v2390 = vpop.f32.mrf.mxu0
  %v2391 = vpop.f32.mrf.mxu0
  %v2392 = vadd.f32 0.0, %v2391
  %v2393 = vpop.f32.mrf.mxu0
  %2394 = vmatprep.mubr.bf16.mxu0 %v205
  %2395 = vmatmul.mubr.bf16.gmra.mxu0 %v204
  %v2396 = vpop.f32.mrf.mxu0
  %v2397 = vadd.f32 0.0, %v2396
  %v2398 = vpop.f32.mrf.mxu0
  %v2399 = vpop.f32.mrf.mxu0
  %v2400 = vadd.f32 0.0, %v2399
  %v2401 = vpop.f32.mrf.mxu0
  %2402 = vmatprep.mubr.bf16.mxu0 %v209
  %2403 = vmatmul.mubr.bf16.gmra.mxu0 %v208
  %v2404 = vpop.f32.mrf.mxu0
  %v2405 = vadd.f32 0.0, %v2404
  %v2406 = vpop.f32.mrf.mxu0
  %v2407 = vpop.f32.mrf.mxu0
  %v2408 = vadd.f32 0.0, %v2407
  %v2409 = vpop.f32.mrf.mxu0
  %2410 = vmatprep.mubr.bf16.mxu0 %v213
  %2411 = vmatmul.mubr.bf16.gmra.mxu0 %v212
  %v2412 = vpop.f32.mrf.mxu0
  %v2413 = vadd.f32 0.0, %v2412
  %v2414 = vpop.f32.mrf.mxu0
  %v2415 = vpop.f32.mrf.mxu0
  %v2416 = vadd.f32 0.0, %v2415
  %v2417 = vpop.f32.mrf.mxu0
  %2418 = vdwg.mxu0
  %2419 = vmatprep.subr.bf16.mxu0 0
  %2420 = vmatpush1.bf16.msra.mxu0 %v2121
  %2421 = vmatprep.subr.bf16.mxu0 0
  %2422 = vmatpush1.bf16.msra.mxu0 %v2120
  %2423 = vmatprep.subr.bf16.mxu0 0
  %2424 = vmatpush1.bf16.msra.mxu0 %v2119
  %2425 = vmatprep.subr.bf16.mxu0 0
  %2426 = vmatpush1.bf16.msra.mxu0 %v2118
  %2427 = vmatprep.subr.bf16.mxu0 0
  %2428 = vmatpush1.bf16.msra.mxu0 %v2117
  %2429 = vmatprep.subr.bf16.mxu0 0
  %2430 = vmatpush1.bf16.msra.mxu0 %v2116
  %2431 = vmatprep.subr.bf16.mxu0 0
  %2432 = vmatpush1.bf16.msra.mxu0 %v2115
  %2433 = vmatprep.subr.bf16.mxu0 0
  %2434 = vmatpush1.bf16.msra.mxu0 %v2114
  %2435 = vmatprep.subr.bf16.mxu0 0
  %2436 = vmatpush2.bf16.msra.mxu0 %v2129
  %2437 = vmatprep.subr.bf16.mxu0 0
  %2438 = vmatpush2.bf16.msra.mxu0 %v2128
  %2439 = vmatprep.subr.bf16.mxu0 0
  %2440 = vmatpush2.bf16.msra.mxu0 %v2127
  %2441 = vmatprep.subr.bf16.mxu0 0
  %2442 = vmatpush2.bf16.msra.mxu0 %v2126
  %2443 = vmatprep.subr.bf16.mxu0 0
  %2444 = vmatpush2.bf16.msra.mxu0 %v2125
  %2445 = vmatprep.subr.bf16.mxu0 0
  %2446 = vmatpush2.bf16.msra.mxu0 %v2124
  %2447 = vmatprep.subr.bf16.mxu0 0
  %2448 = vmatpush2.bf16.msra.mxu0 %v2123
  %2449 = vmatprep.subr.bf16.mxu0 0
  %2450 = vmatpush2.bf16.msra.mxu0 %v2122
  %2451 = vmatprep.mubr.bf16.mxu0 %v91
  %2452 = vmatmul.mubr.bf16.gmra.mxu0 %v90
  %v2453 = vpop.f32.mrf.mxu0
  %v2454 = vadd.f32 %v2165, %v2453
  %v2455 = vpop.f32.mrf.mxu0
  %v2456 = vpop.f32.mrf.mxu0
  %v2457 = vadd.f32 %v2168, %v2456
  %v2458 = vpop.f32.mrf.mxu0
  %2459 = vmatprep.mubr.bf16.mxu0 %v95
  %2460 = vmatmul.mubr.bf16.gmra.mxu0 %v94
  %v2461 = vpop.f32.mrf.mxu0
  %v2462 = vadd.f32 %v2173, %v2461
  %v2463 = vpop.f32.mrf.mxu0
  %v2464 = vpop.f32.mrf.mxu0
  %v2465 = vadd.f32 %v2176, %v2464
  %v2466 = vpop.f32.mrf.mxu0
  %2467 = vmatprep.mubr.bf16.mxu0 %v99
  %2468 = vmatmul.mubr.bf16.gmra.mxu0 %v98
  %v2469 = vpop.f32.mrf.mxu0
  %v2470 = vadd.f32 %v2181, %v2469
  %v2471 = vpop.f32.mrf.mxu0
  %v2472 = vpop.f32.mrf.mxu0
  %v2473 = vadd.f32 %v2184, %v2472
  %v2474 = vpop.f32.mrf.mxu0
  %2475 = vmatprep.mubr.bf16.mxu0 %v103
  %2476 = vmatmul.mubr.bf16.gmra.mxu0 %v102
  %v2477 = vpop.f32.mrf.mxu0
  %v2478 = vadd.f32 %v2189, %v2477
  %v2479 = vpop.f32.mrf.mxu0
  %v2480 = vpop.f32.mrf.mxu0
  %v2481 = vadd.f32 %v2192, %v2480
  %v2482 = vpop.f32.mrf.mxu0
  %2483 = vmatprep.mubr.bf16.mxu0 %v107
  %2484 = vmatmul.mubr.bf16.gmra.mxu0 %v106
  %v2485 = vpop.f32.mrf.mxu0
  %v2486 = vadd.f32 %v2197, %v2485
  %v2487 = vpop.f32.mrf.mxu0
  %v2488 = vpop.f32.mrf.mxu0
  %v2489 = vadd.f32 %v2200, %v2488
  %v2490 = vpop.f32.mrf.mxu0
  %2491 = vmatprep.mubr.bf16.mxu0 %v111
  %2492 = vmatmul.mubr.bf16.gmra.mxu0 %v110
  %v2493 = vpop.f32.mrf.mxu0
  %v2494 = vadd.f32 %v2205, %v2493
  %v2495 = vpop.f32.mrf.mxu0
  %v2496 = vpop.f32.mrf.mxu0
  %v2497 = vadd.f32 %v2208, %v2496
  %v2498 = vpop.f32.mrf.mxu0
  %2499 = vmatprep.mubr.bf16.mxu0 %v115
  %2500 = vmatmul.mubr.bf16.gmra.mxu0 %v114
  %v2501 = vpop.f32.mrf.mxu0
  %v2502 = vadd.f32 %v2213, %v2501
  %v2503 = vpop.f32.mrf.mxu0
  %v2504 = vpop.f32.mrf.mxu0
  %v2505 = vadd.f32 %v2216, %v2504
  %v2506 = vpop.f32.mrf.mxu0
  %2507 = vmatprep.mubr.bf16.mxu0 %v119
  %2508 = vmatmul.mubr.bf16.gmra.mxu0 %v118
  %v2509 = vpop.f32.mrf.mxu0
  %v2510 = vadd.f32 %v2221, %v2509
  %v2511 = vpop.f32.mrf.mxu0
  %v2512 = vpop.f32.mrf.mxu0
  %v2513 = vadd.f32 %v2224, %v2512
  %v2514 = vpop.f32.mrf.mxu0
  %2515 = vmatprep.mubr.bf16.mxu0 %v123
  %2516 = vmatmul.mubr.bf16.gmra.mxu0 %v122
  %v2517 = vpop.f32.mrf.mxu0
  %v2518 = vadd.f32 %v2229, %v2517
  %v2519 = vpop.f32.mrf.mxu0
  %v2520 = vpop.f32.mrf.mxu0
  %v2521 = vadd.f32 %v2232, %v2520
  %v2522 = vpop.f32.mrf.mxu0
  %2523 = vmatprep.mubr.bf16.mxu0 %v127
  %2524 = vmatmul.mubr.bf16.gmra.mxu0 %v126
  %v2525 = vpop.f32.mrf.mxu0
  %v2526 = vadd.f32 %v2237, %v2525
  %v2527 = vpop.f32.mrf.mxu0
  %v2528 = vpop.f32.mrf.mxu0
  %v2529 = vadd.f32 %v2240, %v2528
  %v2530 = vpop.f32.mrf.mxu0
  %2531 = vmatprep.mubr.bf16.mxu0 %v131
  %2532 = vmatmul.mubr.bf16.gmra.mxu0 %v130
  %v2533 = vpop.f32.mrf.mxu0
  %v2534 = vadd.f32 %v2245, %v2533
  %v2535 = vpop.f32.mrf.mxu0
  %v2536 = vpop.f32.mrf.mxu0
  %v2537 = vadd.f32 %v2248, %v2536
  %v2538 = vpop.f32.mrf.mxu0
  %2539 = vmatprep.mubr.bf16.mxu0 %v135
  %2540 = vmatmul.mubr.bf16.gmra.mxu0 %v134
  %v2541 = vpop.f32.mrf.mxu0
  %v2542 = vadd.f32 %v2253, %v2541
  %v2543 = vpop.f32.mrf.mxu0
  %v2544 = vpop.f32.mrf.mxu0
  %v2545 = vadd.f32 %v2256, %v2544
  %v2546 = vpop.f32.mrf.mxu0
  %2547 = vmatprep.mubr.bf16.mxu0 %v139
  %2548 = vmatmul.mubr.bf16.gmra.mxu0 %v138
  %v2549 = vpop.f32.mrf.mxu0
  %v2550 = vadd.f32 %v2261, %v2549
  %v2551 = vpop.f32.mrf.mxu0
  %v2552 = vpop.f32.mrf.mxu0
  %v2553 = vadd.f32 %v2264, %v2552
  %v2554 = vpop.f32.mrf.mxu0
  %2555 = vmatprep.mubr.bf16.mxu0 %v143
  %2556 = vmatmul.mubr.bf16.gmra.mxu0 %v142
  %v2557 = vpop.f32.mrf.mxu0
  %v2558 = vadd.f32 %v2269, %v2557
  %v2559 = vpop.f32.mrf.mxu0
  %v2560 = vpop.f32.mrf.mxu0
  %v2561 = vadd.f32 %v2272, %v2560
  %v2562 = vpop.f32.mrf.mxu0
  %2563 = vmatprep.mubr.bf16.mxu0 %v147
  %2564 = vmatmul.mubr.bf16.gmra.mxu0 %v146
  %v2565 = vpop.f32.mrf.mxu0
  %v2566 = vadd.f32 %v2277, %v2565
  %v2567 = vpop.f32.mrf.mxu0
  %v2568 = vpop.f32.mrf.mxu0
  %v2569 = vadd.f32 %v2280, %v2568
  %v2570 = vpop.f32.mrf.mxu0
  %2571 = vmatprep.mubr.bf16.mxu0 %v151
  %2572 = vmatmul.mubr.bf16.gmra.mxu0 %v150
  %v2573 = vpop.f32.mrf.mxu0
  %v2574 = vadd.f32 %v2285, %v2573
  %v2575 = vpop.f32.mrf.mxu0
  %v2576 = vpop.f32.mrf.mxu0
  %v2577 = vadd.f32 %v2288, %v2576
  %v2578 = vpop.f32.mrf.mxu0
  %2579 = vmatprep.mubr.bf16.mxu0 %v155
  %2580 = vmatmul.mubr.bf16.gmra.mxu0 %v154
  %v2581 = vpop.f32.mrf.mxu0
  %v2582 = vadd.f32 %v2293, %v2581
  %v2583 = vpop.f32.mrf.mxu0
  %v2584 = vpop.f32.mrf.mxu0
  %v2585 = vadd.f32 %v2296, %v2584
  %v2586 = vpop.f32.mrf.mxu0
  %2587 = vmatprep.mubr.bf16.mxu0 %v159
  %2588 = vmatmul.mubr.bf16.gmra.mxu0 %v158
  %v2589 = vpop.f32.mrf.mxu0
  %v2590 = vadd.f32 %v2301, %v2589
  %v2591 = vpop.f32.mrf.mxu0
  %v2592 = vpop.f32.mrf.mxu0
  %v2593 = vadd.f32 %v2304, %v2592
  %v2594 = vpop.f32.mrf.mxu0
  %2595 = vmatprep.mubr.bf16.mxu0 %v163
  %2596 = vmatmul.mubr.bf16.gmra.mxu0 %v162
  %v2597 = vpop.f32.mrf.mxu0
  %v2598 = vadd.f32 %v2309, %v2597
  %v2599 = vpop.f32.mrf.mxu0
  %v2600 = vpop.f32.mrf.mxu0
  %v2601 = vadd.f32 %v2312, %v2600
  %v2602 = vpop.f32.mrf.mxu0
  %2603 = vmatprep.mubr.bf16.mxu0 %v167
  %2604 = vmatmul.mubr.bf16.gmra.mxu0 %v166
  %v2605 = vpop.f32.mrf.mxu0
  %v2606 = vadd.f32 %v2317, %v2605
  %v2607 = vpop.f32.mrf.mxu0
  %v2608 = vpop.f32.mrf.mxu0
  %v2609 = vadd.f32 %v2320, %v2608
  %v2610 = vpop.f32.mrf.mxu0
  %2611 = vmatprep.mubr.bf16.mxu0 %v171
  %2612 = vmatmul.mubr.bf16.gmra.mxu0 %v170
  %v2613 = vpop.f32.mrf.mxu0
  %v2614 = vadd.f32 %v2325, %v2613
  %v2615 = vpop.f32.mrf.mxu0
  %v2616 = vpop.f32.mrf.mxu0
  %v2617 = vadd.f32 %v2328, %v2616
  %v2618 = vpop.f32.mrf.mxu0
  %2619 = vmatprep.mubr.bf16.mxu0 %v175
  %2620 = vmatmul.mubr.bf16.gmra.mxu0 %v174
  %v2621 = vpop.f32.mrf.mxu0
  %v2622 = vadd.f32 %v2333, %v2621
  %v2623 = vpop.f32.mrf.mxu0
  %v2624 = vpop.f32.mrf.mxu0
  %v2625 = vadd.f32 %v2336, %v2624
  %v2626 = vpop.f32.mrf.mxu0
  %2627 = vmatprep.mubr.bf16.mxu0 %v179
  %2628 = vmatmul.mubr.bf16.gmra.mxu0 %v178
  %v2629 = vpop.f32.mrf.mxu0
  %v2630 = vadd.f32 %v2341, %v2629
  %v2631 = vpop.f32.mrf.mxu0
  %v2632 = vpop.f32.mrf.mxu0
  %v2633 = vadd.f32 %v2344, %v2632
  %v2634 = vpop.f32.mrf.mxu0
  %2635 = vmatprep.mubr.bf16.mxu0 %v183
  %2636 = vmatmul.mubr.bf16.gmra.mxu0 %v182
  %v2637 = vpop.f32.mrf.mxu0
  %v2638 = vadd.f32 %v2349, %v2637
  %v2639 = vpop.f32.mrf.mxu0
  %v2640 = vpop.f32.mrf.mxu0
  %v2641 = vadd.f32 %v2352, %v2640
  %v2642 = vpop.f32.mrf.mxu0
  %2643 = vmatprep.mubr.bf16.mxu0 %v187
  %2644 = vmatmul.mubr.bf16.gmra.mxu0 %v186
  %v2645 = vpop.f32.mrf.mxu0
  %v2646 = vadd.f32 %v2357, %v2645
  %v2647 = vpop.f32.mrf.mxu0
  %v2648 = vpop.f32.mrf.mxu0
  %v2649 = vadd.f32 %v2360, %v2648
  %v2650 = vpop.f32.mrf.mxu0
  %2651 = vmatprep.mubr.bf16.mxu0 %v191
  %2652 = vmatmul.mubr.bf16.gmra.mxu0 %v190
  %v2653 = vpop.f32.mrf.mxu0
  %v2654 = vadd.f32 %v2365, %v2653
  %v2655 = vpop.f32.mrf.mxu0
  %v2656 = vpop.f32.mrf.mxu0
  %v2657 = vadd.f32 %v2368, %v2656
  %v2658 = vpop.f32.mrf.mxu0
  %2659 = vmatprep.mubr.bf16.mxu0 %v195
  %2660 = vmatmul.mubr.bf16.gmra.mxu0 %v194
  %v2661 = vpop.f32.mrf.mxu0
  %v2662 = vadd.f32 %v2373, %v2661
  %v2663 = vpop.f32.mrf.mxu0
  %v2664 = vpop.f32.mrf.mxu0
  %v2665 = vadd.f32 %v2376, %v2664
  %v2666 = vpop.f32.mrf.mxu0
  %2667 = vmatprep.mubr.bf16.mxu0 %v199
  %2668 = vmatmul.mubr.bf16.gmra.mxu0 %v198
  %v2669 = vpop.f32.mrf.mxu0
  %v2670 = vadd.f32 %v2381, %v2669
  %v2671 = vpop.f32.mrf.mxu0
  %v2672 = vpop.f32.mrf.mxu0
  %v2673 = vadd.f32 %v2384, %v2672
  %v2674 = vpop.f32.mrf.mxu0
  %2675 = vmatprep.mubr.bf16.mxu0 %v203
  %2676 = vmatmul.mubr.bf16.gmra.mxu0 %v202
  %v2677 = vpop.f32.mrf.mxu0
  %v2678 = vadd.f32 %v2389, %v2677
  %v2679 = vpop.f32.mrf.mxu0
  %v2680 = vpop.f32.mrf.mxu0
  %v2681 = vadd.f32 %v2392, %v2680
  %v2682 = vpop.f32.mrf.mxu0
  %2683 = vmatprep.mubr.bf16.mxu0 %v207
  %2684 = vmatmul.mubr.bf16.gmra.mxu0 %v206
  %v2685 = vpop.f32.mrf.mxu0
  %v2686 = vadd.f32 %v2397, %v2685
  %v2687 = vpop.f32.mrf.mxu0
  %v2688 = vpop.f32.mrf.mxu0
  %v2689 = vadd.f32 %v2400, %v2688
  %v2690 = vpop.f32.mrf.mxu0
  %2691 = vmatprep.mubr.bf16.mxu0 %v211
  %2692 = vmatmul.mubr.bf16.gmra.mxu0 %v210
  %v2693 = vpop.f32.mrf.mxu0
  %v2694 = vadd.f32 %v2405, %v2693
  %v2695 = vpop.f32.mrf.mxu0
  %v2696 = vpop.f32.mrf.mxu0
  %v2697 = vadd.f32 %v2408, %v2696
  %v2698 = vpop.f32.mrf.mxu0
  %2699 = vmatprep.mubr.bf16.mxu0 %v215
  %2700 = vmatmul.mubr.bf16.gmra.mxu0 %v214
  %v2701 = vpop.f32.mrf.mxu0
  %v2702 = vadd.f32 %v2413, %v2701
  %v2703 = vpop.f32.mrf.mxu0
  %v2704 = vpop.f32.mrf.mxu0
  %v2705 = vadd.f32 %v2416, %v2704
  %v2706 = vpop.f32.mrf.mxu0
  %2707 = vdwg.mxu0
  %v2708 = vmul.f32 %v1117, %v2454
  %v2709 = vmul.f32 %v1122, %v2457
  %v2710 = vmul.f32 %v1127, %v2462
  %v2711 = vmul.f32 %v1132, %v2465
  %v2712 = vmul.f32 %v1137, %v2470
  %v2713 = vmul.f32 %v1142, %v2473
  %v2714 = vmul.f32 %v1147, %v2478
  %v2715 = vmul.f32 %v1152, %v2481
  %v2716 = vmul.f32 %v1157, %v2486
  %v2717 = vmul.f32 %v1162, %v2489
  %v2718 = vmul.f32 %v1167, %v2494
  %v2719 = vmul.f32 %v1172, %v2497
  %v2720 = vmul.f32 %v1177, %v2502
  %v2721 = vmul.f32 %v1182, %v2505
  %v2722 = vmul.f32 %v1187, %v2510
  %v2723 = vmul.f32 %v1192, %v2513
  %v2724 = vmul.f32 %v1197, %v2518
  %v2725 = vmul.f32 %v1202, %v2521
  %v2726 = vmul.f32 %v1207, %v2526
  %v2727 = vmul.f32 %v1212, %v2529
  %v2728 = vmul.f32 %v1217, %v2534
  %v2729 = vmul.f32 %v1222, %v2537
  %v2730 = vmul.f32 %v1227, %v2542
  %v2731 = vmul.f32 %v1232, %v2545
  %v2732 = vmul.f32 %v1237, %v2550
  %v2733 = vmul.f32 %v1242, %v2553
  %v2734 = vmul.f32 %v1247, %v2558
  %v2735 = vmul.f32 %v1252, %v2561
  %v2736 = vmul.f32 %v1257, %v2566
  %v2737 = vmul.f32 %v1262, %v2569
  %v2738 = vmul.f32 %v1267, %v2574
  %v2739 = vmul.f32 %v1272, %v2577
  %v2740 = vmul.f32 %v1277, %v2582
  %v2741 = vmul.f32 %v1282, %v2585
  %v2742 = vmul.f32 %v1287, %v2590
  %v2743 = vmul.f32 %v1292, %v2593
  %v2744 = vmul.f32 %v1297, %v2598
  %v2745 = vmul.f32 %v1302, %v2601
  %v2746 = vmul.f32 %v1307, %v2606
  %v2747 = vmul.f32 %v1312, %v2609
  %v2748 = vmul.f32 %v1317, %v2614
  %v2749 = vmul.f32 %v1322, %v2617
  %v2750 = vmul.f32 %v1327, %v2622
  %v2751 = vmul.f32 %v1332, %v2625
  %v2752 = vmul.f32 %v1337, %v2630
  %v2753 = vmul.f32 %v1342, %v2633
  %v2754 = vmul.f32 %v1347, %v2638
  %v2755 = vmul.f32 %v1352, %v2641
  %v2756 = vmul.f32 %v1357, %v2646
  %v2757 = vmul.f32 %v1362, %v2649
  %v2758 = vmul.f32 %v1367, %v2654
  %v2759 = vmul.f32 %v1372, %v2657
  %v2760 = vmul.f32 %v1377, %v2662
  %v2761 = vmul.f32 %v1382, %v2665
  %v2762 = vmul.f32 %v1387, %v2670
  %v2763 = vmul.f32 %v1392, %v2673
  %v2764 = vmul.f32 %v1397, %v2678
  %v2765 = vmul.f32 %v1402, %v2681
  %v2766 = vmul.f32 %v1407, %v2686
  %v2767 = vmul.f32 %v1412, %v2689
  %v2768 = vmul.f32 %v1417, %v2694
  %v2769 = vmul.f32 %v1422, %v2697
  %v2770 = vmul.f32 %v1427, %v2702
  %v2771 = vmul.f32 %v1432, %v2705
  %v2772 = vld [vmem:[%s5] sm:$0x1]
  %v2774 = vlaneseq
  %v2775 = vshrl.u32 %v2774, 7
  %v2776 = vsub.s32 0, %v2775
  %v2777 = vrot.slane %v2772, %v2776
  %v2779 = vadd.f32 %v2708, %v2777
  %v2780 = vadd.f32 %v2709, %v2777
  %v2781 = vadd.f32 %v2710, %v2777
  %v2782 = vadd.f32 %v2711, %v2777
  %v2783 = vadd.f32 %v2712, %v2777
  %v2784 = vadd.f32 %v2713, %v2777
  %v2785 = vadd.f32 %v2714, %v2777
  %v2786 = vadd.f32 %v2715, %v2777
  %v2787 = vadd.f32 %v2716, %v2777
  %v2788 = vadd.f32 %v2717, %v2777
  %v2789 = vadd.f32 %v2718, %v2777
  %v2790 = vadd.f32 %v2719, %v2777
  %v2791 = vadd.f32 %v2720, %v2777
  %v2792 = vadd.f32 %v2721, %v2777
  %v2793 = vadd.f32 %v2722, %v2777
  %v2794 = vadd.f32 %v2723, %v2777
  %v2795 = vadd.f32 %v2724, %v2777
  %v2796 = vadd.f32 %v2725, %v2777
  %v2797 = vadd.f32 %v2726, %v2777
  %v2798 = vadd.f32 %v2727, %v2777
  %v2799 = vadd.f32 %v2728, %v2777
  %v2800 = vadd.f32 %v2729, %v2777
  %v2801 = vadd.f32 %v2730, %v2777
  %v2802 = vadd.f32 %v2731, %v2777
  %v2803 = vadd.f32 %v2732, %v2777
  %v2804 = vadd.f32 %v2733, %v2777
  %v2805 = vadd.f32 %v2734, %v2777
  %v2806 = vadd.f32 %v2735, %v2777
  %v2807 = vadd.f32 %v2736, %v2777
  %v2808 = vadd.f32 %v2737, %v2777
  %v2809 = vadd.f32 %v2738, %v2777
  %v2810 = vadd.f32 %v2739, %v2777
  %v2811 = vadd.f32 %v2740, %v2777
  %v2812 = vadd.f32 %v2741, %v2777
  %v2813 = vadd.f32 %v2742, %v2777
  %v2814 = vadd.f32 %v2743, %v2777
  %v2815 = vadd.f32 %v2744, %v2777
  %v2816 = vadd.f32 %v2745, %v2777
  %v2817 = vadd.f32 %v2746, %v2777
  %v2818 = vadd.f32 %v2747, %v2777
  %v2819 = vadd.f32 %v2748, %v2777
  %v2820 = vadd.f32 %v2749, %v2777
  %v2821 = vadd.f32 %v2750, %v2777
  %v2822 = vadd.f32 %v2751, %v2777
  %v2823 = vadd.f32 %v2752, %v2777
  %v2824 = vadd.f32 %v2753, %v2777
  %v2825 = vadd.f32 %v2754, %v2777
  %v2826 = vadd.f32 %v2755, %v2777
  %v2827 = vadd.f32 %v2756, %v2777
  %v2828 = vadd.f32 %v2757, %v2777
  %v2829 = vadd.f32 %v2758, %v2777
  %v2830 = vadd.f32 %v2759, %v2777
  %v2831 = vadd.f32 %v2760, %v2777
  %v2832 = vadd.f32 %v2761, %v2777
  %v2833 = vadd.f32 %v2762, %v2777
  %v2834 = vadd.f32 %v2763, %v2777
  %v2835 = vadd.f32 %v2764, %v2777
  %v2836 = vadd.f32 %v2765, %v2777
  %v2837 = vadd.f32 %v2766, %v2777
  %v2838 = vadd.f32 %v2767, %v2777
  %v2839 = vadd.f32 %v2768, %v2777
  %v2840 = vadd.f32 %v2769, %v2777
  %v2841 = vadd.f32 %v2770, %v2777
  %v2842 = vadd.f32 %v2771, %v2777
  %v2843 = vlaneseq
  %v2844 = vand.u32 %v2843, 127
  %vm2845 = vcmp.lt.s32.totalorder %v2844, 4
  %v2846 = vsel %vm2845, %v2779, -1e+30
  %v2847 = vsel %vm2845, %v2780, -1e+30
  %v2848 = vsel %vm2845, %v2781, -1e+30
  %v2849 = vsel %vm2845, %v2782, -1e+30
  %v2850 = vsel %vm2845, %v2783, -1e+30
  %v2851 = vsel %vm2845, %v2784, -1e+30
  %v2852 = vsel %vm2845, %v2785, -1e+30
  %v2853 = vsel %vm2845, %v2786, -1e+30
  %v2854 = vsel %vm2845, %v2787, -1e+30
  %v2855 = vsel %vm2845, %v2788, -1e+30
  %v2856 = vsel %vm2845, %v2789, -1e+30
  %v2857 = vsel %vm2845, %v2790, -1e+30
  %v2858 = vsel %vm2845, %v2791, -1e+30
  %v2859 = vsel %vm2845, %v2792, -1e+30
  %v2860 = vsel %vm2845, %v2793, -1e+30
  %v2861 = vsel %vm2845, %v2794, -1e+30
  %v2862 = vsel %vm2845, %v2795, -1e+30
  %v2863 = vsel %vm2845, %v2796, -1e+30
  %v2864 = vsel %vm2845, %v2797, -1e+30
  %v2865 = vsel %vm2845, %v2798, -1e+30
  %v2866 = vsel %vm2845, %v2799, -1e+30
  %v2867 = vsel %vm2845, %v2800, -1e+30
  %v2868 = vsel %vm2845, %v2801, -1e+30
  %v2869 = vsel %vm2845, %v2802, -1e+30
  %v2870 = vsel %vm2845, %v2803, -1e+30
  %v2871 = vsel %vm2845, %v2804, -1e+30
  %v2872 = vsel %vm2845, %v2805, -1e+30
  %v2873 = vsel %vm2845, %v2806, -1e+30
  %v2874 = vsel %vm2845, %v2807, -1e+30
  %v2875 = vsel %vm2845, %v2808, -1e+30
  %v2876 = vsel %vm2845, %v2809, -1e+30
  %v2877 = vsel %vm2845, %v2810, -1e+30
  %v2878 = vsel %vm2845, %v2811, -1e+30
  %v2879 = vsel %vm2845, %v2812, -1e+30
  %v2880 = vsel %vm2845, %v2813, -1e+30
  %v2881 = vsel %vm2845, %v2814, -1e+30
  %v2882 = vsel %vm2845, %v2815, -1e+30
  %v2883 = vsel %vm2845, %v2816, -1e+30
  %v2884 = vsel %vm2845, %v2817, -1e+30
  %v2885 = vsel %vm2845, %v2818, -1e+30
  %v2886 = vsel %vm2845, %v2819, -1e+30
  %v2887 = vsel %vm2845, %v2820, -1e+30
  %v2888 = vsel %vm2845, %v2821, -1e+30
  %v2889 = vsel %vm2845, %v2822, -1e+30
  %v2890 = vsel %vm2845, %v2823, -1e+30
  %v2891 = vsel %vm2845, %v2824, -1e+30
  %v2892 = vsel %vm2845, %v2825, -1e+30
  %v2893 = vsel %vm2845, %v2826, -1e+30
  %v2894 = vsel %vm2845, %v2827, -1e+30
  %v2895 = vsel %vm2845, %v2828, -1e+30
  %v2896 = vsel %vm2845, %v2829, -1e+30
  %v2897 = vsel %vm2845, %v2830, -1e+30
  %v2898 = vsel %vm2845, %v2831, -1e+30
  %v2899 = vsel %vm2845, %v2832, -1e+30
  %v2900 = vsel %vm2845, %v2833, -1e+30
  %v2901 = vsel %vm2845, %v2834, -1e+30
  %v2902 = vsel %vm2845, %v2835, -1e+30
  %v2903 = vsel %vm2845, %v2836, -1e+30
  %v2904 = vsel %vm2845, %v2837, -1e+30
  %v2905 = vsel %vm2845, %v2838, -1e+30
  %v2906 = vsel %vm2845, %v2839, -1e+30
  %v2907 = vsel %vm2845, %v2840, -1e+30
  %v2908 = vsel %vm2845, %v2841, -1e+30
  %v2909 = vsel %vm2845, %v2842, -1e+30
  %2910 = vmax.xlane.f32.xlu0 %v2846
  %v2911 = vpop.xlane.xlu0 %2910
  %2912 = vmax.xlane.f32.xlu0 %v2847
  %v2913 = vpop.xlane.xlu0 %2912
  %2914 = vmax.xlane.f32.xlu0 %v2848
  %v2915 = vpop.xlane.xlu0 %2914
  %2916 = vmax.xlane.f32.xlu0 %v2849
  %v2917 = vpop.xlane.xlu0 %2916
  %2918 = vmax.xlane.f32.xlu0 %v2850
  %v2919 = vpop.xlane.xlu0 %2918
  %2920 = vmax.xlane.f32.xlu0 %v2851
  %v2921 = vpop.xlane.xlu0 %2920
  %2922 = vmax.xlane.f32.xlu0 %v2852
  %v2923 = vpop.xlane.xlu0 %2922
  %2924 = vmax.xlane.f32.xlu0 %v2853
  %v2925 = vpop.xlane.xlu0 %2924
  %2926 = vmax.xlane.f32.xlu0 %v2854
  %v2927 = vpop.xlane.xlu0 %2926
  %2928 = vmax.xlane.f32.xlu0 %v2855
  %v2929 = vpop.xlane.xlu0 %2928
  %2930 = vmax.xlane.f32.xlu0 %v2856
  %v2931 = vpop.xlane.xlu0 %2930
  %2932 = vmax.xlane.f32.xlu0 %v2857
  %v2933 = vpop.xlane.xlu0 %2932
  %2934 = vmax.xlane.f32.xlu0 %v2858
  %v2935 = vpop.xlane.xlu0 %2934
  %2936 = vmax.xlane.f32.xlu0 %v2859
  %v2937 = vpop.xlane.xlu0 %2936
  %2938 = vmax.xlane.f32.xlu0 %v2860
  %v2939 = vpop.xlane.xlu0 %2938
  %2940 = vmax.xlane.f32.xlu0 %v2861
  %v2941 = vpop.xlane.xlu0 %2940
  %2942 = vmax.xlane.f32.xlu0 %v2862
  %v2943 = vpop.xlane.xlu0 %2942
  %2944 = vmax.xlane.f32.xlu0 %v2863
  %v2945 = vpop.xlane.xlu0 %2944
  %2946 = vmax.xlane.f32.xlu0 %v2864
  %v2947 = vpop.xlane.xlu0 %2946
  %2948 = vmax.xlane.f32.xlu0 %v2865
  %v2949 = vpop.xlane.xlu0 %2948
  %2950 = vmax.xlane.f32.xlu0 %v2866
  %v2951 = vpop.xlane.xlu0 %2950
  %2952 = vmax.xlane.f32.xlu0 %v2867
  %v2953 = vpop.xlane.xlu0 %2952
  %2954 = vmax.xlane.f32.xlu0 %v2868
  %v2955 = vpop.xlane.xlu0 %2954
  %2956 = vmax.xlane.f32.xlu0 %v2869
  %v2957 = vpop.xlane.xlu0 %2956
  %2958 = vmax.xlane.f32.xlu0 %v2870
  %v2959 = vpop.xlane.xlu0 %2958
  %2960 = vmax.xlane.f32.xlu0 %v2871
  %v2961 = vpop.xlane.xlu0 %2960
  %2962 = vmax.xlane.f32.xlu0 %v2872
  %v2963 = vpop.xlane.xlu0 %2962
  %2964 = vmax.xlane.f32.xlu0 %v2873
  %v2965 = vpop.xlane.xlu0 %2964
  %2966 = vmax.xlane.f32.xlu0 %v2874
  %v2967 = vpop.xlane.xlu0 %2966
  %2968 = vmax.xlane.f32.xlu0 %v2875
  %v2969 = vpop.xlane.xlu0 %2968
  %2970 = vmax.xlane.f32.xlu0 %v2876
  %v2971 = vpop.xlane.xlu0 %2970
  %2972 = vmax.xlane.f32.xlu0 %v2877
  %v2973 = vpop.xlane.xlu0 %2972
  %2974 = vmax.xlane.f32.xlu0 %v2878
  %v2975 = vpop.xlane.xlu0 %2974
  %2976 = vmax.xlane.f32.xlu0 %v2879
  %v2977 = vpop.xlane.xlu0 %2976
  %2978 = vmax.xlane.f32.xlu0 %v2880
  %v2979 = vpop.xlane.xlu0 %2978
  %2980 = vmax.xlane.f32.xlu0 %v2881
  %v2981 = vpop.xlane.xlu0 %2980
  %2982 = vmax.xlane.f32.xlu0 %v2882
  %v2983 = vpop.xlane.xlu0 %2982
  %2984 = vmax.xlane.f32.xlu0 %v2883
  %v2985 = vpop.xlane.xlu0 %2984
  %2986 = vmax.xlane.f32.xlu0 %v2884
  %v2987 = vpop.xlane.xlu0 %2986
  %2988 = vmax.xlane.f32.xlu0 %v2885
  %v2989 = vpop.xlane.xlu0 %2988
  %2990 = vmax.xlane.f32.xlu0 %v2886
  %v2991 = vpop.xlane.xlu0 %2990
  %2992 = vmax.xlane.f32.xlu0 %v2887
  %v2993 = vpop.xlane.xlu0 %2992
  %2994 = vmax.xlane.f32.xlu0 %v2888
  %v2995 = vpop.xlane.xlu0 %2994
  %2996 = vmax.xlane.f32.xlu0 %v2889
  %v2997 = vpop.xlane.xlu0 %2996
  %2998 = vmax.xlane.f32.xlu0 %v2890
  %v2999 = vpop.xlane.xlu0 %2998
  %3000 = vmax.xlane.f32.xlu0 %v2891
  %v3001 = vpop.xlane.xlu0 %3000
  %3002 = vmax.xlane.f32.xlu0 %v2892
  %v3003 = vpop.xlane.xlu0 %3002
  %3004 = vmax.xlane.f32.xlu0 %v2893
  %v3005 = vpop.xlane.xlu0 %3004
  %3006 = vmax.xlane.f32.xlu0 %v2894
  %v3007 = vpop.xlane.xlu0 %3006
  %3008 = vmax.xlane.f32.xlu0 %v2895
  %v3009 = vpop.xlane.xlu0 %3008
  %3010 = vmax.xlane.f32.xlu0 %v2896
  %v3011 = vpop.xlane.xlu0 %3010
  %3012 = vmax.xlane.f32.xlu0 %v2897
  %v3013 = vpop.xlane.xlu0 %3012
  %3014 = vmax.xlane.f32.xlu0 %v2898
  %v3015 = vpop.xlane.xlu0 %3014
  %3016 = vmax.xlane.f32.xlu0 %v2899
  %v3017 = vpop.xlane.xlu0 %3016
  %3018 = vmax.xlane.f32.xlu0 %v2900
  %v3019 = vpop.xlane.xlu0 %3018
  %3020 = vmax.xlane.f32.xlu0 %v2901
  %v3021 = vpop.xlane.xlu0 %3020
  %3022 = vmax.xlane.f32.xlu0 %v2902
  %v3023 = vpop.xlane.xlu0 %3022
  %3024 = vmax.xlane.f32.xlu0 %v2903
  %v3025 = vpop.xlane.xlu0 %3024
  %3026 = vmax.xlane.f32.xlu0 %v2904
  %v3027 = vpop.xlane.xlu0 %3026
  %3028 = vmax.xlane.f32.xlu0 %v2905
  %v3029 = vpop.xlane.xlu0 %3028
  %3030 = vmax.xlane.f32.xlu0 %v2906
  %v3031 = vpop.xlane.xlu0 %3030
  %3032 = vmax.xlane.f32.xlu0 %v2907
  %v3033 = vpop.xlane.xlu0 %3032
  %3034 = vmax.xlane.f32.xlu0 %v2908
  %v3035 = vpop.xlane.xlu0 %3034
  %3036 = vmax.xlane.f32.xlu0 %v2909
  %v3037 = vpop.xlane.xlu0 %3036
  %v3038 = vsub.f32 %v2846, %v2911
  %v3039 = vsub.f32 %v2847, %v2913
  %v3040 = vsub.f32 %v2848, %v2915
  %v3041 = vsub.f32 %v2849, %v2917
  %v3042 = vsub.f32 %v2850, %v2919
  %v3043 = vsub.f32 %v2851, %v2921
  %v3044 = vsub.f32 %v2852, %v2923
  %v3045 = vsub.f32 %v2853, %v2925
  %v3046 = vsub.f32 %v2854, %v2927
  %v3047 = vsub.f32 %v2855, %v2929
  %v3048 = vsub.f32 %v2856, %v2931
  %v3049 = vsub.f32 %v2857, %v2933
  %v3050 = vsub.f32 %v2858, %v2935
  %v3051 = vsub.f32 %v2859, %v2937
  %v3052 = vsub.f32 %v2860, %v2939
  %v3053 = vsub.f32 %v2861, %v2941
  %v3054 = vsub.f32 %v2862, %v2943
  %v3055 = vsub.f32 %v2863, %v2945
  %v3056 = vsub.f32 %v2864, %v2947
  %v3057 = vsub.f32 %v2865, %v2949
  %v3058 = vsub.f32 %v2866, %v2951
  %v3059 = vsub.f32 %v2867, %v2953
  %v3060 = vsub.f32 %v2868, %v2955
  %v3061 = vsub.f32 %v2869, %v2957
  %v3062 = vsub.f32 %v2870, %v2959
  %v3063 = vsub.f32 %v2871, %v2961
  %v3064 = vsub.f32 %v2872, %v2963
  %v3065 = vsub.f32 %v2873, %v2965
  %v3066 = vsub.f32 %v2874, %v2967
  %v3067 = vsub.f32 %v2875, %v2969
  %v3068 = vsub.f32 %v2876, %v2971
  %v3069 = vsub.f32 %v2877, %v2973
  %v3070 = vsub.f32 %v2878, %v2975
  %v3071 = vsub.f32 %v2879, %v2977
  %v3072 = vsub.f32 %v2880, %v2979
  %v3073 = vsub.f32 %v2881, %v2981
  %v3074 = vsub.f32 %v2882, %v2983
  %v3075 = vsub.f32 %v2883, %v2985
  %v3076 = vsub.f32 %v2884, %v2987
  %v3077 = vsub.f32 %v2885, %v2989
  %v3078 = vsub.f32 %v2886, %v2991
  %v3079 = vsub.f32 %v2887, %v2993
  %v3080 = vsub.f32 %v2888, %v2995
  %v3081 = vsub.f32 %v2889, %v2997
  %v3082 = vsub.f32 %v2890, %v2999
  %v3083 = vsub.f32 %v2891, %v3001
  %v3084 = vsub.f32 %v2892, %v3003
  %v3085 = vsub.f32 %v2893, %v3005
  %v3086 = vsub.f32 %v2894, %v3007
  %v3087 = vsub.f32 %v2895, %v3009
  %v3088 = vsub.f32 %v2896, %v3011
  %v3089 = vsub.f32 %v2897, %v3013
  %v3090 = vsub.f32 %v2898, %v3015
  %v3091 = vsub.f32 %v2899, %v3017
  %v3092 = vsub.f32 %v2900, %v3019
  %v3093 = vsub.f32 %v2901, %v3021
  %v3094 = vsub.f32 %v2902, %v3023
  %v3095 = vsub.f32 %v2903, %v3025
  %v3096 = vsub.f32 %v2904, %v3027
  %v3097 = vsub.f32 %v2905, %v3029
  %v3098 = vsub.f32 %v2906, %v3031
  %v3099 = vsub.f32 %v2907, %v3033
  %v3100 = vsub.f32 %v2908, %v3035
  %v3101 = vsub.f32 %v2909, %v3037
  %v3102 = vmul.f32 %v3038, 1.442695
  %v3103 = vpow.pop %v3102
  %v3104 = vmul.f32 %v3039, 1.442695
  %v3105 = vpow.pop %v3104
  %v3106 = vmul.f32 %v3040, 1.442695
  %v3107 = vpow.pop %v3106
  %v3108 = vmul.f32 %v3041, 1.442695
  %v3109 = vpow.pop %v3108
  %v3110 = vmul.f32 %v3042, 1.442695
  %v3111 = vpow.pop %v3110
  %v3112 = vmul.f32 %v3043, 1.442695
  %v3113 = vpow.pop %v3112
  %v3114 = vmul.f32 %v3044, 1.442695
  %v3115 = vpow.pop %v3114
  %v3116 = vmul.f32 %v3045, 1.442695
  %v3117 = vpow.pop %v3116
  %v3118 = vmul.f32 %v3046, 1.442695
  %v3119 = vpow.pop %v3118
  %v3120 = vmul.f32 %v3047, 1.442695
  %v3121 = vpow.pop %v3120
  %v3122 = vmul.f32 %v3048, 1.442695
  %v3123 = vpow.pop %v3122
  %v3124 = vmul.f32 %v3049, 1.442695
  %v3125 = vpow.pop %v3124
  %v3126 = vmul.f32 %v3050, 1.442695
  %v3127 = vpow.pop %v3126
  %v3128 = vmul.f32 %v3051, 1.442695
  %v3129 = vpow.pop %v3128
  %v3130 = vmul.f32 %v3052, 1.442695
  %v3131 = vpow.pop %v3130
  %v3132 = vmul.f32 %v3053, 1.442695
  %v3133 = vpow.pop %v3132
  %v3134 = vmul.f32 %v3054, 1.442695
  %v3135 = vpow.pop %v3134
  %v3136 = vmul.f32 %v3055, 1.442695
  %v3137 = vpow.pop %v3136
  %v3138 = vmul.f32 %v3056, 1.442695
  %v3139 = vpow.pop %v3138
  %v3140 = vmul.f32 %v3057, 1.442695
  %v3141 = vpow.pop %v3140
  %v3142 = vmul.f32 %v3058, 1.442695
  %v3143 = vpow.pop %v3142
  %v3144 = vmul.f32 %v3059, 1.442695
  %v3145 = vpow.pop %v3144
  %v3146 = vmul.f32 %v3060, 1.442695
  %v3147 = vpow.pop %v3146
  %v3148 = vmul.f32 %v3061, 1.442695
  %v3149 = vpow.pop %v3148
  %v3150 = vmul.f32 %v3062, 1.442695
  %v3151 = vpow.pop %v3150
  %v3152 = vmul.f32 %v3063, 1.442695
  %v3153 = vpow.pop %v3152
  %v3154 = vmul.f32 %v3064, 1.442695
  %v3155 = vpow.pop %v3154
  %v3156 = vmul.f32 %v3065, 1.442695
  %v3157 = vpow.pop %v3156
  %v3158 = vmul.f32 %v3066, 1.442695
  %v3159 = vpow.pop %v3158
  %v3160 = vmul.f32 %v3067, 1.442695
  %v3161 = vpow.pop %v3160
  %v3162 = vmul.f32 %v3068, 1.442695
  %v3163 = vpow.pop %v3162
  %v3164 = vmul.f32 %v3069, 1.442695
  %v3165 = vpow.pop %v3164
  %v3166 = vmul.f32 %v3070, 1.442695
  %v3167 = vpow.pop %v3166
  %v3168 = vmul.f32 %v3071, 1.442695
  %v3169 = vpow.pop %v3168
  %v3170 = vmul.f32 %v3072, 1.442695
  %v3171 = vpow.pop %v3170
  %v3172 = vmul.f32 %v3073, 1.442695
  %v3173 = vpow.pop %v3172
  %v3174 = vmul.f32 %v3074, 1.442695
  %v3175 = vpow.pop %v3174
  %v3176 = vmul.f32 %v3075, 1.442695
  %v3177 = vpow.pop %v3176
  %v3178 = vmul.f32 %v3076, 1.442695
  %v3179 = vpow.pop %v3178
  %v3180 = vmul.f32 %v3077, 1.442695
  %v3181 = vpow.pop %v3180
  %v3182 = vmul.f32 %v3078, 1.442695
  %v3183 = vpow.pop %v3182
  %v3184 = vmul.f32 %v3079, 1.442695
  %v3185 = vpow.pop %v3184
  %v3186 = vmul.f32 %v3080, 1.442695
  %v3187 = vpow.pop %v3186
  %v3188 = vmul.f32 %v3081, 1.442695
  %v3189 = vpow.pop %v3188
  %v3190 = vmul.f32 %v3082, 1.442695
  %v3191 = vpow.pop %v3190
  %v3192 = vmul.f32 %v3083, 1.442695
  %v3193 = vpow.pop %v3192
  %v3194 = vmul.f32 %v3084, 1.442695
  %v3195 = vpow.pop %v3194
  %v3196 = vmul.f32 %v3085, 1.442695
  %v3197 = vpow.pop %v3196
  %v3198 = vmul.f32 %v3086, 1.442695
  %v3199 = vpow.pop %v3198
  %v3200 = vmul.f32 %v3087, 1.442695
  %v3201 = vpow.pop %v3200
  %v3202 = vmul.f32 %v3088, 1.442695
  %v3203 = vpow.pop %v3202
  %v3204 = vmul.f32 %v3089, 1.442695
  %v3205 = vpow.pop %v3204
  %v3206 = vmul.f32 %v3090, 1.442695
  %v3207 = vpow.pop %v3206
  %v3208 = vmul.f32 %v3091, 1.442695
  %v3209 = vpow.pop %v3208
  %v3210 = vmul.f32 %v3092, 1.442695
  %v3211 = vpow.pop %v3210
  %v3212 = vmul.f32 %v3093, 1.442695
  %v3213 = vpow.pop %v3212
  %v3214 = vmul.f32 %v3094, 1.442695
  %v3215 = vpow.pop %v3214
  %v3216 = vmul.f32 %v3095, 1.442695
  %v3217 = vpow.pop %v3216
  %v3218 = vmul.f32 %v3096, 1.442695
  %v3219 = vpow.pop %v3218
  %v3220 = vmul.f32 %v3097, 1.442695
  %v3221 = vpow.pop %v3220
  %v3222 = vmul.f32 %v3098, 1.442695
  %v3223 = vpow.pop %v3222
  %v3224 = vmul.f32 %v3099, 1.442695
  %v3225 = vpow.pop %v3224
  %v3226 = vmul.f32 %v3100, 1.442695
  %v3227 = vpow.pop %v3226
  %v3228 = vmul.f32 %v3101, 1.442695
  %v3229 = vpow.pop %v3228
  %v3230 = vsel %vm2845, %v3103, 0.0
  %v3231 = vsel %vm2845, %v3105, 0.0
  %v3232 = vsel %vm2845, %v3107, 0.0
  %v3233 = vsel %vm2845, %v3109, 0.0
  %v3234 = vsel %vm2845, %v3111, 0.0
  %v3235 = vsel %vm2845, %v3113, 0.0
  %v3236 = vsel %vm2845, %v3115, 0.0
  %v3237 = vsel %vm2845, %v3117, 0.0
  %v3238 = vsel %vm2845, %v3119, 0.0
  %v3239 = vsel %vm2845, %v3121, 0.0
  %v3240 = vsel %vm2845, %v3123, 0.0
  %v3241 = vsel %vm2845, %v3125, 0.0
  %v3242 = vsel %vm2845, %v3127, 0.0
  %v3243 = vsel %vm2845, %v3129, 0.0
  %v3244 = vsel %vm2845, %v3131, 0.0
  %v3245 = vsel %vm2845, %v3133, 0.0
  %v3246 = vsel %vm2845, %v3135, 0.0
  %v3247 = vsel %vm2845, %v3137, 0.0
  %v3248 = vsel %vm2845, %v3139, 0.0
  %v3249 = vsel %vm2845, %v3141, 0.0
  %v3250 = vsel %vm2845, %v3143, 0.0
  %v3251 = vsel %vm2845, %v3145, 0.0
  %v3252 = vsel %vm2845, %v3147, 0.0
  %v3253 = vsel %vm2845, %v3149, 0.0
  %v3254 = vsel %vm2845, %v3151, 0.0
  %v3255 = vsel %vm2845, %v3153, 0.0
  %v3256 = vsel %vm2845, %v3155, 0.0
  %v3257 = vsel %vm2845, %v3157, 0.0
  %v3258 = vsel %vm2845, %v3159, 0.0
  %v3259 = vsel %vm2845, %v3161, 0.0
  %v3260 = vsel %vm2845, %v3163, 0.0
  %v3261 = vsel %vm2845, %v3165, 0.0
  %v3262 = vsel %vm2845, %v3167, 0.0
  %v3263 = vsel %vm2845, %v3169, 0.0
  %v3264 = vsel %vm2845, %v3171, 0.0
  %v3265 = vsel %vm2845, %v3173, 0.0
  %v3266 = vsel %vm2845, %v3175, 0.0
  %v3267 = vsel %vm2845, %v3177, 0.0
  %v3268 = vsel %vm2845, %v3179, 0.0
  %v3269 = vsel %vm2845, %v3181, 0.0
  %v3270 = vsel %vm2845, %v3183, 0.0
  %v3271 = vsel %vm2845, %v3185, 0.0
  %v3272 = vsel %vm2845, %v3187, 0.0
  %v3273 = vsel %vm2845, %v3189, 0.0
  %v3274 = vsel %vm2845, %v3191, 0.0
  %v3275 = vsel %vm2845, %v3193, 0.0
  %v3276 = vsel %vm2845, %v3195, 0.0
  %v3277 = vsel %vm2845, %v3197, 0.0
  %v3278 = vsel %vm2845, %v3199, 0.0
  %v3279 = vsel %vm2845, %v3201, 0.0
  %v3280 = vsel %vm2845, %v3203, 0.0
  %v3281 = vsel %vm2845, %v3205, 0.0
  %v3282 = vsel %vm2845, %v3207, 0.0
  %v3283 = vsel %vm2845, %v3209, 0.0
  %v3284 = vsel %vm2845, %v3211, 0.0
  %v3285 = vsel %vm2845, %v3213, 0.0
  %v3286 = vsel %vm2845, %v3215, 0.0
  %v3287 = vsel %vm2845, %v3217, 0.0
  %v3288 = vsel %vm2845, %v3219, 0.0
  %v3289 = vsel %vm2845, %v3221, 0.0
  %v3290 = vsel %vm2845, %v3223, 0.0
  %v3291 = vsel %vm2845, %v3225, 0.0
  %v3292 = vsel %vm2845, %v3227, 0.0
  %v3293 = vsel %vm2845, %v3229, 0.0
  %3294 = vadd.xlane.f32.xlu0 %v3230
  %v3295 = vpop.xlane.xlu0 %3294
  %3296 = vadd.xlane.f32.xlu0 %v3231
  %v3297 = vpop.xlane.xlu0 %3296
  %3298 = vadd.xlane.f32.xlu0 %v3232
  %v3299 = vpop.xlane.xlu0 %3298
  %3300 = vadd.xlane.f32.xlu0 %v3233
  %v3301 = vpop.xlane.xlu0 %3300
  %3302 = vadd.xlane.f32.xlu0 %v3234
  %v3303 = vpop.xlane.xlu0 %3302
  %3304 = vadd.xlane.f32.xlu0 %v3235
  %v3305 = vpop.xlane.xlu0 %3304
  %3306 = vadd.xlane.f32.xlu0 %v3236
  %v3307 = vpop.xlane.xlu0 %3306
  %3308 = vadd.xlane.f32.xlu0 %v3237
  %v3309 = vpop.xlane.xlu0 %3308
  %3310 = vadd.xlane.f32.xlu0 %v3238
  %v3311 = vpop.xlane.xlu0 %3310
  %3312 = vadd.xlane.f32.xlu0 %v3239
  %v3313 = vpop.xlane.xlu0 %3312
  %3314 = vadd.xlane.f32.xlu0 %v3240
  %v3315 = vpop.xlane.xlu0 %3314
  %3316 = vadd.xlane.f32.xlu0 %v3241
  %v3317 = vpop.xlane.xlu0 %3316
  %3318 = vadd.xlane.f32.xlu0 %v3242
  %v3319 = vpop.xlane.xlu0 %3318
  %3320 = vadd.xlane.f32.xlu0 %v3243
  %v3321 = vpop.xlane.xlu0 %3320
  %3322 = vadd.xlane.f32.xlu0 %v3244
  %v3323 = vpop.xlane.xlu0 %3322
  %3324 = vadd.xlane.f32.xlu0 %v3245
  %v3325 = vpop.xlane.xlu0 %3324
  %3326 = vadd.xlane.f32.xlu0 %v3246
  %v3327 = vpop.xlane.xlu0 %3326
  %3328 = vadd.xlane.f32.xlu0 %v3247
  %v3329 = vpop.xlane.xlu0 %3328
  %3330 = vadd.xlane.f32.xlu0 %v3248
  %v3331 = vpop.xlane.xlu0 %3330
  %3332 = vadd.xlane.f32.xlu0 %v3249
  %v3333 = vpop.xlane.xlu0 %3332
  %3334 = vadd.xlane.f32.xlu0 %v3250
  %v3335 = vpop.xlane.xlu0 %3334
  %3336 = vadd.xlane.f32.xlu0 %v3251
  %v3337 = vpop.xlane.xlu0 %3336
  %3338 = vadd.xlane.f32.xlu0 %v3252
  %v3339 = vpop.xlane.xlu0 %3338
  %3340 = vadd.xlane.f32.xlu0 %v3253
  %v3341 = vpop.xlane.xlu0 %3340
  %3342 = vadd.xlane.f32.xlu0 %v3254
  %v3343 = vpop.xlane.xlu0 %3342
  %3344 = vadd.xlane.f32.xlu0 %v3255
  %v3345 = vpop.xlane.xlu0 %3344
  %3346 = vadd.xlane.f32.xlu0 %v3256
  %v3347 = vpop.xlane.xlu0 %3346
  %3348 = vadd.xlane.f32.xlu0 %v3257
  %v3349 = vpop.xlane.xlu0 %3348
  %3350 = vadd.xlane.f32.xlu0 %v3258
  %v3351 = vpop.xlane.xlu0 %3350
  %3352 = vadd.xlane.f32.xlu0 %v3259
  %v3353 = vpop.xlane.xlu0 %3352
  %3354 = vadd.xlane.f32.xlu0 %v3260
  %v3355 = vpop.xlane.xlu0 %3354
  %3356 = vadd.xlane.f32.xlu0 %v3261
  %v3357 = vpop.xlane.xlu0 %3356
  %3358 = vadd.xlane.f32.xlu0 %v3262
  %v3359 = vpop.xlane.xlu0 %3358
  %3360 = vadd.xlane.f32.xlu0 %v3263
  %v3361 = vpop.xlane.xlu0 %3360
  %3362 = vadd.xlane.f32.xlu0 %v3264
  %v3363 = vpop.xlane.xlu0 %3362
  %3364 = vadd.xlane.f32.xlu0 %v3265
  %v3365 = vpop.xlane.xlu0 %3364
  %3366 = vadd.xlane.f32.xlu0 %v3266
  %v3367 = vpop.xlane.xlu0 %3366
  %3368 = vadd.xlane.f32.xlu0 %v3267
  %v3369 = vpop.xlane.xlu0 %3368
  %3370 = vadd.xlane.f32.xlu0 %v3268
  %v3371 = vpop.xlane.xlu0 %3370
  %3372 = vadd.xlane.f32.xlu0 %v3269
  %v3373 = vpop.xlane.xlu0 %3372
  %3374 = vadd.xlane.f32.xlu0 %v3270
  %v3375 = vpop.xlane.xlu0 %3374
  %3376 = vadd.xlane.f32.xlu0 %v3271
  %v3377 = vpop.xlane.xlu0 %3376
  %3378 = vadd.xlane.f32.xlu0 %v3272
  %v3379 = vpop.xlane.xlu0 %3378
  %3380 = vadd.xlane.f32.xlu0 %v3273
  %v3381 = vpop.xlane.xlu0 %3380
  %3382 = vadd.xlane.f32.xlu0 %v3274
  %v3383 = vpop.xlane.xlu0 %3382
  %3384 = vadd.xlane.f32.xlu0 %v3275
  %v3385 = vpop.xlane.xlu0 %3384
  %3386 = vadd.xlane.f32.xlu0 %v3276
  %v3387 = vpop.xlane.xlu0 %3386
  %3388 = vadd.xlane.f32.xlu0 %v3277
  %v3389 = vpop.xlane.xlu0 %3388
  %3390 = vadd.xlane.f32.xlu0 %v3278
  %v3391 = vpop.xlane.xlu0 %3390
  %3392 = vadd.xlane.f32.xlu0 %v3279
  %v3393 = vpop.xlane.xlu0 %3392
  %3394 = vadd.xlane.f32.xlu0 %v3280
  %v3395 = vpop.xlane.xlu0 %3394
  %3396 = vadd.xlane.f32.xlu0 %v3281
  %v3397 = vpop.xlane.xlu0 %3396
  %3398 = vadd.xlane.f32.xlu0 %v3282
  %v3399 = vpop.xlane.xlu0 %3398
  %3400 = vadd.xlane.f32.xlu0 %v3283
  %v3401 = vpop.xlane.xlu0 %3400
  %3402 = vadd.xlane.f32.xlu0 %v3284
  %v3403 = vpop.xlane.xlu0 %3402
  %3404 = vadd.xlane.f32.xlu0 %v3285
  %v3405 = vpop.xlane.xlu0 %3404
  %3406 = vadd.xlane.f32.xlu0 %v3286
  %v3407 = vpop.xlane.xlu0 %3406
  %3408 = vadd.xlane.f32.xlu0 %v3287
  %v3409 = vpop.xlane.xlu0 %3408
  %3410 = vadd.xlane.f32.xlu0 %v3288
  %v3411 = vpop.xlane.xlu0 %3410
  %3412 = vadd.xlane.f32.xlu0 %v3289
  %v3413 = vpop.xlane.xlu0 %3412
  %3414 = vadd.xlane.f32.xlu0 %v3290
  %v3415 = vpop.xlane.xlu0 %3414
  %3416 = vadd.xlane.f32.xlu0 %v3291
  %v3417 = vpop.xlane.xlu0 %3416
  %3418 = vadd.xlane.f32.xlu0 %v3292
  %v3419 = vpop.xlane.xlu0 %3418
  %3420 = vadd.xlane.f32.xlu0 %v3293
  %v3421 = vpop.xlane.xlu0 %3420
  %v3422 = vlog2.pop %v3295
  %v3423 = vmul.f32 %v3422, 0.6931472
  %v3424 = vlog2.pop %v3297
  %v3425 = vmul.f32 %v3424, 0.6931472
  %v3426 = vlog2.pop %v3299
  %v3427 = vmul.f32 %v3426, 0.6931472
  %v3428 = vlog2.pop %v3301
  %v3429 = vmul.f32 %v3428, 0.6931472
  %v3430 = vlog2.pop %v3303
  %v3431 = vmul.f32 %v3430, 0.6931472
  %v3432 = vlog2.pop %v3305
  %v3433 = vmul.f32 %v3432, 0.6931472
  %v3434 = vlog2.pop %v3307
  %v3435 = vmul.f32 %v3434, 0.6931472
  %v3436 = vlog2.pop %v3309
  %v3437 = vmul.f32 %v3436, 0.6931472
  %v3438 = vlog2.pop %v3311
  %v3439 = vmul.f32 %v3438, 0.6931472
  %v3440 = vlog2.pop %v3313
  %v3441 = vmul.f32 %v3440, 0.6931472
  %v3442 = vlog2.pop %v3315
  %v3443 = vmul.f32 %v3442, 0.6931472
  %v3444 = vlog2.pop %v3317
  %v3445 = vmul.f32 %v3444, 0.6931472
  %v3446 = vlog2.pop %v3319
  %v3447 = vmul.f32 %v3446, 0.6931472
  %v3448 = vlog2.pop %v3321
  %v3449 = vmul.f32 %v3448, 0.6931472
  %v3450 = vlog2.pop %v3323
  %v3451 = vmul.f32 %v3450, 0.6931472
  %v3452 = vlog2.pop %v3325
  %v3453 = vmul.f32 %v3452, 0.6931472
  %v3454 = vlog2.pop %v3327
  %v3455 = vmul.f32 %v3454, 0.6931472
  %v3456 = vlog2.pop %v3329
  %v3457 = vmul.f32 %v3456, 0.6931472
  %v3458 = vlog2.pop %v3331
  %v3459 = vmul.f32 %v3458, 0.6931472
  %v3460 = vlog2.pop %v3333
  %v3461 = vmul.f32 %v3460, 0.6931472
  %v3462 = vlog2.pop %v3335
  %v3463 = vmul.f32 %v3462, 0.6931472
  %v3464 = vlog2.pop %v3337
  %v3465 = vmul.f32 %v3464, 0.6931472
  %v3466 = vlog2.pop %v3339
  %v3467 = vmul.f32 %v3466, 0.6931472
  %v3468 = vlog2.pop %v3341
  %v3469 = vmul.f32 %v3468, 0.6931472
  %v3470 = vlog2.pop %v3343
  %v3471 = vmul.f32 %v3470, 0.6931472
  %v3472 = vlog2.pop %v3345
  %v3473 = vmul.f32 %v3472, 0.6931472
  %v3474 = vlog2.pop %v3347
  %v3475 = vmul.f32 %v3474, 0.6931472
  %v3476 = vlog2.pop %v3349
  %v3477 = vmul.f32 %v3476, 0.6931472
  %v3478 = vlog2.pop %v3351
  %v3479 = vmul.f32 %v3478, 0.6931472
  %v3480 = vlog2.pop %v3353
  %v3481 = vmul.f32 %v3480, 0.6931472
  %v3482 = vlog2.pop %v3355
  %v3483 = vmul.f32 %v3482, 0.6931472
  %v3484 = vlog2.pop %v3357
  %v3485 = vmul.f32 %v3484, 0.6931472
  %v3486 = vlog2.pop %v3359
  %v3487 = vmul.f32 %v3486, 0.6931472
  %v3488 = vlog2.pop %v3361
  %v3489 = vmul.f32 %v3488, 0.6931472
  %v3490 = vlog2.pop %v3363
  %v3491 = vmul.f32 %v3490, 0.6931472
  %v3492 = vlog2.pop %v3365
  %v3493 = vmul.f32 %v3492, 0.6931472
  %v3494 = vlog2.pop %v3367
  %v3495 = vmul.f32 %v3494, 0.6931472
  %v3496 = vlog2.pop %v3369
  %v3497 = vmul.f32 %v3496, 0.6931472
  %v3498 = vlog2.pop %v3371
  %v3499 = vmul.f32 %v3498, 0.6931472
  %v3500 = vlog2.pop %v3373
  %v3501 = vmul.f32 %v3500, 0.6931472
  %v3502 = vlog2.pop %v3375
  %v3503 = vmul.f32 %v3502, 0.6931472
  %v3504 = vlog2.pop %v3377
  %v3505 = vmul.f32 %v3504, 0.6931472
  %v3506 = vlog2.pop %v3379
  %v3507 = vmul.f32 %v3506, 0.6931472
  %v3508 = vlog2.pop %v3381
  %v3509 = vmul.f32 %v3508, 0.6931472
  %v3510 = vlog2.pop %v3383
  %v3511 = vmul.f32 %v3510, 0.6931472
  %v3512 = vlog2.pop %v3385
  %v3513 = vmul.f32 %v3512, 0.6931472
  %v3514 = vlog2.pop %v3387
  %v3515 = vmul.f32 %v3514, 0.6931472
  %v3516 = vlog2.pop %v3389
  %v3517 = vmul.f32 %v3516, 0.6931472
  %v3518 = vlog2.pop %v3391
  %v3519 = vmul.f32 %v3518, 0.6931472
  %v3520 = vlog2.pop %v3393
  %v3521 = vmul.f32 %v3520, 0.6931472
  %v3522 = vlog2.pop %v3395
  %v3523 = vmul.f32 %v3522, 0.6931472
  %v3524 = vlog2.pop %v3397
  %v3525 = vmul.f32 %v3524, 0.6931472
  %v3526 = vlog2.pop %v3399
  %v3527 = vmul.f32 %v3526, 0.6931472
  %v3528 = vlog2.pop %v3401
  %v3529 = vmul.f32 %v3528, 0.6931472
  %v3530 = vlog2.pop %v3403
  %v3531 = vmul.f32 %v3530, 0.6931472
  %v3532 = vlog2.pop %v3405
  %v3533 = vmul.f32 %v3532, 0.6931472
  %v3534 = vlog2.pop %v3407
  %v3535 = vmul.f32 %v3534, 0.6931472
  %v3536 = vlog2.pop %v3409
  %v3537 = vmul.f32 %v3536, 0.6931472
  %v3538 = vlog2.pop %v3411
  %v3539 = vmul.f32 %v3538, 0.6931472
  %v3540 = vlog2.pop %v3413
  %v3541 = vmul.f32 %v3540, 0.6931472
  %v3542 = vlog2.pop %v3415
  %v3543 = vmul.f32 %v3542, 0.6931472
  %v3544 = vlog2.pop %v3417
  %v3545 = vmul.f32 %v3544, 0.6931472
  %v3546 = vlog2.pop %v3419
  %v3547 = vmul.f32 %v3546, 0.6931472
  %v3548 = vlog2.pop %v3421
  %v3549 = vmul.f32 %v3548, 0.6931472
  %v3550 = vsub.f32 %v3038, %v3423
  %v3551 = vsub.f32 %v3039, %v3425
  %v3552 = vsub.f32 %v3040, %v3427
  %v3553 = vsub.f32 %v3041, %v3429
  %v3554 = vsub.f32 %v3042, %v3431
  %v3555 = vsub.f32 %v3043, %v3433
  %v3556 = vsub.f32 %v3044, %v3435
  %v3557 = vsub.f32 %v3045, %v3437
  %v3558 = vsub.f32 %v3046, %v3439
  %v3559 = vsub.f32 %v3047, %v3441
  %v3560 = vsub.f32 %v3048, %v3443
  %v3561 = vsub.f32 %v3049, %v3445
  %v3562 = vsub.f32 %v3050, %v3447
  %v3563 = vsub.f32 %v3051, %v3449
  %v3564 = vsub.f32 %v3052, %v3451
  %v3565 = vsub.f32 %v3053, %v3453
  %v3566 = vsub.f32 %v3054, %v3455
  %v3567 = vsub.f32 %v3055, %v3457
  %v3568 = vsub.f32 %v3056, %v3459
  %v3569 = vsub.f32 %v3057, %v3461
  %v3570 = vsub.f32 %v3058, %v3463
  %v3571 = vsub.f32 %v3059, %v3465
  %v3572 = vsub.f32 %v3060, %v3467
  %v3573 = vsub.f32 %v3061, %v3469
  %v3574 = vsub.f32 %v3062, %v3471
  %v3575 = vsub.f32 %v3063, %v3473
  %v3576 = vsub.f32 %v3064, %v3475
  %v3577 = vsub.f32 %v3065, %v3477
  %v3578 = vsub.f32 %v3066, %v3479
  %v3579 = vsub.f32 %v3067, %v3481
  %v3580 = vsub.f32 %v3068, %v3483
  %v3581 = vsub.f32 %v3069, %v3485
  %v3582 = vsub.f32 %v3070, %v3487
  %v3583 = vsub.f32 %v3071, %v3489
  %v3584 = vsub.f32 %v3072, %v3491
  %v3585 = vsub.f32 %v3073, %v3493
  %v3586 = vsub.f32 %v3074, %v3495
  %v3587 = vsub.f32 %v3075, %v3497
  %v3588 = vsub.f32 %v3076, %v3499
  %v3589 = vsub.f32 %v3077, %v3501
  %v3590 = vsub.f32 %v3078, %v3503
  %v3591 = vsub.f32 %v3079, %v3505
  %v3592 = vsub.f32 %v3080, %v3507
  %v3593 = vsub.f32 %v3081, %v3509
  %v3594 = vsub.f32 %v3082, %v3511
  %v3595 = vsub.f32 %v3083, %v3513
  %v3596 = vsub.f32 %v3084, %v3515
  %v3597 = vsub.f32 %v3085, %v3517
  %v3598 = vsub.f32 %v3086, %v3519
  %v3599 = vsub.f32 %v3087, %v3521
  %v3600 = vsub.f32 %v3088, %v3523
  %v3601 = vsub.f32 %v3089, %v3525
  %v3602 = vsub.f32 %v3090, %v3527
  %v3603 = vsub.f32 %v3091, %v3529
  %v3604 = vsub.f32 %v3092, %v3531
  %v3605 = vsub.f32 %v3093, %v3533
  %v3606 = vsub.f32 %v3094, %v3535
  %v3607 = vsub.f32 %v3095, %v3537
  %v3608 = vsub.f32 %v3096, %v3539
  %v3609 = vsub.f32 %v3097, %v3541
  %v3610 = vsub.f32 %v3098, %v3543
  %v3611 = vsub.f32 %v3099, %v3545
  %v3612 = vsub.f32 %v3100, %v3547
  %v3613 = vsub.f32 %v3101, %v3549
  %v3614 = vsel %vm2845, %v3550, 0.0
  %v3615 = vsel %vm2845, %v3551, 0.0
  %v3616 = vsel %vm2845, %v3552, 0.0
  %v3617 = vsel %vm2845, %v3553, 0.0
  %v3618 = vsel %vm2845, %v3554, 0.0
  %v3619 = vsel %vm2845, %v3555, 0.0
  %v3620 = vsel %vm2845, %v3556, 0.0
  %v3621 = vsel %vm2845, %v3557, 0.0
  %v3622 = vsel %vm2845, %v3558, 0.0
  %v3623 = vsel %vm2845, %v3559, 0.0
  %v3624 = vsel %vm2845, %v3560, 0.0
  %v3625 = vsel %vm2845, %v3561, 0.0
  %v3626 = vsel %vm2845, %v3562, 0.0
  %v3627 = vsel %vm2845, %v3563, 0.0
  %v3628 = vsel %vm2845, %v3564, 0.0
  %v3629 = vsel %vm2845, %v3565, 0.0
  %v3630 = vsel %vm2845, %v3566, 0.0
  %v3631 = vsel %vm2845, %v3567, 0.0
  %v3632 = vsel %vm2845, %v3568, 0.0
  %v3633 = vsel %vm2845, %v3569, 0.0
  %v3634 = vsel %vm2845, %v3570, 0.0
  %v3635 = vsel %vm2845, %v3571, 0.0
  %v3636 = vsel %vm2845, %v3572, 0.0
  %v3637 = vsel %vm2845, %v3573, 0.0
  %v3638 = vsel %vm2845, %v3574, 0.0
  %v3639 = vsel %vm2845, %v3575, 0.0
  %v3640 = vsel %vm2845, %v3576, 0.0
  %v3641 = vsel %vm2845, %v3577, 0.0
  %v3642 = vsel %vm2845, %v3578, 0.0
  %v3643 = vsel %vm2845, %v3579, 0.0
  %v3644 = vsel %vm2845, %v3580, 0.0
  %v3645 = vsel %vm2845, %v3581, 0.0
  %v3646 = vsel %vm2845, %v3582, 0.0
  %v3647 = vsel %vm2845, %v3583, 0.0
  %v3648 = vsel %vm2845, %v3584, 0.0
  %v3649 = vsel %vm2845, %v3585, 0.0
  %v3650 = vsel %vm2845, %v3586, 0.0
  %v3651 = vsel %vm2845, %v3587, 0.0
  %v3652 = vsel %vm2845, %v3588, 0.0
  %v3653 = vsel %vm2845, %v3589, 0.0
  %v3654 = vsel %vm2845, %v3590, 0.0
  %v3655 = vsel %vm2845, %v3591, 0.0
  %v3656 = vsel %vm2845, %v3592, 0.0
  %v3657 = vsel %vm2845, %v3593, 0.0
  %v3658 = vsel %vm2845, %v3594, 0.0
  %v3659 = vsel %vm2845, %v3595, 0.0
  %v3660 = vsel %vm2845, %v3596, 0.0
  %v3661 = vsel %vm2845, %v3597, 0.0
  %v3662 = vsel %vm2845, %v3598, 0.0
  %v3663 = vsel %vm2845, %v3599, 0.0
  %v3664 = vsel %vm2845, %v3600, 0.0
  %v3665 = vsel %vm2845, %v3601, 0.0
  %v3666 = vsel %vm2845, %v3602, 0.0
  %v3667 = vsel %vm2845, %v3603, 0.0
  %v3668 = vsel %vm2845, %v3604, 0.0
  %v3669 = vsel %vm2845, %v3605, 0.0
  %v3670 = vsel %vm2845, %v3606, 0.0
  %v3671 = vsel %vm2845, %v3607, 0.0
  %v3672 = vsel %vm2845, %v3608, 0.0
  %v3673 = vsel %vm2845, %v3609, 0.0
  %v3674 = vsel %vm2845, %v3610, 0.0
  %v3675 = vsel %vm2845, %v3611, 0.0
  %v3676 = vsel %vm2845, %v3612, 0.0
  %v3677 = vsel %vm2845, %v3613, 0.0
  %3678 = vst [vmem:[%s6] sm:$0xff] %v3614
  %3679 = vst [vmem:[%s6 + $0x8] sm:$0xff] %v3615
  %3680 = vst [vmem:[%s6 + $0x10] sm:$0xff] %v3616
  %3681 = vst [vmem:[%s6 + $0x18] sm:$0xff] %v3617
  %3682 = vst [vmem:[%s6 + $0x20] sm:$0xff] %v3618
  %3683 = vst [vmem:[%s6 + $0x28] sm:$0xff] %v3619
  %3684 = vst [vmem:[%s6 + $0x30] sm:$0xff] %v3620
  %3685 = vst [vmem:[%s6 + $0x38] sm:$0xff] %v3621
  %3686 = vst [vmem:[%s6 + $0x40] sm:$0xff] %v3622
  %3687 = vst [vmem:[%s6 + $0x48] sm:$0xff] %v3623
  %3688 = vst [vmem:[%s6 + $0x50] sm:$0xff] %v3624
  %3689 = vst [vmem:[%s6 + $0x58] sm:$0xff] %v3625
  %3690 = vst [vmem:[%s6 + $0x60] sm:$0xff] %v3626
  %3691 = vst [vmem:[%s6 + $0x68] sm:$0xff] %v3627
  %3692 = vst [vmem:[%s6 + $0x70] sm:$0xff] %v3628
  %3693 = vst [vmem:[%s6 + $0x78] sm:$0xff] %v3629
  %3694 = vst [vmem:[%s6 + $0x80] sm:$0xff] %v3630
  %3695 = vst [vmem:[%s6 + $0x88] sm:$0xff] %v3631
  %3696 = vst [vmem:[%s6 + $0x90] sm:$0xff] %v3632
  %3697 = vst [vmem:[%s6 + $0x98] sm:$0xff] %v3633
  %3698 = vst [vmem:[%s6 + $0xa0] sm:$0xff] %v3634
  %3699 = vst [vmem:[%s6 + $0xa8] sm:$0xff] %v3635
  %3700 = vst [vmem:[%s6 + $0xb0] sm:$0xff] %v3636
  %3701 = vst [vmem:[%s6 + $0xb8] sm:$0xff] %v3637
  %3702 = vst [vmem:[%s6 + $0xc0] sm:$0xff] %v3638
  %3703 = vst [vmem:[%s6 + $0xc8] sm:$0xff] %v3639
  %3704 = vst [vmem:[%s6 + $0xd0] sm:$0xff] %v3640
  %3705 = vst [vmem:[%s6 + $0xd8] sm:$0xff] %v3641
  %3706 = vst [vmem:[%s6 + $0xe0] sm:$0xff] %v3642
  %3707 = vst [vmem:[%s6 + $0xe8] sm:$0xff] %v3643
  %3708 = vst [vmem:[%s6 + $0xf0] sm:$0xff] %v3644
  %3709 = vst [vmem:[%s6 + $0xf8] sm:$0xff] %v3645
  %3710 = vst [vmem:[%s6 + $0x100] sm:$0xff] %v3646
  %3711 = vst [vmem:[%s6 + $0x108] sm:$0xff] %v3647
  %3712 = vst [vmem:[%s6 + $0x110] sm:$0xff] %v3648
  %3713 = vst [vmem:[%s6 + $0x118] sm:$0xff] %v3649
  %3714 = vst [vmem:[%s6 + $0x120] sm:$0xff] %v3650
  %3715 = vst [vmem:[%s6 + $0x128] sm:$0xff] %v3651
  %3716 = vst [vmem:[%s6 + $0x130] sm:$0xff] %v3652
  %3717 = vst [vmem:[%s6 + $0x138] sm:$0xff] %v3653
  %3718 = vst [vmem:[%s6 + $0x140] sm:$0xff] %v3654
  %3719 = vst [vmem:[%s6 + $0x148] sm:$0xff] %v3655
  %3720 = vst [vmem:[%s6 + $0x150] sm:$0xff] %v3656
  %3721 = vst [vmem:[%s6 + $0x158] sm:$0xff] %v3657
  %3722 = vst [vmem:[%s6 + $0x160] sm:$0xff] %v3658
  %3723 = vst [vmem:[%s6 + $0x168] sm:$0xff] %v3659
  %3724 = vst [vmem:[%s6 + $0x170] sm:$0xff] %v3660
  %3725 = vst [vmem:[%s6 + $0x178] sm:$0xff] %v3661
  %3726 = vst [vmem:[%s6 + $0x180] sm:$0xff] %v3662
  %3727 = vst [vmem:[%s6 + $0x188] sm:$0xff] %v3663
  %3728 = vst [vmem:[%s6 + $0x190] sm:$0xff] %v3664
  %3729 = vst [vmem:[%s6 + $0x198] sm:$0xff] %v3665
  %3730 = vst [vmem:[%s6 + $0x1a0] sm:$0xff] %v3666
  %3731 = vst [vmem:[%s6 + $0x1a8] sm:$0xff] %v3667
  %3732 = vst [vmem:[%s6 + $0x1b0] sm:$0xff] %v3668
  %3733 = vst [vmem:[%s6 + $0x1b8] sm:$0xff] %v3669
  %3734 = vst [vmem:[%s6 + $0x1c0] sm:$0xff] %v3670
  %3735 = vst [vmem:[%s6 + $0x1c8] sm:$0xff] %v3671
  %3736 = vst [vmem:[%s6 + $0x1d0] sm:$0xff] %v3672
  %3737 = vst [vmem:[%s6 + $0x1d8] sm:$0xff] %v3673
  %3738 = vst [vmem:[%s6 + $0x1e0] sm:$0xff] %v3674
  %3739 = vst [vmem:[%s6 + $0x1e8] sm:$0xff] %v3675
  %3740 = vst [vmem:[%s6 + $0x1f0] sm:$0xff] %v3676
  %3741 = vst [vmem:[%s6 + $0x1f8] sm:$0xff] %v3677
  // Predicated region
  $region26: #{gcn_forward.1} parent=0 // pred_check
    _
  $region27: #{gcn_forward.1} parent=0 // pred_check_branch
    %3743 = sbr.rel (0) target = $region29
  $region28: #{gcn_forward.1} parent=0 // pred_region
    _
  $region29: #{gcn_forward.1} parent=0 // pred_fallthru
    _
  // Predicated region
  $region30: #{gcn_forward.1} parent=0 // pred_check
    _
  $region31: #{gcn_forward.1} parent=0 // pred_check_branch
    %3745 = sbr.rel (0) target = $region33
  $region32: #{gcn_forward.1} parent=0 // pred_region
    _
  $region33: #{gcn_forward.1} parent=0 // pred_fallthru
    _

</llo_original>
